<compile_context>
chip_gen: v7x
topology: tpu7x:2x2x1
jax: 0.10.0
libtpu: 0.0.40
codegen_flags: <defaults>
</compile_context>

<pallas_src>
import functools

import jax
import jax.numpy as jnp
from jax import lax
from jax.experimental import pallas as pl
from jax.experimental.pallas import tpu as pltpu

_VMEM_LIMIT = 64 * 1024 * 1024  # bytes; <= physical VMEM on v5e/v6e/v7x


# ----------------------------------------------------------------------------
# Fused Bottleneck kernel:
#   conv1(1x1)+BN1+ReLU (into VMEM scratch, with 1-row halo)
#   -> conv2(3x3, pad=1)+BN2+ReLU (dx taps K-packed: 3 MXU matmuls)
#   -> [avg_pool(stride) if stride>1]
#   -> conv3(1x1)+BN3
#   -> + shortcut (1x1 strided conv+BN, or identity) -> ReLU
# ----------------------------------------------------------------------------
def _bottleneck_kernel(x_ref, w1_ref, b1_ref, w2_ref, b2_ref, w3_ref, b3_ref,
                       ws_ref, bs_ref, o_ref, y1_scr, *,
                       H, W, th, stride, conv_shortcut):
    width = w1_ref.shape[1]
    cmid = w2_ref.shape[2]
    h = pl.program_id(1)
    r0 = h * th                                   # first output row of this tile

    def conv1(x2d):
        y = jnp.dot(x2d, w1_ref[...], preferred_element_type=jnp.float32)
        return jnp.maximum(y + b1_ref[...], 0.0)

    def x_rows(row, nrows):
        start = row * W
        if (W % 8) == 0:
            start = pl.multiple_of(start, 8)
        return x_ref[pl.ds(start, nrows * W), :]

    # ---- conv1 + BN1 + ReLU for the tile rows and a 1-row halo, into VMEM ----
    xm = x_rows(r0, th)                                         # (th*W, Cin) bf16
    y1_scr[1:th + 1, :, :] = conv1(xm).astype(jnp.bfloat16).reshape(th, W, width)

    rt = r0 - 1                                                 # top halo row
    y1t = jnp.where(rt >= 0, conv1(x_rows(jnp.maximum(rt, 0), 1)), 0.0)
    y1_scr[0:1, :, :] = y1t.astype(jnp.bfloat16).reshape(1, W, width)

    rb = r0 + th                                                # bottom halo row
    y1b = jnp.where(rb < H, conv1(x_rows(jnp.minimum(rb, H - 1), 1)), 0.0)
    y1_scr[th + 1:th + 2, :, :] = y1b.astype(jnp.bfloat16).reshape(1, W, width)

    # ---- conv2 (3x3, pad=1) + BN2 + ReLU: dx taps packed along K ----
    zcol = jnp.zeros((th, 1, width), jnp.bfloat16)
    acc = jnp.zeros((th * W, cmid), jnp.float32)
    for dy in range(3):
        v = y1_scr[dy:dy + th, :, :]                            # (th, W, width)
        left = jnp.concatenate([zcol, v[:, :W - 1, :]], axis=1)    # tap dx=0 (w-1)
        right = jnp.concatenate([v[:, 1:, :], zcol], axis=1)       # tap dx=2 (w+1)
        a = jnp.concatenate([left.reshape(th * W, width),
                             v.reshape(th * W, width),
                             right.reshape(th * W, width)], axis=-1)  # (th*W, 3*width)
        acc = acc + jnp.dot(a, w2_ref[dy], preferred_element_type=jnp.float32)
    y2 = jnp.maximum(acc + b2_ref[...], 0.0)                    # (th*W, cmid) f32

    # ---- avg-pool BEFORE conv3 when strided (1x1 conv commutes with avg-pool) --
    if stride > 1:
        s = stride
        y2 = y2.reshape(th // s, s, W // s, s, cmid).mean(axis=(1, 3))
        y2 = y2.reshape((th // s) * (W // s), cmid)

    # ---- conv3 (1x1) + BN3 ----
    y3 = jnp.dot(y2.astype(jnp.bfloat16), w3_ref[...],
                 preferred_element_type=jnp.float32) + b3_ref[...]

    # ---- shortcut (1x1 strided conv + BN, or identity) + residual + ReLU ----
    if stride > 1:
        s = stride
        cin = xm.shape[-1]
        xs = xm.reshape(th // s, s, W // s, s, cin)[:, 0:1, :, 0:1, :]
        xs = xs.reshape((th // s) * (W // s), cin)
    else:
        xs = xm
    if conv_shortcut:
        sc = jnp.dot(xs, ws_ref[...], preferred_element_type=jnp.float32) + bs_ref[...]
    else:
        sc = xs.astype(jnp.float32)                             # identity shortcut

    o_ref[...] = jnp.maximum(y3 + sc, 0.0).astype(o_ref.dtype)


def _pick_tile_rows(H, W, stride, width, cmid, cout, cin,
                    max_rows=2048, budget_bytes=8 << 20):
    """Largest divisor of H (multiple of stride) whose tile fits a VMEM budget."""
    for th in range(H, 0, -1):
        if H % th or th % stride:
            continue
        rows = th * W
        tp = (th // stride) * (W // stride)
        if th != H and (rows % 8 or tp % 8):     # keep (8,128)-friendly blocks
            continue
        est = (rows * (cin + 3 * width) * 2      # x tile + packed conv2 operand (bf16)
               + rows * cmid * 8                 # acc + y2 (f32)
               + tp * cout * 8                   # y3 + shortcut (f32)
               + (th + 2) * W * width * 2)       # y1 VMEM scratch (bf16)
        if rows <= max_rows and est <= budget_bytes:
            return th
    return H                                     # whole image: always a legal block


def _fused_bottleneck(x_flat, w1, b1, w2p, b2, w3, b3, ws, bs, *,
                      H, W, th, stride, conv_shortcut):
    N, HW, cin = x_flat.shape
    width = w1.shape[1]
    cmid = w2p.shape[2]
    cout = w3.shape[1]
    n_h = H // th
    tp = (th // stride) * (W // stride)

    kernel = functools.partial(_bottleneck_kernel, H=H, W=W, th=th,
                               stride=stride, conv_shortcut=conv_shortcut)
    # TODO(synk): constant weight/bias blocks could use pipeline_mode=pl.Buffered(1)
    # to drop their second VMEM buffer (matters for large Cout on v7x).
    return pl.pallas_call(
        kernel,
        out_shape=jax.ShapeDtypeStruct((N, n_h * tp, cout), jnp.bfloat16),
        grid=(N, n_h),
        in_specs=[
            pl.BlockSpec((None, HW, cin), lambda n, h: (n, 0, 0)),    # whole image
            pl.BlockSpec((cin, width), lambda n, h: (0, 0)),          # w1 (BN folded)
            pl.BlockSpec((1, width), lambda n, h: (0, 0)),            # b1
            pl.BlockSpec((3, 3 * width, cmid), lambda n, h: (0, 0, 0)),  # w2 K-packed
            pl.BlockSpec((1, cmid), lambda n, h: (0, 0)),             # b2
            pl.BlockSpec((cmid, cout), lambda n, h: (0, 0)),          # w3
            pl.BlockSpec((1, cout), lambda n, h: (0, 0)),             # b3
            pl.BlockSpec((cin, cout), lambda n, h: (0, 0)),           # shortcut w
            pl.BlockSpec((1, cout), lambda n, h: (0, 0)),             # shortcut b
        ],
        out_specs=pl.BlockSpec((None, tp, cout), lambda n, h: (n, h, 0)),
        scratch_shapes=[pltpu.VMEM((th + 2, W, width), jnp.bfloat16)],
        compiler_params=pltpu.CompilerParams(
            dimension_semantics=("parallel", "parallel"),
            vmem_limit_bytes=_VMEM_LIMIT),
    )(x_flat, w1, b1, w2p, b2, w3, b3, ws, bs)


# ----------------------------------------------------------------------------
# Parameter init (deterministic, synthetic) + BN folding
# ----------------------------------------------------------------------------
def fold_bn(gamma, beta, mean, var, eps=1e-5):
    scale = gamma / jnp.sqrt(var + eps)                 # (C,)
    bias = (beta - mean * scale).reshape(1, -1)         # (1, C)
    return scale, bias


def init_params(key, in_channels, out_channels):
    width = out_channels
    c4 = 4 * out_channels          # expansion = 4

    def bn_params(k, c):
        k1, k2, k3, k4 = jax.random.split(k, 4)
        gamma = jax.random.uniform(k1, (c,), minval=0.5, maxval=1.5)
        beta = 0.1 * jax.random.normal(k2, (c,))
        mean = 0.1 * jax.random.normal(k3, (c,))
        var = jax.random.uniform(k4, (c,), minval=0.5, maxval=1.5)
        return fold_bn(gamma, beta, mean, var)

    ks = jax.random.split(key, 8)
    p = {}
    p["w1"] = 0.3 * jax.random.normal(ks[0], (in_channels, width))       # 1x1
    p["s1"], p["b1"] = bn_params(ks[1], width)
    p["w2"] = 0.3 * jax.random.normal(ks[2], (3, 3, width, width))       # 3x3 HWIO
    p["s2"], p["b2"] = bn_params(ks[3], width)
    p["w3"] = 0.3 * jax.random.normal(ks[4], (width, c4))                # 1x1
    p["s3"], p["b3"] = bn_params(ks[5], c4)
    p["ws"] = 0.3 * jax.random.normal(ks[6], (in_channels, c4))          # shortcut 1x1
    p["ss"], p["bs"] = bn_params(ks[7], c4)
    return p


# ----------------------------------------------------------------------------
# Full Bottleneck forward (one fused pallas_call)
# ----------------------------------------------------------------------------
def bottleneck_forward(x_nchw, params, stride=1, tile_rows=None):
    N, Cin, H, W = x_nchw.shape
    assert H % stride == 0 and W % stride == 0
    width = params["w1"].shape[1]
    cmid = params["w2"].shape[-1]
    cout = params["w3"].shape[1]
    conv_shortcut = (stride != 1) or (Cin != cout)

    x = jnp.transpose(x_nchw, (0, 2, 3, 1)).astype(jnp.bfloat16)   # NHWC bf16
    x_flat = x.reshape(N, H * W, Cin)

    # Fold BN scales into conv weights at trace time; kernels only add the bias.
    w1 = (params["w1"] * params["s1"]).astype(jnp.bfloat16)
    w2p = (params["w2"] * params["s2"]).reshape(3, 3 * width, cmid).astype(jnp.bfloat16)
    w3 = (params["w3"] * params["s3"]).astype(jnp.bfloat16)
    b1 = params["b1"].astype(jnp.float32)
    b2 = params["b2"].astype(jnp.float32)
    b3 = params["b3"].astype(jnp.float32)
    if conv_shortcut:
        ws = (params["ws"] * params["ss"]).astype(jnp.bfloat16)
        bs = params["bs"].astype(jnp.float32)
    else:
        ws = jnp.zeros((Cin, cout), jnp.bfloat16)       # unused dummies
        bs = jnp.zeros((1, cout), jnp.float32)

    th = tile_rows if tile_rows is not None else _pick_tile_rows(
        H, W, stride, width, cmid, cout, Cin)
    assert H % th == 0 and th % stride == 0
    assert th == H or ((th * W) % 8 == 0 and ((th // stride) * (W // stride)) % 8 == 0)

    out2d = _fused_bottleneck(x_flat, w1, b1, w2p, b2, w3, b3, ws, bs,
                              H=H, W=W, th=th, stride=stride,
                              conv_shortcut=conv_shortcut)          # (N, Hs*Ws, cout) bf16
    Hs, Ws = H // stride, W // stride
    out = out2d.reshape(N, Hs, Ws, cout).astype(jnp.float32)
    return jnp.transpose(out, (0, 3, 1, 2))             # back to NCHW


# ----------------------------------------------------------------------------
# Pure-JAX (f32) reference for correctness checking
# ----------------------------------------------------------------------------
def bottleneck_reference(x_nchw, params, stride=1):
    x = jnp.transpose(x_nchw, (0, 2, 3, 1)).astype(jnp.float32)     # NHWC
    cout = params["w3"].shape[1]

    y = jnp.einsum("nhwc,cd->nhwd", x, params["w1"] * params["s1"]) + params["b1"][0]
    y = jax.nn.relu(y)
    y = lax.conv_general_dilated(y, params["w2"] * params["s2"], (1, 1), "SAME",
                                 dimension_numbers=("NHWC", "HWIO", "NHWC"))
    y = jax.nn.relu(y + params["b2"][0])
    y = jnp.einsum("nhwc,cd->nhwd", y, params["w3"] * params["s3"]) + params["b3"][0]
    if stride >= 2:
        N, H, W, C = y.shape
        y = y.reshape(N, H // stride, stride, W // stride, stride, C).mean(axis=(2, 4))
    if stride != 1 or x.shape[-1] != cout:
        xs = x[:, ::stride, ::stride, :]
        sc = jnp.einsum("nhwc,cd->nhwd", xs,
                        params["ws"] * params["ss"]) + params["bs"][0]
    else:
        sc = x
    out = jax.nn.relu(y + sc)
    return jnp.transpose(out, (0, 3, 1, 2))


if __name__ == "__main__":
    key = jax.random.PRNGKey(0)
    kx, kp = jax.random.split(key)

    in_channels, out_channels, stride = 4, 4, 1
    x = jax.random.normal(kx, (2, in_channels, 16, 16), dtype=jnp.float32)
    params = init_params(kp, in_channels, out_channels)

    fwd = jax.jit(functools.partial(bottleneck_forward, stride=stride))
    out = jax.block_until_ready(fwd(x, params))

    # Spatially tiled variant (2 row-tiles per image) exercising the halo path.
    fwd_tiled = jax.jit(functools.partial(bottleneck_forward, stride=stride,
                                          tile_rows=8))
    out_tiled = jax.block_until_ready(fwd_tiled(x, params))

    ref = bottleneck_reference(x, params, stride=stride)

    assert out.shape == (2, 4 * out_channels, 16, 16), out.shape
    assert bool(jnp.all(jnp.isfinite(out)))
    assert bool(jnp.all(out >= 0.0))                     # final ReLU
    tol = 5e-2 * (1.0 + float(jnp.max(jnp.abs(ref))))    # bf16-matmul tolerance
    err = float(jnp.max(jnp.abs(out - ref)))
    err_tiled = float(jnp.max(jnp.abs(out_tiled - ref)))
    assert err < tol and err_tiled < tol, (err, err_tiled, tol)
    print("KERNEL_OK")
</pallas_src>

<mosaic_0001>
module attributes {stable_mosaic.version = 11 : i64} {
  func.func @_bottleneck_kernel(%arg0: i32, %arg1: i32, %arg2: memref<1x256x4xbf16, #tpu.memory_space<vmem>>, %arg3: memref<4x4xbf16, #tpu.memory_space<vmem>>, %arg4: memref<1x4xf32, #tpu.memory_space<vmem>>, %arg5: memref<3x12x4xbf16, #tpu.memory_space<vmem>>, %arg6: memref<1x4xf32, #tpu.memory_space<vmem>>, %arg7: memref<4x16xbf16, #tpu.memory_space<vmem>>, %arg8: memref<1x16xf32, #tpu.memory_space<vmem>>, %arg9: memref<4x16xbf16, #tpu.memory_space<vmem>>, %arg10: memref<1x16xf32, #tpu.memory_space<vmem>>, %arg11: memref<1x256x16xbf16, #tpu.memory_space<vmem>>, %arg12: memref<18x16x4xbf16, #tpu.memory_space<vmem>>) attributes {dimension_semantics = [#tpu.dimension_semantics<parallel>, #tpu.dimension_semantics<parallel>], iteration_bounds = array<i64: 2, 1>, scalar_prefetch = 0 : i64, scratch_operands = 1 : i64, tpu.core_type = #tpu.core_type<tc>, window_params = [{transform_indices = @transform_0, window_bounds = array<i64: 1, 256, 4>}, {pipeline_mode = #tpu.pipeline_mode<synchronous>, transform_indices = @transform_1, window_bounds = array<i64: 4, 4>}, {pipeline_mode = #tpu.pipeline_mode<synchronous>, transform_indices = @transform_2, window_bounds = array<i64: 1, 4>}, {pipeline_mode = #tpu.pipeline_mode<synchronous>, transform_indices = @transform_3, window_bounds = array<i64: 3, 12, 4>}, {pipeline_mode = #tpu.pipeline_mode<synchronous>, transform_indices = @transform_4, window_bounds = array<i64: 1, 4>}, {pipeline_mode = #tpu.pipeline_mode<synchronous>, transform_indices = @transform_5, window_bounds = array<i64: 4, 16>}, {pipeline_mode = #tpu.pipeline_mode<synchronous>, transform_indices = @transform_6, window_bounds = array<i64: 1, 16>}, {pipeline_mode = #tpu.pipeline_mode<synchronous>, transform_indices = @transform_7, window_bounds = array<i64: 4, 16>}, {pipeline_mode = #tpu.pipeline_mode<synchronous>, transform_indices = @transform_8, window_bounds = array<i64: 1, 16>}, {transform_indices = @transform_9, window_bounds = array<i64: 1, 256, 16>}]} {
    %c16_i32 = arith.constant 16 : i32
    %0 = arith.muli %arg1, %c16_i32 : i32
    %c16_i32_0 = arith.constant 16 : i32
    %1 = arith.muli %0, %c16_i32_0 : i32
    %2 = tpu.assume_multiple %1, 8 : i32
    %c0 = arith.constant 0 : index
    %3 = arith.index_cast %2 : i32 to index
    %c0_1 = arith.constant 0 : index
    %4 = vector.load %arg2[%c0, %3, %c0_1] : memref<1x256x4xbf16, #tpu.memory_space<vmem>>, vector<1x256x4xbf16>
    %5 = vector.shape_cast %4 : vector<1x256x4xbf16> to vector<256x4xbf16>
    %c0_2 = arith.constant 0 : index
    %c0_3 = arith.constant 0 : index
    %6 = vector.load %arg3[%c0_2, %c0_3] : memref<4x4xbf16, #tpu.memory_space<vmem>>, vector<4x4xbf16>
    %cst = arith.constant dense<0.000000e+00> : vector<256x4xf32>
    %7 = tpu.matmul %5, %6, %cst {dimension_numbers = #tpu.dot_dimension_numbers<[1], [0], [0], [1], [0, 0, 1, 1], [], []>} : vector<256x4xbf16>, vector<4x4xbf16>, vector<256x4xf32> -> vector<256x4xf32>
    %c0_4 = arith.constant 0 : index
    %c0_5 = arith.constant 0 : index
    %8 = vector.load %arg4[%c0_4, %c0_5] : memref<1x4xf32, #tpu.memory_space<vmem>>, vector<1x4xf32>
    %9 = vector.broadcast %8 : vector<1x4xf32> to vector<256x4xf32>
    %10 = arith.addf %7, %9 : vector<256x4xf32>
    %cst_6 = arith.constant 0.000000e+00 : f32
    %11 = vector.broadcast %cst_6 : f32 to vector<256x4xf32>
    %12 = arith.maximumf %10, %11 : vector<256x4xf32>
    %13 = arith.truncf %12 : vector<256x4xf32> to vector<256x4xbf16>
    %14 = vector.shape_cast %13 : vector<256x4xbf16> to vector<16x16x4xbf16>
    %c1 = arith.constant 1 : index
    %c0_7 = arith.constant 0 : index
    %c0_8 = arith.constant 0 : index
    %15 = vector.load %arg12[%c1, %c0_7, %c0_8] : memref<18x16x4xbf16, #tpu.memory_space<vmem>>, vector<16x16x4xbf16>
    tpu.vector_store %arg12[%c1, %c0_7, %c0_8], %14 {strides = array<i32>} : memref<18x16x4xbf16, #tpu.memory_space<vmem>>, vector<16x16x4xbf16>,
    %c1_i32 = arith.constant 1 : i32
    %16 = arith.subi %0, %c1_i32 : i32
    %c0_i32 = arith.constant 0 : i32
    %17 = arith.cmpi sge, %16, %c0_i32 : i32
    %c0_i32_9 = arith.constant 0 : i32
    %18 = arith.maxsi %16, %c0_i32_9 : i32
    %c16_i32_10 = arith.constant 16 : i32
    %19 = arith.muli %18, %c16_i32_10 : i32
    %20 = tpu.assume_multiple %19, 8 : i32
    %c0_11 = arith.constant 0 : index
    %21 = arith.index_cast %20 : i32 to index
    %c0_12 = arith.constant 0 : index
    %22 = vector.load %arg2[%c0_11, %21, %c0_12] : memref<1x256x4xbf16, #tpu.memory_space<vmem>>, vector<1x16x4xbf16>
    %23 = vector.shape_cast %22 : vector<1x16x4xbf16> to vector<16x4xbf16>
    %c0_13 = arith.constant 0 : index
    %c0_14 = arith.constant 0 : index
    %24 = vector.load %arg3[%c0_13, %c0_14] : memref<4x4xbf16, #tpu.memory_space<vmem>>, vector<4x4xbf16>
    %cst_15 = arith.constant dense<0.000000e+00> : vector<16x4xf32>
    %25 = tpu.matmul %23, %24, %cst_15 {dimension_numbers = #tpu.dot_dimension_numbers<[1], [0], [0], [1], [0, 0, 1, 1], [], []>} : vector<16x4xbf16>, vector<4x4xbf16>, vector<16x4xf32> -> vector<16x4xf32>
    %c0_16 = arith.constant 0 : index
    %c0_17 = arith.constant 0 : index
    %26 = vector.load %arg4[%c0_16, %c0_17] : memref<1x4xf32, #tpu.memory_space<vmem>>, vector<1x4xf32>
    %27 = vector.broadcast %26 : vector<1x4xf32> to vector<16x4xf32>
    %28 = arith.addf %25, %27 : vector<16x4xf32>
    %cst_18 = arith.constant 0.000000e+00 : f32
    %29 = vector.broadcast %cst_18 : f32 to vector<16x4xf32>
    %30 = arith.maximumf %28, %29 : vector<16x4xf32>
    %cst_19 = arith.constant 0.000000e+00 : f32
    %31 = vector.broadcast %cst_19 : f32 to vector<16x4xf32>
    %32 = arith.select %17, %30, %31 : vector<16x4xf32>
    %33 = arith.truncf %32 : vector<16x4xf32> to vector<16x4xbf16>
    %34 = vector.shape_cast %33 : vector<16x4xbf16> to vector<1x16x4xbf16>
    %c0_20 = arith.constant 0 : index
    %c0_21 = arith.constant 0 : index
    %c0_22 = arith.constant 0 : index
    %35 = vector.load %arg12[%c0_20, %c0_21, %c0_22] : memref<18x16x4xbf16, #tpu.memory_space<vmem>>, vector<1x16x4xbf16>
    tpu.vector_store %arg12[%c0_20, %c0_21, %c0_22], %34 {strides = array<i32>} : memref<18x16x4xbf16, #tpu.memory_space<vmem>>, vector<1x16x4xbf16>,
    %c16_i32_23 = arith.constant 16 : i32
    %36 = arith.addi %0, %c16_i32_23 : i32
    %c16_i32_24 = arith.constant 16 : i32
    %37 = arith.cmpi slt, %36, %c16_i32_24 : i32
    %c15_i32 = arith.constant 15 : i32
    %38 = arith.minsi %36, %c15_i32 : i32
    %c16_i32_25 = arith.constant 16 : i32
    %39 = arith.muli %38, %c16_i32_25 : i32
    %40 = tpu.assume_multiple %39, 8 : i32
    %c0_26 = arith.constant 0 : index
    %41 = arith.index_cast %40 : i32 to index
    %c0_27 = arith.constant 0 : index
    %42 = vector.load %arg2[%c0_26, %41, %c0_27] : memref<1x256x4xbf16, #tpu.memory_space<vmem>>, vector<1x16x4xbf16>
    %43 = vector.shape_cast %42 : vector<1x16x4xbf16> to vector<16x4xbf16>
    %c0_28 = arith.constant 0 : index
    %c0_29 = arith.constant 0 : index
    %44 = vector.load %arg3[%c0_28, %c0_29] : memref<4x4xbf16, #tpu.memory_space<vmem>>, vector<4x4xbf16>
    %cst_30 = arith.constant dense<0.000000e+00> : vector<16x4xf32>
    %45 = tpu.matmul %43, %44, %cst_30 {dimension_numbers = #tpu.dot_dimension_numbers<[1], [0], [0], [1], [0, 0, 1, 1], [], []>} : vector<16x4xbf16>, vector<4x4xbf16>, vector<16x4xf32> -> vector<16x4xf32>
    %c0_31 = arith.constant 0 : index
    %c0_32 = arith.constant 0 : index
    %46 = vector.load %arg4[%c0_31, %c0_32] : memref<1x4xf32, #tpu.memory_space<vmem>>, vector<1x4xf32>
    %47 = vector.broadcast %46 : vector<1x4xf32> to vector<16x4xf32>
    %48 = arith.addf %45, %47 : vector<16x4xf32>
    %cst_33 = arith.constant 0.000000e+00 : f32
    %49 = vector.broadcast %cst_33 : f32 to vector<16x4xf32>
    %50 = arith.maximumf %48, %49 : vector<16x4xf32>
    %cst_34 = arith.constant 0.000000e+00 : f32
    %51 = vector.broadcast %cst_34 : f32 to vector<16x4xf32>
    %52 = arith.select %37, %50, %51 : vector<16x4xf32>
    %53 = arith.truncf %52 : vector<16x4xf32> to vector<16x4xbf16>
    %54 = vector.shape_cast %53 : vector<16x4xbf16> to vector<1x16x4xbf16>
    %c17 = arith.constant 17 : index
    %c0_35 = arith.constant 0 : index
    %c0_36 = arith.constant 0 : index
    %55 = vector.load %arg12[%c17, %c0_35, %c0_36] : memref<18x16x4xbf16, #tpu.memory_space<vmem>>, vector<1x16x4xbf16>
    tpu.vector_store %arg12[%c17, %c0_35, %c0_36], %54 {strides = array<i32>} : memref<18x16x4xbf16, #tpu.memory_space<vmem>>, vector<1x16x4xbf16>,
    %cst_37 = arith.constant 0.000000e+00 : bf16
    %56 = vector.broadcast %cst_37 : bf16 to vector<16x1x4xbf16>
    %cst_38 = arith.constant 0.000000e+00 : f32
    %57 = vector.broadcast %cst_38 : f32 to vector<256x4xf32>
    %c0_39 = arith.constant 0 : index
    %c0_40 = arith.constant 0 : index
    %c0_41 = arith.constant 0 : index
    %58 = vector.load %arg12[%c0_39, %c0_40, %c0_41] : memref<18x16x4xbf16, #tpu.memory_space<vmem>>, vector<16x16x4xbf16>
    %59 = vector.extract_strided_slice %58 {offsets = [0, 0, 0], sizes = [16, 15, 4], strides = [1, 1, 1]} : vector<16x16x4xbf16> to vector<16x15x4xbf16>
    %60 = tpu.concatenate %56, %59 in 1 : vector<16x1x4xbf16>, vector<16x15x4xbf16> -> vector<16x16x4xbf16>
    %61 = vector.extract_strided_slice %58 {offsets = [0, 1, 0], sizes = [16, 15, 4], strides = [1, 1, 1]} : vector<16x16x4xbf16> to vector<16x15x4xbf16>
    %62 = tpu.concatenate %61, %56 in 1 : vector<16x15x4xbf16>, vector<16x1x4xbf16> -> vector<16x16x4xbf16>
    %63 = vector.shape_cast %60 : vector<16x16x4xbf16> to vector<256x4xbf16>
    %64 = vector.shape_cast %58 : vector<16x16x4xbf16> to vector<256x4xbf16>
    %65 = vector.shape_cast %62 : vector<16x16x4xbf16> to vector<256x4xbf16>
    %66 = tpu.concatenate %63, %64, %65 in 1 : vector<256x4xbf16>, vector<256x4xbf16>, vector<256x4xbf16> -> vector<256x12xbf16>
    %c0_42 = arith.constant 0 : index
    %c0_43 = arith.constant 0 : index
    %c0_44 = arith.constant 0 : index
    %67 = vector.load %arg5[%c0_42, %c0_43, %c0_44] : memref<3x12x4xbf16, #tpu.memory_space<vmem>>, vector<1x12x4xbf16>
    %68 = vector.shape_cast %67 : vector<1x12x4xbf16> to vector<12x4xbf16>
    %cst_45 = arith.constant dense<0.000000e+00> : vector<256x4xf32>
    %69 = tpu.matmul %66, %68, %cst_45 {dimension_numbers = #tpu.dot_dimension_numbers<[1], [0], [0], [1], [0, 0, 1, 1], [], []>} : vector<256x12xbf16>, vector<12x4xbf16>, vector<256x4xf32> -> vector<256x4xf32>
    %70 = arith.addf %57, %69 : vector<256x4xf32>
    %c1_46 = arith.constant 1 : index
    %c0_47 = arith.constant 0 : index
    %c0_48 = arith.constant 0 : index
    %71 = vector.load %arg12[%c1_46, %c0_47, %c0_48] : memref<18x16x4xbf16, #tpu.memory_space<vmem>>, vector<16x16x4xbf16>
    %72 = vector.extract_strided_slice %71 {offsets = [0, 0, 0], sizes = [16, 15, 4], strides = [1, 1, 1]} : vector<16x16x4xbf16> to vector<16x15x4xbf16>
    %73 = tpu.concatenate %56, %72 in 1 : vector<16x1x4xbf16>, vector<16x15x4xbf16> -> vector<16x16x4xbf16>
    %74 = vector.extract_strided_slice %71 {offsets = [0, 1, 0], sizes = [16, 15, 4], strides = [1, 1, 1]} : vector<16x16x4xbf16> to vector<16x15x4xbf16>
    %75 = tpu.concatenate %74, %56 in 1 : vector<16x15x4xbf16>, vector<16x1x4xbf16> -> vector<16x16x4xbf16>
    %76 = vector.shape_cast %73 : vector<16x16x4xbf16> to vector<256x4xbf16>
    %77 = vector.shape_cast %71 : vector<16x16x4xbf16> to vector<256x4xbf16>
    %78 = vector.shape_cast %75 : vector<16x16x4xbf16> to vector<256x4xbf16>
    %79 = tpu.concatenate %76, %77, %78 in 1 : vector<256x4xbf16>, vector<256x4xbf16>, vector<256x4xbf16> -> vector<256x12xbf16>
    %c1_49 = arith.constant 1 : index
    %c0_50 = arith.constant 0 : index
    %c0_51 = arith.constant 0 : index
    %80 = vector.load %arg5[%c1_49, %c0_50, %c0_51] : memref<3x12x4xbf16, #tpu.memory_space<vmem>>, vector<1x12x4xbf16>
    %81 = vector.shape_cast %80 : vector<1x12x4xbf16> to vector<12x4xbf16>
    %cst_52 = arith.constant dense<0.000000e+00> : vector<256x4xf32>
    %82 = tpu.matmul %79, %81, %cst_52 {dimension_numbers = #tpu.dot_dimension_numbers<[1], [0], [0], [1], [0, 0, 1, 1], [], []>} : vector<256x12xbf16>, vector<12x4xbf16>, vector<256x4xf32> -> vector<256x4xf32>
    %83 = arith.addf %70, %82 : vector<256x4xf32>
    %c2 = arith.constant 2 : index
    %c0_53 = arith.constant 0 : index
    %c0_54 = arith.constant 0 : index
    %84 = vector.load %arg12[%c2, %c0_53, %c0_54] : memref<18x16x4xbf16, #tpu.memory_space<vmem>>, vector<16x16x4xbf16>
    %85 = vector.extract_strided_slice %84 {offsets = [0, 0, 0], sizes = [16, 15, 4], strides = [1, 1, 1]} : vector<16x16x4xbf16> to vector<16x15x4xbf16>
    %86 = tpu.concatenate %56, %85 in 1 : vector<16x1x4xbf16>, vector<16x15x4xbf16> -> vector<16x16x4xbf16>
    %87 = vector.extract_strided_slice %84 {offsets = [0, 1, 0], sizes = [16, 15, 4], strides = [1, 1, 1]} : vector<16x16x4xbf16> to vector<16x15x4xbf16>
    %88 = tpu.concatenate %87, %56 in 1 : vector<16x15x4xbf16>, vector<16x1x4xbf16> -> vector<16x16x4xbf16>
    %89 = vector.shape_cast %86 : vector<16x16x4xbf16> to vector<256x4xbf16>
    %90 = vector.shape_cast %84 : vector<16x16x4xbf16> to vector<256x4xbf16>
    %91 = vector.shape_cast %88 : vector<16x16x4xbf16> to vector<256x4xbf16>
    %92 = tpu.concatenate %89, %90, %91 in 1 : vector<256x4xbf16>, vector<256x4xbf16>, vector<256x4xbf16> -> vector<256x12xbf16>
    %c2_55 = arith.constant 2 : index
    %c0_56 = arith.constant 0 : index
    %c0_57 = arith.constant 0 : index
    %93 = vector.load %arg5[%c2_55, %c0_56, %c0_57] : memref<3x12x4xbf16, #tpu.memory_space<vmem>>, vector<1x12x4xbf16>
    %94 = vector.shape_cast %93 : vector<1x12x4xbf16> to vector<12x4xbf16>
    %cst_58 = arith.constant dense<0.000000e+00> : vector<256x4xf32>
    %95 = tpu.matmul %92, %94, %cst_58 {dimension_numbers = #tpu.dot_dimension_numbers<[1], [0], [0], [1], [0, 0, 1, 1], [], []>} : vector<256x12xbf16>, vector<12x4xbf16>, vector<256x4xf32> -> vector<256x4xf32>
    %96 = arith.addf %83, %95 : vector<256x4xf32>
    %c0_59 = arith.constant 0 : index
    %c0_60 = arith.constant 0 : index
    %97 = vector.load %arg6[%c0_59, %c0_60] : memref<1x4xf32, #tpu.memory_space<vmem>>, vector<1x4xf32>
    %98 = vector.broadcast %97 : vector<1x4xf32> to vector<256x4xf32>
    %99 = arith.addf %96, %98 : vector<256x4xf32>
    %cst_61 = arith.constant 0.000000e+00 : f32
    %100 = vector.broadcast %cst_61 : f32 to vector<256x4xf32>
    %101 = arith.maximumf %99, %100 : vector<256x4xf32>
    %102 = arith.truncf %101 : vector<256x4xf32> to vector<256x4xbf16>
    %c0_62 = arith.constant 0 : index
    %c0_63 = arith.constant 0 : index
    %103 = vector.load %arg7[%c0_62, %c0_63] : memref<4x16xbf16, #tpu.memory_space<vmem>>, vector<4x16xbf16>
    %cst_64 = arith.constant dense<0.000000e+00> : vector<256x16xf32>
    %104 = tpu.matmul %102, %103, %cst_64 {dimension_numbers = #tpu.dot_dimension_numbers<[1], [0], [0], [1], [0, 0, 1, 1], [], []>} : vector<256x4xbf16>, vector<4x16xbf16>, vector<256x16xf32> -> vector<256x16xf32>
    %c0_65 = arith.constant 0 : index
    %c0_66 = arith.constant 0 : index
    %105 = vector.load %arg8[%c0_65, %c0_66] : memref<1x16xf32, #tpu.memory_space<vmem>>, vector<1x16xf32>
    %106 = vector.broadcast %105 : vector<1x16xf32> to vector<256x16xf32>
    %107 = arith.addf %104, %106 : vector<256x16xf32>
    %c0_67 = arith.constant 0 : index
    %c0_68 = arith.constant 0 : index
    %108 = vector.load %arg9[%c0_67, %c0_68] : memref<4x16xbf16, #tpu.memory_space<vmem>>, vector<4x16xbf16>
    %cst_69 = arith.constant dense<0.000000e+00> : vector<256x16xf32>
    %109 = tpu.matmul %5, %108, %cst_69 {dimension_numbers = #tpu.dot_dimension_numbers<[1], [0], [0], [1], [0, 0, 1, 1], [], []>} : vector<256x4xbf16>, vector<4x16xbf16>, vector<256x16xf32> -> vector<256x16xf32>
    %c0_70 = arith.constant 0 : index
    %c0_71 = arith.constant 0 : index
    %110 = vector.load %arg10[%c0_70, %c0_71] : memref<1x16xf32, #tpu.memory_space<vmem>>, vector<1x16xf32>
    %111 = vector.broadcast %110 : vector<1x16xf32> to vector<256x16xf32>
    %112 = arith.addf %109, %111 : vector<256x16xf32>
    %113 = arith.addf %107, %112 : vector<256x16xf32>
    %cst_72 = arith.constant 0.000000e+00 : f32
    %114 = vector.broadcast %cst_72 : f32 to vector<256x16xf32>
    %115 = arith.maximumf %113, %114 : vector<256x16xf32>
    %116 = arith.truncf %115 : vector<256x16xf32> to vector<256x16xbf16>
    %c0_73 = arith.constant 0 : index
    %c0_74 = arith.constant 0 : index
    %c0_75 = arith.constant 0 : index
    %117 = vector.load %arg11[%c0_73, %c0_74, %c0_75] : memref<1x256x16xbf16, #tpu.memory_space<vmem>>, vector<1x256x16xbf16>
    %118 = vector.shape_cast %117 : vector<1x256x16xbf16> to vector<256x16xbf16>
    %119 = vector.shape_cast %116 : vector<256x16xbf16> to vector<1x256x16xbf16>
    tpu.vector_store %arg11[%c0_73, %c0_74, %c0_75], %119 {strides = array<i32>} : memref<1x256x16xbf16, #tpu.memory_space<vmem>>, vector<1x256x16xbf16>,
    return
  }
  func.func @transform_0(%arg0: i32, %arg1: i32) -> (i32, i32, i32) {
    %c0_i32 = arith.constant 0 : i32
    %c0_i32_0 = arith.constant 0 : i32
    %c0_i32_1 = arith.constant 0 : i32
    return %arg0, %c0_i32, %c0_i32_0 : i32, i32, i32
  }
  func.func @transform_1(%arg0: i32, %arg1: i32) -> (i32, i32) {
    %c0_i32 = arith.constant 0 : i32
    %c0_i32_0 = arith.constant 0 : i32
    %c0_i32_1 = arith.constant 0 : i32
    return %c0_i32, %c0_i32_0 : i32, i32
  }
  func.func @transform_2(%arg0: i32, %arg1: i32) -> (i32, i32) {
    %c0_i32 = arith.constant 0 : i32
    %c0_i32_0 = arith.constant 0 : i32
    %c0_i32_1 = arith.constant 0 : i32
    return %c0_i32, %c0_i32_0 : i32, i32
  }
  func.func @transform_3(%arg0: i32, %arg1: i32) -> (i32, i32, i32) {
    %c0_i32 = arith.constant 0 : i32
    %c0_i32_0 = arith.constant 0 : i32
    %c0_i32_1 = arith.constant 0 : i32
    %c0_i32_2 = arith.constant 0 : i32
    return %c0_i32, %c0_i32_0, %c0_i32_1 : i32, i32, i32
  }
  func.func @transform_4(%arg0: i32, %arg1: i32) -> (i32, i32) {
    %c0_i32 = arith.constant 0 : i32
    %c0_i32_0 = arith.constant 0 : i32
    %c0_i32_1 = arith.constant 0 : i32
    return %c0_i32, %c0_i32_0 : i32, i32
  }
  func.func @transform_5(%arg0: i32, %arg1: i32) -> (i32, i32) {
    %c0_i32 = arith.constant 0 : i32
    %c0_i32_0 = arith.constant 0 : i32
    %c0_i32_1 = arith.constant 0 : i32
    return %c0_i32, %c0_i32_0 : i32, i32
  }
  func.func @transform_6(%arg0: i32, %arg1: i32) -> (i32, i32) {
    %c0_i32 = arith.constant 0 : i32
    %c0_i32_0 = arith.constant 0 : i32
    %c0_i32_1 = arith.constant 0 : i32
    return %c0_i32, %c0_i32_0 : i32, i32
  }
  func.func @transform_7(%arg0: i32, %arg1: i32) -> (i32, i32) {
    %c0_i32 = arith.constant 0 : i32
    %c0_i32_0 = arith.constant 0 : i32
    %c0_i32_1 = arith.constant 0 : i32
    return %c0_i32, %c0_i32_0 : i32, i32
  }
  func.func @transform_8(%arg0: i32, %arg1: i32) -> (i32, i32) {
    %c0_i32 = arith.constant 0 : i32
    %c0_i32_0 = arith.constant 0 : i32
    %c0_i32_1 = arith.constant 0 : i32
    return %c0_i32, %c0_i32_0 : i32, i32
  }
  func.func @transform_9(%arg0: i32, %arg1: i32) -> (i32, i32, i32) {
    %c0_i32 = arith.constant 0 : i32
    %c0_i32_0 = arith.constant 0 : i32
    return %arg0, %arg1, %c0_i32 : i32, i32, i32
  }
}

</mosaic_0001>

<llo_original>
// kernel: bottleneck_forward.1
$region0: #{bottleneck_forward.1}
  #allocation0 [shape = 'u32[]', space=smem, size = 0x4, offset = 0x4, fixed_abs, tag = 'smem constant byte address 0x4 - core index']
  #allocation1 [shape = 'u32[144,128]{1,0:T(1,128)}', space=vmem, size = 0x12000, scoped, tag = 'internal scratch']
  #allocation2 [shape = 'bf16[18,16,4]{2,1,0:T(16,128)(2,1)}', space=vmem, size = 0x12000, scoped, tag = 'scratch operand']
  %s0 = inlined_call_operand.hbm [shape: bf16[2,256,4], index: 0, kind: input, shape index: {}]
  %s1 = inlined_call_operand.hbm [shape: bf16[4,4], index: 1, kind: input, shape index: {}]
  %s2 = inlined_call_operand.hbm [shape: f32[1,4], index: 2, kind: input, shape index: {}]
  %s3 = inlined_call_operand.hbm [shape: bf16[3,12,4], index: 3, kind: input, shape index: {}]
  %s4 = inlined_call_operand.hbm [shape: f32[1,4], index: 4, kind: input, shape index: {}]
  %s5 = inlined_call_operand.hbm [shape: bf16[4,16], index: 5, kind: input, shape index: {}]
  %s6 = inlined_call_operand.hbm [shape: f32[1,16], index: 6, kind: input, shape index: {}]
  %s7 = inlined_call_operand.hbm [shape: bf16[4,16], index: 7, kind: input, shape index: {}]
  %s8 = inlined_call_operand.hbm [shape: f32[1,16], index: 8, kind: input, shape index: {}]
  %s9 = inlined_call_operand.hbm [shape: bf16[2,256,16], index: 9, kind: output, shape index: {}]
  %s10 = sld [smem:[#allocation0]]
  $region105: #{bottleneck_forward.1} parent=0
    _
  %s12 = ssub.s32 1, %s10
  %s13 = scalar_select 0, %s12, %s10
  $region1: #{bottleneck_forward.1} parent=0
    #allocation3 [shape = 'u8[131072]{0}', space=vmem, size = 0x20000, scoped, tag = 'input window, operand 0']
    #allocation4 [shape = 's32[2]{0}', space=sflag, size = 0x8, scoped, tag = 'scoped memory for bottleneck_forward.1']
    #allocation5 [shape = 's32[2]{0}', space=sflag, size = 0x8, scoped, tag = 'scoped memory for bottleneck_forward.1']
    #allocation6 [shape = 'u8[1024]{0}', space=vmem, size = 0x400, scoped, tag = 'input window, operand 1, single buffered']
    #allocation7 [shape = 's32[1]{0}', space=sflag, size = 0x4, scoped, tag = 'scoped memory for bottleneck_forward.1']
    #allocation8 [shape = 'u8[512]{0}', space=vmem, size = 0x400, scoped, tag = 'input window, operand 2, single buffered']
    #allocation9 [shape = 'u8[12288]{0}', space=vmem, size = 0x3000, scoped, tag = 'input window, operand 3, single buffered']
    #allocation10 [shape = 's32[1]{0}', space=sflag, size = 0x4, scoped, tag = 'scoped memory for bottleneck_forward.1']
    #allocation11 [shape = 'u8[512]{0}', space=vmem, size = 0x400, scoped, tag = 'input window, operand 4, single buffered']
    #allocation12 [shape = 'u8[1024]{0}', space=vmem, size = 0x400, scoped, tag = 'input window, operand 5, single buffered']
    #allocation13 [shape = 's32[1]{0}', space=sflag, size = 0x4, scoped, tag = 'scoped memory for bottleneck_forward.1']
    #allocation14 [shape = 'u8[512]{0}', space=vmem, size = 0x400, scoped, tag = 'input window, operand 6, single buffered']
    #allocation15 [shape = 'u8[1024]{0}', space=vmem, size = 0x400, scoped, tag = 'input window, operand 7, single buffered']
    #allocation16 [shape = 's32[1]{0}', space=sflag, size = 0x4, scoped, tag = 'scoped memory for bottleneck_forward.1']
    #allocation17 [shape = 'u8[512]{0}', space=vmem, size = 0x400, scoped, tag = 'input window, operand 8, single buffered']
    #allocation18 [shape = 'u8[131072]{0}', space=vmem, size = 0x20000, scoped, tag = 'output window, operand 0']
    %14 = vsyncpa [#allocation4], 0
    %s15 = scalar_lea.sflag [#allocation4], 1
    %16 = vsyncpa %s15, 0
    %17 = vsyncpa [#allocation7], 0
    %18 = vsyncpa [#allocation10], 0
    %19 = vsyncpa [#allocation13], 0
    %20 = vsyncpa [#allocation16], 0
    %21 = vsyncpa [#allocation5], 0
    %s22 = scalar_lea.sflag [#allocation5], 1
    %23 = vsyncpa %s22, 0
    loop: start=0, step=1, limit=4
    $region2: #{bottleneck_forward.1} parent=1 // loop_pre_header
      _
    $region3: #{bottleneck_forward.1} parent=1 // loop_header
      %s25 = sphi 0, %s29
      %p26 = scmp.ge.s32.totalorder %s25, 4
      %s32 = sphi 0, %s44
      %s33 = sphi 0, %s40
      %s34 = sphi 0, %s32
      %s35 = sphi 0, %s33
      %s36 = sphi 0, %s34
      %s37 = sphi 0, %s35
      %s47 = sphi 0, %s49
      %s50 = sphi 0, %s47
      %s51 = sphi 0, %s50
      %s67 = sphi 0, %s51
      %s71 = sphi 0, %s71
      %s73 = sphi 0, %s71
      %s74 = sphi 0, %s73
      %s88 = sphi 0, %s74
      %s92 = sphi 0, %s92
      %s94 = sphi 0, %s92
      %s95 = sphi 0, %s94
      %s109 = sphi 0, %s95
      %s113 = sphi 0, %s113
      %s115 = sphi 0, %s113
      %s116 = sphi 0, %s115
      %s130 = sphi 0, %s116
      %s134 = sphi 0, %s134
      %s136 = sphi 0, %s134
      %s137 = sphi 0, %s136
      %s151 = sphi 0, %s137
      %s155 = sphi 0, %s155
      %s157 = sphi 0, %s155
      %s158 = sphi 0, %s157
      %s172 = sphi 0, %s158
      %s176 = sphi 0, %s176
      %s178 = sphi 0, %s176
      %s179 = sphi 0, %s178
      %s193 = sphi 0, %s179
      %s197 = sphi 0, %s197
      %s199 = sphi 0, %s197
      %s200 = sphi 0, %s199
      %s214 = sphi 0, %s200
      %s218 = sphi 0, %s218
      %s220 = sphi 0, %s218
      %s221 = sphi 0, %s220
      %s235 = sphi 0, %s221
      %s243 = sphi 0, %s245
      %s246 = sphi 0, %s243
      %s247 = sphi 0, %s246
      %s263 = sphi 0, %s247
    $region4: #{bottleneck_forward.1} parent=1 // loop_header_branch
      %28 = sbr.rel (%p26) target = $region8
    $region5: #{bottleneck_forward.1} parent=1 // loop_body
      %s30 = ssub.s32 %s25, 1
      %s31 = ssub.s32 %s25, 2
      %s38 = sadd.s32 1, %s33
      %p39 = scmp.ge.s32.totalorder %s38, 1
      %s40 = scalar_select %p39, 0, %s38
      %s41 = sadd.s32 1, %s32
      %s42 = scalar_select %p39, %s41, %s32
      %p43 = scmp.ge.s32.totalorder %s42, 2
      %s44 = scalar_select %p43, 0, %s42
      %s45 = ssub.s32 %s32, %s44
      %p46 = scmp.eq.s32.totalorder %s45, 0
      %s48 = sadd.s32 %s47, 1
      %s49 = scalar_select %p46, %s47, %s48
      %p52 = pneg %p46
      %p53 = scmp.eq.s32.totalorder %s25, 1
      %p54 = por %p52, %p53
      %p55 = scmp.ne.s32.totalorder %s47, %s50
      %p56 = scmp.eq.s32.totalorder %s25, 0
      %p57 = por %p55, %p56
      %p58 = scmp.ne.s32.totalorder %s47, %s50
      %p59 = scmp.eq.s32.totalorder %s30, 1
      %p60 = por %p58, %p59
      %p61 = scmp.ne.s32.totalorder %s50, %s51
      %p62 = scmp.eq.s32.totalorder %s30, 0
      %p63 = por %p61, %p62
      %p64 = scmp.ne.s32.totalorder %s50, %s51
      %p65 = scmp.eq.s32.totalorder %s31, 1
      %p66 = por %p64, %p65
      %p68 = scmp.ne.s32.totalorder %s51, %s67
      %p69 = scmp.eq.s32.totalorder %s31, 0
      %p70 = por %p68, %p69
      %s72 = sadd.s32 %s71, 1
      %p75 = scmp.eq.s32.totalorder %s25, 1
      %p76 = scmp.ne.s32.totalorder %s71, %s73
      %p77 = scmp.eq.s32.totalorder %s25, 0
      %p78 = por %p76, %p77
      %p79 = scmp.ne.s32.totalorder %s71, %s73
      %p80 = scmp.eq.s32.totalorder %s30, 1
      %p81 = por %p79, %p80
      %p82 = scmp.ne.s32.totalorder %s73, %s74
      %p83 = scmp.eq.s32.totalorder %s30, 0
      %p84 = por %p82, %p83
      %p85 = scmp.ne.s32.totalorder %s73, %s74
      %p86 = scmp.eq.s32.totalorder %s31, 1
      %p87 = por %p85, %p86
      %p89 = scmp.ne.s32.totalorder %s74, %s88
      %p90 = scmp.eq.s32.totalorder %s31, 0
      %p91 = por %p89, %p90
      %s93 = sadd.s32 %s92, 1
      %p96 = scmp.eq.s32.totalorder %s25, 1
      %p97 = scmp.ne.s32.totalorder %s92, %s94
      %p98 = scmp.eq.s32.totalorder %s25, 0
      %p99 = por %p97, %p98
      %p100 = scmp.ne.s32.totalorder %s92, %s94
      %p101 = scmp.eq.s32.totalorder %s30, 1
      %p102 = por %p100, %p101
      %p103 = scmp.ne.s32.totalorder %s94, %s95
      %p104 = scmp.eq.s32.totalorder %s30, 0
      %p105 = por %p103, %p104
      %p106 = scmp.ne.s32.totalorder %s94, %s95
      %p107 = scmp.eq.s32.totalorder %s31, 1
      %p108 = por %p106, %p107
      %p110 = scmp.ne.s32.totalorder %s95, %s109
      %p111 = scmp.eq.s32.totalorder %s31, 0
      %p112 = por %p110, %p111
      %s114 = sadd.s32 %s113, 1
      %p117 = scmp.eq.s32.totalorder %s25, 1
      %p118 = scmp.ne.s32.totalorder %s113, %s115
      %p119 = scmp.eq.s32.totalorder %s25, 0
      %p120 = por %p118, %p119
      %p121 = scmp.ne.s32.totalorder %s113, %s115
      %p122 = scmp.eq.s32.totalorder %s30, 1
      %p123 = por %p121, %p122
      %p124 = scmp.ne.s32.totalorder %s115, %s116
      %p125 = scmp.eq.s32.totalorder %s30, 0
      %p126 = por %p124, %p125
      %p127 = scmp.ne.s32.totalorder %s115, %s116
      %p128 = scmp.eq.s32.totalorder %s31, 1
      %p129 = por %p127, %p128
      %p131 = scmp.ne.s32.totalorder %s116, %s130
      %p132 = scmp.eq.s32.totalorder %s31, 0
      %p133 = por %p131, %p132
      %s135 = sadd.s32 %s134, 1
      %p138 = scmp.eq.s32.totalorder %s25, 1
      %p139 = scmp.ne.s32.totalorder %s134, %s136
      %p140 = scmp.eq.s32.totalorder %s25, 0
      %p141 = por %p139, %p140
      %p142 = scmp.ne.s32.totalorder %s134, %s136
      %p143 = scmp.eq.s32.totalorder %s30, 1
      %p144 = por %p142, %p143
      %p145 = scmp.ne.s32.totalorder %s136, %s137
      %p146 = scmp.eq.s32.totalorder %s30, 0
      %p147 = por %p145, %p146
      %p148 = scmp.ne.s32.totalorder %s136, %s137
      %p149 = scmp.eq.s32.totalorder %s31, 1
      %p150 = por %p148, %p149
      %p152 = scmp.ne.s32.totalorder %s137, %s151
      %p153 = scmp.eq.s32.totalorder %s31, 0
      %p154 = por %p152, %p153
      %s156 = sadd.s32 %s155, 1
      %p159 = scmp.eq.s32.totalorder %s25, 1
      %p160 = scmp.ne.s32.totalorder %s155, %s157
      %p161 = scmp.eq.s32.totalorder %s25, 0
      %p162 = por %p160, %p161
      %p163 = scmp.ne.s32.totalorder %s155, %s157
      %p164 = scmp.eq.s32.totalorder %s30, 1
      %p165 = por %p163, %p164
      %p166 = scmp.ne.s32.totalorder %s157, %s158
      %p167 = scmp.eq.s32.totalorder %s30, 0
      %p168 = por %p166, %p167
      %p169 = scmp.ne.s32.totalorder %s157, %s158
      %p170 = scmp.eq.s32.totalorder %s31, 1
      %p171 = por %p169, %p170
      %p173 = scmp.ne.s32.totalorder %s158, %s172
      %p174 = scmp.eq.s32.totalorder %s31, 0
      %p175 = por %p173, %p174
      %s177 = sadd.s32 %s176, 1
      %p180 = scmp.eq.s32.totalorder %s25, 1
      %p181 = scmp.ne.s32.totalorder %s176, %s178
      %p182 = scmp.eq.s32.totalorder %s25, 0
      %p183 = por %p181, %p182
      %p184 = scmp.ne.s32.totalorder %s176, %s178
      %p185 = scmp.eq.s32.totalorder %s30, 1
      %p186 = por %p184, %p185
      %p187 = scmp.ne.s32.totalorder %s178, %s179
      %p188 = scmp.eq.s32.totalorder %s30, 0
      %p189 = por %p187, %p188
      %p190 = scmp.ne.s32.totalorder %s178, %s179
      %p191 = scmp.eq.s32.totalorder %s31, 1
      %p192 = por %p190, %p191
      %p194 = scmp.ne.s32.totalorder %s179, %s193
      %p195 = scmp.eq.s32.totalorder %s31, 0
      %p196 = por %p194, %p195
      %s198 = sadd.s32 %s197, 1
      %p201 = scmp.eq.s32.totalorder %s25, 1
      %p202 = scmp.ne.s32.totalorder %s197, %s199
      %p203 = scmp.eq.s32.totalorder %s25, 0
      %p204 = por %p202, %p203
      %p205 = scmp.ne.s32.totalorder %s197, %s199
      %p206 = scmp.eq.s32.totalorder %s30, 1
      %p207 = por %p205, %p206
      %p208 = scmp.ne.s32.totalorder %s199, %s200
      %p209 = scmp.eq.s32.totalorder %s30, 0
      %p210 = por %p208, %p209
      %p211 = scmp.ne.s32.totalorder %s199, %s200
      %p212 = scmp.eq.s32.totalorder %s31, 1
      %p213 = por %p211, %p212
      %p215 = scmp.ne.s32.totalorder %s200, %s214
      %p216 = scmp.eq.s32.totalorder %s31, 0
      %p217 = por %p215, %p216
      %s219 = sadd.s32 %s218, 1
      %p222 = scmp.eq.s32.totalorder %s25, 1
      %p223 = scmp.ne.s32.totalorder %s218, %s220
      %p224 = scmp.eq.s32.totalorder %s25, 0
      %p225 = por %p223, %p224
      %p226 = scmp.ne.s32.totalorder %s218, %s220
      %p227 = scmp.eq.s32.totalorder %s30, 1
      %p228 = por %p226, %p227
      %p229 = scmp.ne.s32.totalorder %s220, %s221
      %p230 = scmp.eq.s32.totalorder %s30, 0
      %p231 = por %p229, %p230
      %p232 = scmp.ne.s32.totalorder %s220, %s221
      %p233 = scmp.eq.s32.totalorder %s31, 1
      %p234 = por %p232, %p233
      %p236 = scmp.ne.s32.totalorder %s221, %s235
      %p237 = scmp.eq.s32.totalorder %s31, 0
      %p238 = por %p236, %p237
      %s239 = ssub.s32 %s32, %s44
      %s240 = ssub.s32 %s33, %s40
      %s241 = sor.u32 %s239, %s240
      %p242 = scmp.eq.s32.totalorder %s241, 0
      %s244 = sadd.s32 %s243, 1
      %s245 = scalar_select %p242, %s243, %s244
      %p248 = pneg %p242
      %p249 = scmp.eq.s32.totalorder %s25, 1
      %p250 = por %p248, %p249
      %p251 = scmp.ne.s32.totalorder %s243, %s246
      %p252 = scmp.eq.s32.totalorder %s25, 0
      %p253 = por %p251, %p252
      %p254 = scmp.ne.s32.totalorder %s243, %s246
      %p255 = scmp.eq.s32.totalorder %s30, 1
      %p256 = por %p254, %p255
      %p257 = scmp.ne.s32.totalorder %s246, %s247
      %p258 = scmp.eq.s32.totalorder %s30, 0
      %p259 = por %p257, %p258
      %p260 = scmp.ne.s32.totalorder %s246, %s247
      %p261 = scmp.eq.s32.totalorder %s31, 1
      %p262 = por %p260, %p261
      %p264 = scmp.ne.s32.totalorder %s247, %s263
      %p265 = scmp.eq.s32.totalorder %s31, 0
      %p266 = por %p264, %p265
      %p267 = scmp.le.s32.totalorder 1, %s25
      %p268 = scmp.lt.s32.totalorder %s25, 3
      %p269 = pnand %p267, %p268
      %p270 = pneg %p269
      // Predicated region
      $region9: #{bottleneck_forward.1} parent=5 // pred_check
        _
      $region10: #{bottleneck_forward.1} parent=5 // pred_check_branch
        %272 = sbr.rel (%p269) target = $region12
      $region11: #{bottleneck_forward.1} parent=5 // pred_region
        %s273 = ssub.s32 %s25, 1
        // Predicated region
        $region13: #{bottleneck_forward.1} parent=11 // pred_check
          %p274 = pneg %p84
        $region14: #{bottleneck_forward.1} parent=11 // pred_check_branch
          %276 = sbr.rel (%p274) target = $region16
        $region15: #{bottleneck_forward.1} parent=11 // pred_region
          %s278 = ssub.s32 32, 32
          %279 = vsyncadd [#allocation7], %s278
          %s281 = sshll.u32 [#allocation6], 4
          %s282 = int_to_ptr.vmem [resolvable:$true] %s281
          %284 = dma.hbm_to_vmem [thread:$0]  %s1, 32, %s282, [#allocation7]
        $region16: #{bottleneck_forward.1} parent=11 // pred_fallthru
          _
        // Predicated region
        $region17: #{bottleneck_forward.1} parent=11 // pred_check
          %p285 = pneg %p105
        $region18: #{bottleneck_forward.1} parent=11 // pred_check_branch
          %287 = sbr.rel (%p285) target = $region20
        $region19: #{bottleneck_forward.1} parent=11 // pred_region
          %s289 = ssub.s32 16, 16
          %290 = vsyncadd [#allocation7], %s289
          %s292 = sshll.u32 [#allocation8], 4
          %s293 = int_to_ptr.vmem [resolvable:$true] %s292
          %295 = dma.hbm_to_vmem [thread:$0]  %s2, 16, %s293, [#allocation7]
        $region20: #{bottleneck_forward.1} parent=11 // pred_fallthru
          _
        // Predicated region
        $region21: #{bottleneck_forward.1} parent=11 // pred_check
          %p296 = pneg %p126
        $region22: #{bottleneck_forward.1} parent=11 // pred_check_branch
          %298 = sbr.rel (%p296) target = $region24
        $region23: #{bottleneck_forward.1} parent=11 // pred_region
          %s300 = ssub.s32 384, 384
          %301 = vsyncadd [#allocation10], %s300
          %s302 = sshll.u32 [#allocation9], 4
          %s303 = int_to_ptr.vmem [resolvable:$true] %s302
          %308 = dma.hbm_to_vmem [thread:$0]  %s3, 384, %s303, [#allocation10], 64, 64, 4
        $region24: #{bottleneck_forward.1} parent=11 // pred_fallthru
          _
        // Predicated region
        $region25: #{bottleneck_forward.1} parent=11 // pred_check
          %p309 = pneg %p147
        $region26: #{bottleneck_forward.1} parent=11 // pred_check_branch
          %311 = sbr.rel (%p309) target = $region28
        $region27: #{bottleneck_forward.1} parent=11 // pred_region
          %s313 = ssub.s32 16, 16
          %314 = vsyncadd [#allocation10], %s313
          %s316 = sshll.u32 [#allocation11], 4
          %s317 = int_to_ptr.vmem [resolvable:$true] %s316
          %319 = dma.hbm_to_vmem [thread:$0]  %s4, 16, %s317, [#allocation10]
        $region28: #{bottleneck_forward.1} parent=11 // pred_fallthru
          _
        // Predicated region
        $region29: #{bottleneck_forward.1} parent=11 // pred_check
          %p320 = pneg %p168
        $region30: #{bottleneck_forward.1} parent=11 // pred_check_branch
          %322 = sbr.rel (%p320) target = $region32
        $region31: #{bottleneck_forward.1} parent=11 // pred_region
          %s324 = ssub.s32 32, 32
          %325 = vsyncadd [#allocation13], %s324
          %s327 = sshll.u32 [#allocation12], 4
          %s328 = int_to_ptr.vmem [resolvable:$true] %s327
          %330 = dma.hbm_to_vmem [thread:$0]  %s5, 32, %s328, [#allocation13]
        $region32: #{bottleneck_forward.1} parent=11 // pred_fallthru
          _
        // Predicated region
        $region33: #{bottleneck_forward.1} parent=11 // pred_check
          %p331 = pneg %p189
        $region34: #{bottleneck_forward.1} parent=11 // pred_check_branch
          %333 = sbr.rel (%p331) target = $region36
        $region35: #{bottleneck_forward.1} parent=11 // pred_region
          %s335 = ssub.s32 16, 16
          %336 = vsyncadd [#allocation13], %s335
          %s338 = sshll.u32 [#allocation14], 4
          %s339 = int_to_ptr.vmem [resolvable:$true] %s338
          %341 = dma.hbm_to_vmem [thread:$0]  %s6, 16, %s339, [#allocation13]
        $region36: #{bottleneck_forward.1} parent=11 // pred_fallthru
          _
        // Predicated region
        $region37: #{bottleneck_forward.1} parent=11 // pred_check
          %p342 = pneg %p210
        $region38: #{bottleneck_forward.1} parent=11 // pred_check_branch
          %344 = sbr.rel (%p342) target = $region40
        $region39: #{bottleneck_forward.1} parent=11 // pred_region
          %s346 = ssub.s32 32, 32
          %347 = vsyncadd [#allocation16], %s346
          %s349 = sshll.u32 [#allocation15], 4
          %s350 = int_to_ptr.vmem [resolvable:$true] %s349
          %352 = dma.hbm_to_vmem [thread:$0]  %s7, 32, %s350, [#allocation16]
        $region40: #{bottleneck_forward.1} parent=11 // pred_fallthru
          _
        // Predicated region
        $region41: #{bottleneck_forward.1} parent=11 // pred_check
          %p353 = pneg %p231
        $region42: #{bottleneck_forward.1} parent=11 // pred_check_branch
          %355 = sbr.rel (%p353) target = $region44
        $region43: #{bottleneck_forward.1} parent=11 // pred_region
          %s357 = ssub.s32 16, 16
          %358 = vsyncadd [#allocation16], %s357
          %s360 = sshll.u32 [#allocation17], 4
          %s361 = int_to_ptr.vmem [resolvable:$true] %s360
          %363 = dma.hbm_to_vmem [thread:$0]  %s8, 16, %s361, [#allocation16]
        $region44: #{bottleneck_forward.1} parent=11 // pred_fallthru
          _
      $region12: #{bottleneck_forward.1} parent=5 // pred_fallthru
        _
      %p364 = scmp.lt.s32.totalorder %s25, 2
      // Predicated region
      $region45: #{bottleneck_forward.1} parent=5 // pred_check
        %p365 = pneg %p364
      $region46: #{bottleneck_forward.1} parent=5 // pred_check_branch
        %367 = sbr.rel (%p365) target = $region48
      $region47: #{bottleneck_forward.1} parent=5 // pred_region
        // Predicated region
        $region49: #{bottleneck_forward.1} parent=47 // pred_check
          %p368 = pneg %p57
        $region50: #{bottleneck_forward.1} parent=47 // pred_check_branch
          %370 = sbr.rel (%p368) target = $region52
        $region51: #{bottleneck_forward.1} parent=47 // pred_region
          %s371 = sand.u32 %s47, 1
          %s372 = scalar_lea.sflag [#allocation4], %s371
          %s373 = sand.u32 %s47, 1
          %s374 = smul.addr %s373, 128
          %s375 = scalar_lea.vmem [#allocation3], %s374
          %s377 = ssub.s32 2048, 2048
          %378 = vsyncadd %s372, %s377
          %s379 = smul.addr %s32, 32
          %s380 = smul.addr %s379, 64
          %s381 = scalar_lea.hbm %s0, %s380
          %s382 = sshll.u32 %s375, 4
          %s383 = int_to_ptr.vmem [resolvable:$true] %s382
          %388 = dma.hbm_to_vmem [thread:$0]  %s381, 2048, %s383, %s372, 64, 64, 4
        $region52: #{bottleneck_forward.1} parent=47 // pred_fallthru
          _
      $region48: #{bottleneck_forward.1} parent=5 // pred_fallthru
        _
      %p389 = scmp.le.s32.totalorder 1, %s25
      %p390 = scmp.lt.s32.totalorder %s25, 3
      %p391 = pnand %p389, %p390
      %p392 = pneg %p391
      // Predicated region
      $region53: #{bottleneck_forward.1} parent=5 // pred_check
        _
      $region54: #{bottleneck_forward.1} parent=5 // pred_check_branch
        %394 = sbr.rel (%p391) target = $region56
      $region55: #{bottleneck_forward.1} parent=5 // pred_region
        %s395 = ssub.s32 %s25, 1
        %s396 = sand.u32 %s50, 1
        %s397 = scalar_lea.sflag [#allocation4], %s396
        %s398 = sand.u32 %s50, 1
        %s399 = smul.addr %s398, 128
        %s400 = scalar_lea.vmem [#allocation3], %s399
        // Predicated region
        $region57: #{bottleneck_forward.1} parent=55 // pred_check
          %p401 = pneg %p63
        $region58: #{bottleneck_forward.1} parent=55 // pred_check_branch
          %403 = sbr.rel (%p401) target = $region60
        $region59: #{bottleneck_forward.1} parent=55 // pred_region
          %404 = dma.done %s397, 2048
        $region60: #{bottleneck_forward.1} parent=55 // pred_fallthru
          _
        // Predicated region
        $region61: #{bottleneck_forward.1} parent=55 // pred_check
          %p405 = pneg %p84
        $region62: #{bottleneck_forward.1} parent=55 // pred_check_branch
          %407 = sbr.rel (%p405) target = $region64
        $region63: #{bottleneck_forward.1} parent=55 // pred_region
          %408 = dma.done [#allocation7], 32
        $region64: #{bottleneck_forward.1} parent=55 // pred_fallthru
          _
        // Predicated region
        $region65: #{bottleneck_forward.1} parent=55 // pred_check
          %p409 = pneg %p105
        $region66: #{bottleneck_forward.1} parent=55 // pred_check_branch
          %411 = sbr.rel (%p409) target = $region68
        $region67: #{bottleneck_forward.1} parent=55 // pred_region
          %412 = dma.done [#allocation7], 16
        $region68: #{bottleneck_forward.1} parent=55 // pred_fallthru
          _
        // Predicated region
        $region69: #{bottleneck_forward.1} parent=55 // pred_check
          %p413 = pneg %p126
        $region70: #{bottleneck_forward.1} parent=55 // pred_check_branch
          %415 = sbr.rel (%p413) target = $region72
        $region71: #{bottleneck_forward.1} parent=55 // pred_region
          %416 = dma.done [#allocation10], 384
        $region72: #{bottleneck_forward.1} parent=55 // pred_fallthru
          _
        // Predicated region
        $region73: #{bottleneck_forward.1} parent=55 // pred_check
          %p417 = pneg %p147
        $region74: #{bottleneck_forward.1} parent=55 // pred_check_branch
          %419 = sbr.rel (%p417) target = $region76
        $region75: #{bottleneck_forward.1} parent=55 // pred_region
          %420 = dma.done [#allocation10], 16
        $region76: #{bottleneck_forward.1} parent=55 // pred_fallthru
          _
        // Predicated region
        $region77: #{bottleneck_forward.1} parent=55 // pred_check
          %p421 = pneg %p168
        $region78: #{bottleneck_forward.1} parent=55 // pred_check_branch
          %423 = sbr.rel (%p421) target = $region80
        $region79: #{bottleneck_forward.1} parent=55 // pred_region
          %424 = dma.done [#allocation13], 32
        $region80: #{bottleneck_forward.1} parent=55 // pred_fallthru
          _
        // Predicated region
        $region81: #{bottleneck_forward.1} parent=55 // pred_check
          %p425 = pneg %p189
        $region82: #{bottleneck_forward.1} parent=55 // pred_check_branch
          %427 = sbr.rel (%p425) target = $region84
        $region83: #{bottleneck_forward.1} parent=55 // pred_region
          %428 = dma.done [#allocation13], 16
        $region84: #{bottleneck_forward.1} parent=55 // pred_fallthru
          _
        // Predicated region
        $region85: #{bottleneck_forward.1} parent=55 // pred_check
          %p429 = pneg %p210
        $region86: #{bottleneck_forward.1} parent=55 // pred_check_branch
          %431 = sbr.rel (%p429) target = $region88
        $region87: #{bottleneck_forward.1} parent=55 // pred_region
          %432 = dma.done [#allocation16], 32
        $region88: #{bottleneck_forward.1} parent=55 // pred_fallthru
          _
        // Predicated region
        $region89: #{bottleneck_forward.1} parent=55 // pred_check
          %p433 = pneg %p231
        $region90: #{bottleneck_forward.1} parent=55 // pred_check_branch
          %435 = sbr.rel (%p433) target = $region92
        $region91: #{bottleneck_forward.1} parent=55 // pred_region
          %436 = dma.done [#allocation16], 16
        $region92: #{bottleneck_forward.1} parent=55 // pred_fallthru
          _
        %s437 = sand.u32 %s50, 1
        %s438 = scalar_lea.sflag [#allocation4], %s437
        %s439 = sand.u32 %s50, 1
        %s440 = smul.addr %s439, 128
        %s441 = scalar_lea.vmem [#allocation3], %s440
        %p442 = pneg %p63
        %p443 = pneg %p60
        %p444 = pneg %p84
        %p445 = pneg %p81
        %p446 = pneg %p105
        %p447 = pneg %p102
        %p448 = pneg %p126
        %p449 = pneg %p123
        %p450 = pneg %p147
        %p451 = pneg %p144
        %p452 = pneg %p168
        %p453 = pneg %p165
        %p454 = pneg %p189
        %p455 = pneg %p186
        %p456 = pneg %p210
        %p457 = pneg %p207
        %p458 = pneg %p231
        %p459 = pneg %p228
        %p460 = pneg %p259
        %p461 = pneg %p256
        %s462 = sand.u32 %s246, 1
        %s463 = scalar_lea.sflag [#allocation5], %s462
        %s464 = sand.u32 %s246, 1
        %s465 = smul.addr %s464, 128
        %s466 = scalar_lea.vmem [#allocation18], %s465
        %s467 = smul.u32 32, %s35
        %s469 = smul.u32 %s35, 16
        %s470 = smul.u32 %s35, 256
        %s471 = sshra.s32 %s470, 3
        %s472 = sand.u32 %s470, 7
        %s473 = smul.addr %s471, 4
        %s474 = scalar_lea.vmem %s400, %s473 [#allocation3]
        %v475 = vld [vmem:[%s474] sm:$0xf]
        %v476 = vld [vmem:[%s474 + $0x4] sm:$0xf]
        %v477 = vld [vmem:[%s474 + $0x8] sm:$0xf]
        %v478 = vld [vmem:[%s474 + $0xc] sm:$0xf]
        %v479 = vld [vmem:[%s474 + $0x10] sm:$0xf]
        %v480 = vld [vmem:[%s474 + $0x14] sm:$0xf]
        %v481 = vld [vmem:[%s474 + $0x18] sm:$0xf]
        %v482 = vld [vmem:[%s474 + $0x1c] sm:$0xf]
        %v483 = vld [vmem:[%s474 + $0x20] sm:$0xf]
        %v484 = vld [vmem:[%s474 + $0x24] sm:$0xf]
        %v485 = vld [vmem:[%s474 + $0x28] sm:$0xf]
        %v486 = vld [vmem:[%s474 + $0x2c] sm:$0xf]
        %v487 = vld [vmem:[%s474 + $0x30] sm:$0xf]
        %v488 = vld [vmem:[%s474 + $0x34] sm:$0xf]
        %v489 = vld [vmem:[%s474 + $0x38] sm:$0xf]
        %v490 = vld [vmem:[%s474 + $0x3c] sm:$0xf]
        %v491 = vld [vmem:[%s474 + $0x40] sm:$0xf]
        %v492 = vld [vmem:[%s474 + $0x44] sm:$0xf]
        %v493 = vld [vmem:[%s474 + $0x48] sm:$0xf]
        %v494 = vld [vmem:[%s474 + $0x4c] sm:$0xf]
        %v495 = vld [vmem:[%s474 + $0x50] sm:$0xf]
        %v496 = vld [vmem:[%s474 + $0x54] sm:$0xf]
        %v497 = vld [vmem:[%s474 + $0x58] sm:$0xf]
        %v498 = vld [vmem:[%s474 + $0x5c] sm:$0xf]
        %v499 = vld [vmem:[%s474 + $0x60] sm:$0xf]
        %v500 = vld [vmem:[%s474 + $0x64] sm:$0xf]
        %v501 = vld [vmem:[%s474 + $0x68] sm:$0xf]
        %v502 = vld [vmem:[%s474 + $0x6c] sm:$0xf]
        %v503 = vld [vmem:[%s474 + $0x70] sm:$0xf]
        %v504 = vld [vmem:[%s474 + $0x74] sm:$0xf]
        %v505 = vld [vmem:[%s474 + $0x78] sm:$0xf]
        %v506 = vld [vmem:[%s474 + $0x7c] sm:$0xf]
        %v507 = vld [vmem:[#allocation6] sm:$0x3]
        %v508 = vld [vmem:[#allocation8] sm:$0x1]
        %v510 = vlaneseq
        %v511 = vshrl.u32 %v510, 7
        %v512 = vsub.s32 0, %v511
        %v513 = vrot.slane %v508, %v512
        %v547 = vunpack.c.l.b16 %v475
        %v548 = vunpack.c.l.b16 %v476
        %v549 = vunpack.c.l.b16 %v477
        %v550 = vunpack.c.l.b16 %v478
        %v551 = vunpack.c.l.b16 %v479
        %v552 = vunpack.c.l.b16 %v480
        %v553 = vunpack.c.l.b16 %v481
        %v554 = vunpack.c.l.b16 %v482
        %v555 = vunpack.c.l.b16 %v483
        %v556 = vunpack.c.l.b16 %v484
        %v557 = vunpack.c.l.b16 %v485
        %v558 = vunpack.c.l.b16 %v486
        %v559 = vunpack.c.l.b16 %v487
        %v560 = vunpack.c.l.b16 %v488
        %v561 = vunpack.c.l.b16 %v489
        %v562 = vunpack.c.l.b16 %v490
        %v563 = vunpack.c.l.b16 %v491
        %v564 = vunpack.c.l.b16 %v492
        %v565 = vunpack.c.l.b16 %v493
        %v566 = vunpack.c.l.b16 %v494
        %v567 = vunpack.c.l.b16 %v495
        %v568 = vunpack.c.l.b16 %v496
        %v569 = vunpack.c.l.b16 %v497
        %v570 = vunpack.c.l.b16 %v498
        %v571 = vunpack.c.l.b16 %v499
        %v572 = vunpack.c.l.b16 %v500
        %v573 = vunpack.c.l.b16 %v501
        %v574 = vunpack.c.l.b16 %v502
        %v575 = vunpack.c.l.b16 %v503
        %v576 = vunpack.c.l.b16 %v504
        %v577 = vunpack.c.l.b16 %v505
        %v578 = vunpack.c.l.b16 %v506
        %v579 = vpack.c.b16 %v548, %v547
        %v580 = vpack.c.b16 %v550, %v549
        %v581 = vpack.c.b16 %v552, %v551
        %v582 = vpack.c.b16 %v554, %v553
        %v583 = vpack.c.b16 %v556, %v555
        %v584 = vpack.c.b16 %v558, %v557
        %v585 = vpack.c.b16 %v560, %v559
        %v586 = vpack.c.b16 %v562, %v561
        %v587 = vpack.c.b16 %v564, %v563
        %v588 = vpack.c.b16 %v566, %v565
        %v589 = vpack.c.b16 %v568, %v567
        %v590 = vpack.c.b16 %v570, %v569
        %v591 = vpack.c.b16 %v572, %v571
        %v592 = vpack.c.b16 %v574, %v573
        %v593 = vpack.c.b16 %v576, %v575
        %v594 = vpack.c.b16 %v578, %v577
        %vm595 = vcmask 31744
        %v597 = vsel %vm595, %v579, 0
        %v600 = vsel %vm595, %v580, 0
        %v603 = vsel %vm595, %v581, 0
        %v606 = vsel %vm595, %v582, 0
        %v609 = vsel %vm595, %v583, 0
        %v612 = vsel %vm595, %v584, 0
        %v615 = vsel %vm595, %v585, 0
        %v618 = vsel %vm595, %v586, 0
        %v621 = vsel %vm595, %v587, 0
        %v624 = vsel %vm595, %v588, 0
        %v627 = vsel %vm595, %v589, 0
        %v630 = vsel %vm595, %v590, 0
        %v633 = vsel %vm595, %v591, 0
        %v636 = vsel %vm595, %v592, 0
        %v639 = vsel %vm595, %v593, 0
        %v642 = vsel %vm595, %v594, 0
        %vm644 = vcmask 1041408
        %v646 = vsel %vm644, %v507, 0
        %648 = vmatprep.subr.bf16.mxu0 0
        %649 = vmatpush1.bf16.msra.mxu0 %v646
        %650 = vmatprep.subr.bf16.mxu0 0
        %651 = vmatpush1.bf16.msra.mxu0 0
        %652 = vmatprep.subr.bf16.mxu0 0
        %653 = vmatpush1.bf16.msra.mxu0 0
        %654 = vmatprep.subr.bf16.mxu0 0
        %655 = vmatpush1.bf16.msra.mxu0 0
        %656 = vmatprep.subr.bf16.mxu0 0
        %657 = vmatpush1.bf16.msra.mxu0 0
        %658 = vmatprep.subr.bf16.mxu0 0
        %659 = vmatpush1.bf16.msra.mxu0 0
        %660 = vmatprep.subr.bf16.mxu0 0
        %661 = vmatpush1.bf16.msra.mxu0 0
        %662 = vmatprep.subr.bf16.mxu0 0
        %663 = vmatpush1.bf16.msra.mxu0 0
        %664 = vmatprep.subr.bf16.mxu0 0
        %665 = vmatpush1.bf16.msra.mxu0 0
        %666 = vmatprep.subr.bf16.mxu0 0
        %667 = vmatpush1.bf16.msra.mxu0 0
        %668 = vmatprep.subr.bf16.mxu0 0
        %669 = vmatpush1.bf16.msra.mxu0 0
        %670 = vmatprep.subr.bf16.mxu0 0
        %671 = vmatpush1.bf16.msra.mxu0 0
        %672 = vmatprep.subr.bf16.mxu0 0
        %673 = vmatpush1.bf16.msra.mxu0 0
        %674 = vmatprep.subr.bf16.mxu0 0
        %675 = vmatpush1.bf16.msra.mxu0 0
        %676 = vmatprep.subr.bf16.mxu0 0
        %677 = vmatpush1.bf16.msra.mxu0 0
        %678 = vmatprep.subr.bf16.mxu0 0
        %679 = vmatpush1.bf16.msra.mxu0 0
        %680 = vmatprep.mubr.bf16.mxu0 0
        %681 = vmatmul.mubr.bf16.gmra.mrb[0].mxu0 %v597
        %v682 = vpop.f32.mrb[0].mxu0
        %v683 = vadd.f32 %v513, %v682
        %v684 = vpop.f32.mrb[0].mxu0
        %v685 = vpop.f32.mrb[0].mxu0
        %v686 = vadd.f32 %v513, %v685
        %v687 = vpop.f32.mrb[0].mxu0
        %688 = vmatprep.mubr.bf16.mxu0 0
        %689 = vmatmul.mubr.bf16.gmra.mrb[0].mxu0 %v600
        %v690 = vpop.f32.mrb[0].mxu0
        %v691 = vadd.f32 %v513, %v690
        %v692 = vpop.f32.mrb[0].mxu0
        %v693 = vpop.f32.mrb[0].mxu0
        %v694 = vadd.f32 %v513, %v693
        %v695 = vpop.f32.mrb[0].mxu0
        %696 = vmatprep.mubr.bf16.mxu0 0
        %697 = vmatmul.mubr.bf16.gmra.mrb[0].mxu0 %v603
        %v698 = vpop.f32.mrb[0].mxu0
        %v699 = vadd.f32 %v513, %v698
        %v700 = vpop.f32.mrb[0].mxu0
        %v701 = vpop.f32.mrb[0].mxu0
        %v702 = vadd.f32 %v513, %v701
        %v703 = vpop.f32.mrb[0].mxu0
        %704 = vmatprep.mubr.bf16.mxu0 0
        %705 = vmatmul.mubr.bf16.gmra.mrb[0].mxu0 %v606
        %v706 = vpop.f32.mrb[0].mxu0
        %v707 = vadd.f32 %v513, %v706
        %v708 = vpop.f32.mrb[0].mxu0
        %v709 = vpop.f32.mrb[0].mxu0
        %v710 = vadd.f32 %v513, %v709
        %v711 = vpop.f32.mrb[0].mxu0
        %712 = vmatprep.mubr.bf16.mxu0 0
        %713 = vmatmul.mubr.bf16.gmra.mrb[0].mxu0 %v609
        %v714 = vpop.f32.mrb[0].mxu0
        %v715 = vadd.f32 %v513, %v714
        %v716 = vpop.f32.mrb[0].mxu0
        %v717 = vpop.f32.mrb[0].mxu0
        %v718 = vadd.f32 %v513, %v717
        %v719 = vpop.f32.mrb[0].mxu0
        %720 = vmatprep.mubr.bf16.mxu0 0
        %721 = vmatmul.mubr.bf16.gmra.mrb[0].mxu0 %v612
        %v722 = vpop.f32.mrb[0].mxu0
        %v723 = vadd.f32 %v513, %v722
        %v724 = vpop.f32.mrb[0].mxu0
        %v725 = vpop.f32.mrb[0].mxu0
        %v726 = vadd.f32 %v513, %v725
        %v727 = vpop.f32.mrb[0].mxu0
        %728 = vmatprep.mubr.bf16.mxu0 0
        %729 = vmatmul.mubr.bf16.gmra.mrb[0].mxu0 %v615
        %v730 = vpop.f32.mrb[0].mxu0
        %v731 = vadd.f32 %v513, %v730
        %v732 = vpop.f32.mrb[0].mxu0
        %v733 = vpop.f32.mrb[0].mxu0
        %v734 = vadd.f32 %v513, %v733
        %v735 = vpop.f32.mrb[0].mxu0
        %736 = vmatprep.mubr.bf16.mxu0 0
        %737 = vmatmul.mubr.bf16.gmra.mrb[0].mxu0 %v618
        %v738 = vpop.f32.mrb[0].mxu0
        %v739 = vadd.f32 %v513, %v738
        %v740 = vpop.f32.mrb[0].mxu0
        %v741 = vpop.f32.mrb[0].mxu0
        %v742 = vadd.f32 %v513, %v741
        %v743 = vpop.f32.mrb[0].mxu0
        %744 = vmatprep.mubr.bf16.mxu0 0
        %745 = vmatmul.mubr.bf16.gmra.mrb[0].mxu0 %v621
        %v746 = vpop.f32.mrb[0].mxu0
        %v747 = vadd.f32 %v513, %v746
        %v748 = vpop.f32.mrb[0].mxu0
        %v749 = vpop.f32.mrb[0].mxu0
        %v750 = vadd.f32 %v513, %v749
        %v751 = vpop.f32.mrb[0].mxu0
        %752 = vmatprep.mubr.bf16.mxu0 0
        %753 = vmatmul.mubr.bf16.gmra.mrb[0].mxu0 %v624
        %v754 = vpop.f32.mrb[0].mxu0
        %v755 = vadd.f32 %v513, %v754
        %v756 = vpop.f32.mrb[0].mxu0
        %v757 = vpop.f32.mrb[0].mxu0
        %v758 = vadd.f32 %v513, %v757
        %v759 = vpop.f32.mrb[0].mxu0
        %760 = vmatprep.mubr.bf16.mxu0 0
        %761 = vmatmul.mubr.bf16.gmra.mrb[0].mxu0 %v627
        %v762 = vpop.f32.mrb[0].mxu0
        %v763 = vadd.f32 %v513, %v762
        %v764 = vpop.f32.mrb[0].mxu0
        %v765 = vpop.f32.mrb[0].mxu0
        %v766 = vadd.f32 %v513, %v765
        %v767 = vpop.f32.mrb[0].mxu0
        %768 = vmatprep.mubr.bf16.mxu0 0
        %769 = vmatmul.mubr.bf16.gmra.mrb[0].mxu0 %v630
        %v770 = vpop.f32.mrb[0].mxu0
        %v771 = vadd.f32 %v513, %v770
        %v772 = vpop.f32.mrb[0].mxu0
        %v773 = vpop.f32.mrb[0].mxu0
        %v774 = vadd.f32 %v513, %v773
        %v775 = vpop.f32.mrb[0].mxu0
        %776 = vmatprep.mubr.bf16.mxu0 0
        %777 = vmatmul.mubr.bf16.gmra.mrb[0].mxu0 %v633
        %v778 = vpop.f32.mrb[0].mxu0
        %v779 = vadd.f32 %v513, %v778
        %v780 = vpop.f32.mrb[0].mxu0
        %v781 = vpop.f32.mrb[0].mxu0
        %v782 = vadd.f32 %v513, %v781
        %v783 = vpop.f32.mrb[0].mxu0
        %784 = vmatprep.mubr.bf16.mxu0 0
        %785 = vmatmul.mubr.bf16.gmra.mrb[0].mxu0 %v636
        %v786 = vpop.f32.mrb[0].mxu0
        %v787 = vadd.f32 %v513, %v786
        %v788 = vpop.f32.mrb[0].mxu0
        %v789 = vpop.f32.mrb[0].mxu0
        %v790 = vadd.f32 %v513, %v789
        %v791 = vpop.f32.mrb[0].mxu0
        %792 = vmatprep.mubr.bf16.mxu0 0
        %793 = vmatmul.mubr.bf16.gmra.mrb[0].mxu0 %v639
        %v794 = vpop.f32.mrb[0].mxu0
        %v795 = vadd.f32 %v513, %v794
        %v796 = vpop.f32.mrb[0].mxu0
        %v797 = vpop.f32.mrb[0].mxu0
        %v798 = vadd.f32 %v513, %v797
        %v799 = vpop.f32.mrb[0].mxu0
        %800 = vmatprep.mubr.bf16.mxu0 0
        %801 = vmatmul.mubr.bf16.gmra.mrb[0].mxu0 %v642
        %v802 = vpop.f32.mrb[0].mxu0
        %v803 = vadd.f32 %v513, %v802
        %v804 = vpop.f32.mrb[0].mxu0
        %v805 = vpop.f32.mrb[0].mxu0
        %v806 = vadd.f32 %v513, %v805
        %v807 = vpop.f32.mrb[0].mxu0
        %808 = vdwg.mxu0
        %v809 = vmax.f32 %v683, 0.0
        %v810 = vmax.f32 %v686, 0.0
        %v811 = vmax.f32 %v691, 0.0
        %v812 = vmax.f32 %v694, 0.0
        %v813 = vmax.f32 %v699, 0.0
        %v814 = vmax.f32 %v702, 0.0
        %v815 = vmax.f32 %v707, 0.0
        %v816 = vmax.f32 %v710, 0.0
        %v817 = vmax.f32 %v715, 0.0
        %v818 = vmax.f32 %v718, 0.0
        %v819 = vmax.f32 %v723, 0.0
        %v820 = vmax.f32 %v726, 0.0
        %v821 = vmax.f32 %v731, 0.0
        %v822 = vmax.f32 %v734, 0.0
        %v823 = vmax.f32 %v739, 0.0
        %v824 = vmax.f32 %v742, 0.0
        %v825 = vmax.f32 %v747, 0.0
        %v826 = vmax.f32 %v750, 0.0
        %v827 = vmax.f32 %v755, 0.0
        %v828 = vmax.f32 %v758, 0.0
        %v829 = vmax.f32 %v763, 0.0
        %v830 = vmax.f32 %v766, 0.0
        %v831 = vmax.f32 %v771, 0.0
        %v832 = vmax.f32 %v774, 0.0
        %v833 = vmax.f32 %v779, 0.0
        %v834 = vmax.f32 %v782, 0.0
        %v835 = vmax.f32 %v787, 0.0
        %v836 = vmax.f32 %v790, 0.0
        %v837 = vmax.f32 %v795, 0.0
        %v838 = vmax.f32 %v798, 0.0
        %v839 = vmax.f32 %v803, 0.0
        %v840 = vmax.f32 %v806, 0.0
        %v841 = vpack.c.bf16 %v810, %v809
        %v842 = vpack.c.bf16 %v812, %v811
        %v843 = vpack.c.bf16 %v814, %v813
        %v844 = vpack.c.bf16 %v816, %v815
        %v845 = vpack.c.bf16 %v818, %v817
        %v846 = vpack.c.bf16 %v820, %v819
        %v847 = vpack.c.bf16 %v822, %v821
        %v848 = vpack.c.bf16 %v824, %v823
        %v849 = vpack.c.bf16 %v826, %v825
        %v850 = vpack.c.bf16 %v828, %v827
        %v851 = vpack.c.bf16 %v830, %v829
        %v852 = vpack.c.bf16 %v832, %v831
        %v853 = vpack.c.bf16 %v834, %v833
        %v854 = vpack.c.bf16 %v836, %v835
        %v855 = vpack.c.bf16 %v838, %v837
        %v856 = vpack.c.bf16 %v840, %v839
        %s857 = scalar_lea.vmem [#allocation2], 8
        %858 = vst.msk [vmem:[%s857] sm:$0xff] %vm595, %v841
        %859 = vst.msk [vmem:[%s857 + $0x8] sm:$0xff] %vm595, %v842
        %860 = vst.msk [vmem:[%s857 + $0x10] sm:$0xff] %vm595, %v843
        %861 = vst.msk [vmem:[%s857 + $0x18] sm:$0xff] %vm595, %v844
        %862 = vst.msk [vmem:[%s857 + $0x20] sm:$0xff] %vm595, %v845
        %863 = vst.msk [vmem:[%s857 + $0x28] sm:$0xff] %vm595, %v846
        %864 = vst.msk [vmem:[%s857 + $0x30] sm:$0xff] %vm595, %v847
        %865 = vst.msk [vmem:[%s857 + $0x38] sm:$0xff] %vm595, %v848
        %866 = vst.msk [vmem:[%s857 + $0x40] sm:$0xff] %vm595, %v849
        %867 = vst.msk [vmem:[%s857 + $0x48] sm:$0xff] %vm595, %v850
        %868 = vst.msk [vmem:[%s857 + $0x50] sm:$0xff] %vm595, %v851
        %869 = vst.msk [vmem:[%s857 + $0x58] sm:$0xff] %vm595, %v852
        %870 = vst.msk [vmem:[%s857 + $0x60] sm:$0xff] %vm595, %v853
        %871 = vst.msk [vmem:[%s857 + $0x68] sm:$0xff] %vm595, %v854
        %872 = vst.msk [vmem:[%s857 + $0x70] sm:$0xff] %vm595, %v855
        %873 = vst.msk [vmem:[%s857 + $0x78] sm:$0xff] %vm595, %v856
        %s874 = ssub.s32 %s469, 1
        %p875 = scmp.ge.s32.totalorder %s874, 0
        %p876 = scmp.gt.s32.totalorder %s874, 0
        %s877 = scalar_select %p876, %s874, 0
        %s878 = smul.u32 %s877, 16
        %s879 = sshra.s32 %s878, 3
        %s880 = sand.u32 %s878, 7
        %s881 = smul.addr %s879, 4
        %s882 = scalar_lea.vmem %s400, %s881 [#allocation3]
        %v883 = vld [vmem:[%s882] sm:$0xf]
        %v884 = vld [vmem:[%s882 + $0x4] sm:$0xf]
        %v885 = vld [vmem:[#allocation6] sm:$0x3]
        %v886 = vld [vmem:[#allocation8] sm:$0x1]
        %v888 = vlaneseq
        %v889 = vshrl.u32 %v888, 7
        %v890 = vsub.s32 0, %v889
        %v891 = vrot.slane %v886, %v890
        %v895 = vunpack.c.l.b16 %v883
        %v896 = vunpack.c.l.b16 %v884
        %v897 = vpack.c.b16 %v896, %v895
        %v899 = vsel %vm595, %v897, 0
        %v902 = vsel %vm644, %v885, 0
        %904 = vmatprep.subr.bf16.mxu0 0
        %905 = vmatpush1.bf16.msra.mxu0 %v902
        %906 = vmatprep.subr.bf16.mxu0 0
        %907 = vmatpush1.bf16.msra.mxu0 0
        %908 = vmatprep.subr.bf16.mxu0 0
        %909 = vmatpush1.bf16.msra.mxu0 0
        %910 = vmatprep.subr.bf16.mxu0 0
        %911 = vmatpush1.bf16.msra.mxu0 0
        %912 = vmatprep.subr.bf16.mxu0 0
        %913 = vmatpush1.bf16.msra.mxu0 0
        %914 = vmatprep.subr.bf16.mxu0 0
        %915 = vmatpush1.bf16.msra.mxu0 0
        %916 = vmatprep.subr.bf16.mxu0 0
        %917 = vmatpush1.bf16.msra.mxu0 0
        %918 = vmatprep.subr.bf16.mxu0 0
        %919 = vmatpush1.bf16.msra.mxu0 0
        %920 = vmatprep.subr.bf16.mxu0 0
        %921 = vmatpush1.bf16.msra.mxu0 0
        %922 = vmatprep.subr.bf16.mxu0 0
        %923 = vmatpush1.bf16.msra.mxu0 0
        %924 = vmatprep.subr.bf16.mxu0 0
        %925 = vmatpush1.bf16.msra.mxu0 0
        %926 = vmatprep.subr.bf16.mxu0 0
        %927 = vmatpush1.bf16.msra.mxu0 0
        %928 = vmatprep.subr.bf16.mxu0 0
        %929 = vmatpush1.bf16.msra.mxu0 0
        %930 = vmatprep.subr.bf16.mxu0 0
        %931 = vmatpush1.bf16.msra.mxu0 0
        %932 = vmatprep.subr.bf16.mxu0 0
        %933 = vmatpush1.bf16.msra.mxu0 0
        %934 = vmatprep.subr.bf16.mxu0 0
        %935 = vmatpush1.bf16.msra.mxu0 0
        %936 = vmatprep.mubr.bf16.mxu0 0
        %937 = vmatmul.mubr.bf16.gmra.mrb[0].mxu0 %v899
        %v938 = vpop.f32.mrb[0].mxu0
        %v939 = vadd.f32 %v891, %v938
        %v940 = vpop.f32.mrb[0].mxu0
        %v941 = vpop.f32.mrb[0].mxu0
        %v942 = vadd.f32 %v891, %v941
        %v943 = vpop.f32.mrb[0].mxu0
        %944 = vdwg.mxu0
        %v945 = vmax.f32 %v939, 0.0
        %v946 = vmax.f32 %v942, 0.0
        %s947 = scalar_select %p875, 1, 0
        %v948 = vstv %s947
        %vm949 = vcmp.eq.s32.totalorder %v948, 1
        %v950 = vsel %vm949, %v945, 0.0
        %v951 = vsel %vm949, %v946, 0.0
        %v952 = vpack.c.bf16 %v951, %v950
        %953 = vst.msk [vmem:[#allocation2] sm:$0xff] %vm595, %v952
        %s954 = sadd.s32 %s469, 16
        %p955 = scmp.lt.s32.totalorder %s954, 16
        %p956 = scmp.lt.s32.totalorder %s954, 15
        %s957 = scalar_select %p956, %s954, 15
        %s958 = smul.u32 %s957, 16
        %s959 = sshra.s32 %s958, 3
        %s960 = sand.u32 %s958, 7
        %s961 = smul.addr %s959, 4
        %s962 = scalar_lea.vmem %s400, %s961 [#allocation3]
        %v963 = vld [vmem:[%s962] sm:$0xf]
        %v964 = vld [vmem:[%s962 + $0x4] sm:$0xf]
        %v965 = vld [vmem:[#allocation6] sm:$0x3]
        %v966 = vld [vmem:[#allocation8] sm:$0x1]
        %v968 = vlaneseq
        %v969 = vshrl.u32 %v968, 7
        %v970 = vsub.s32 0, %v969
        %v971 = vrot.slane %v966, %v970
        %v975 = vunpack.c.l.b16 %v963
        %v976 = vunpack.c.l.b16 %v964
        %v977 = vpack.c.b16 %v976, %v975
        %v979 = vsel %vm595, %v977, 0
        %v982 = vsel %vm644, %v965, 0
        %984 = vmatprep.subr.bf16.mxu0 0
        %985 = vmatpush1.bf16.msra.mxu0 %v982
        %986 = vmatprep.subr.bf16.mxu0 0
        %987 = vmatpush1.bf16.msra.mxu0 0
        %988 = vmatprep.subr.bf16.mxu0 0
        %989 = vmatpush1.bf16.msra.mxu0 0
        %990 = vmatprep.subr.bf16.mxu0 0
        %991 = vmatpush1.bf16.msra.mxu0 0
        %992 = vmatprep.subr.bf16.mxu0 0
        %993 = vmatpush1.bf16.msra.mxu0 0
        %994 = vmatprep.subr.bf16.mxu0 0
        %995 = vmatpush1.bf16.msra.mxu0 0
        %996 = vmatprep.subr.bf16.mxu0 0
        %997 = vmatpush1.bf16.msra.mxu0 0
        %998 = vmatprep.subr.bf16.mxu0 0
        %999 = vmatpush1.bf16.msra.mxu0 0
        %1000 = vmatprep.subr.bf16.mxu0 0
        %1001 = vmatpush1.bf16.msra.mxu0 0
        %1002 = vmatprep.subr.bf16.mxu0 0
        %1003 = vmatpush1.bf16.msra.mxu0 0
        %1004 = vmatprep.subr.bf16.mxu0 0
        %1005 = vmatpush1.bf16.msra.mxu0 0
        %1006 = vmatprep.subr.bf16.mxu0 0
        %1007 = vmatpush1.bf16.msra.mxu0 0
        %1008 = vmatprep.subr.bf16.mxu0 0
        %1009 = vmatpush1.bf16.msra.mxu0 0
        %1010 = vmatprep.subr.bf16.mxu0 0
        %1011 = vmatpush1.bf16.msra.mxu0 0
        %1012 = vmatprep.subr.bf16.mxu0 0
        %1013 = vmatpush1.bf16.msra.mxu0 0
        %1014 = vmatprep.subr.bf16.mxu0 0
        %1015 = vmatpush1.bf16.msra.mxu0 0
        %1016 = vmatprep.mubr.bf16.mxu0 0
        %1017 = vmatmul.mubr.bf16.gmra.mrb[0].mxu0 %v979
        %v1018 = vpop.f32.mrb[0].mxu0
        %v1019 = vadd.f32 %v971, %v1018
        %v1020 = vpop.f32.mrb[0].mxu0
        %v1021 = vpop.f32.mrb[0].mxu0
        %v1022 = vadd.f32 %v971, %v1021
        %v1023 = vpop.f32.mrb[0].mxu0
        %1024 = vdwg.mxu0
        %v1025 = vmax.f32 %v1019, 0.0
        %v1026 = vmax.f32 %v1022, 0.0
        %s1027 = scalar_select %p955, 1, 0
        %v1028 = vstv %s1027
        %vm1029 = vcmp.eq.s32.totalorder %v1028, 1
        %v1030 = vsel %vm1029, %v1025, 0.0
        %v1031 = vsel %vm1029, %v1026, 0.0
        %v1032 = vpack.c.bf16 %v1031, %v1030
        %s1033 = scalar_lea.vmem [#allocation2], 136
        %1034 = vst.msk [vmem:[%s1033] sm:$0xff] %vm595, %v1032
        %v1035 = vld [vmem:[#allocation2] sm:$0xff]
        %v1036 = vld [vmem:[#allocation2 + $0x8] sm:$0xff]
        %v1037 = vld [vmem:[#allocation2 + $0x10] sm:$0xff]
        %v1038 = vld [vmem:[#allocation2 + $0x18] sm:$0xff]
        %v1039 = vld [vmem:[#allocation2 + $0x20] sm:$0xff]
        %v1040 = vld [vmem:[#allocation2 + $0x28] sm:$0xff]
        %v1041 = vld [vmem:[#allocation2 + $0x30] sm:$0xff]
        %v1042 = vld [vmem:[#allocation2 + $0x38] sm:$0xff]
        %v1043 = vld [vmem:[#allocation2 + $0x40] sm:$0xff]
        %v1044 = vld [vmem:[#allocation2 + $0x48] sm:$0xff]
        %v1045 = vld [vmem:[#allocation2 + $0x50] sm:$0xff]
        %v1046 = vld [vmem:[#allocation2 + $0x58] sm:$0xff]
        %v1047 = vld [vmem:[#allocation2 + $0x60] sm:$0xff]
        %v1048 = vld [vmem:[#allocation2 + $0x68] sm:$0xff]
        %v1049 = vld [vmem:[#allocation2 + $0x70] sm:$0xff]
        %v1050 = vld [vmem:[#allocation2 + $0x78] sm:$0xff]
        %v1052 = vshrl.u32 %v1035, 16
        %v1054 = vrot.slane %v1052, 7
        %v1055 = vshll.u32 %v1035, 16
        %v1057 = vor.u32 %v1054, %v1055
        %v1059 = vshrl.u32 %v1036, 16
        %v1061 = vrot.slane %v1059, 7
        %v1062 = vshll.u32 %v1036, 16
        %v1064 = vor.u32 %v1061, %v1062
        %v1066 = vshrl.u32 %v1037, 16
        %v1068 = vrot.slane %v1066, 7
        %v1069 = vshll.u32 %v1037, 16
        %v1071 = vor.u32 %v1068, %v1069
        %v1073 = vshrl.u32 %v1038, 16
        %v1075 = vrot.slane %v1073, 7
        %v1076 = vshll.u32 %v1038, 16
        %v1078 = vor.u32 %v1075, %v1076
        %v1080 = vshrl.u32 %v1039, 16
        %v1082 = vrot.slane %v1080, 7
        %v1083 = vshll.u32 %v1039, 16
        %v1085 = vor.u32 %v1082, %v1083
        %v1087 = vshrl.u32 %v1040, 16
        %v1089 = vrot.slane %v1087, 7
        %v1090 = vshll.u32 %v1040, 16
        %v1092 = vor.u32 %v1089, %v1090
        %v1094 = vshrl.u32 %v1041, 16
        %v1096 = vrot.slane %v1094, 7
        %v1097 = vshll.u32 %v1041, 16
        %v1099 = vor.u32 %v1096, %v1097
        %v1101 = vshrl.u32 %v1042, 16
        %v1103 = vrot.slane %v1101, 7
        %v1104 = vshll.u32 %v1042, 16
        %v1106 = vor.u32 %v1103, %v1104
        %v1108 = vshrl.u32 %v1043, 16
        %v1110 = vrot.slane %v1108, 7
        %v1111 = vshll.u32 %v1043, 16
        %v1113 = vor.u32 %v1110, %v1111
        %v1115 = vshrl.u32 %v1044, 16
        %v1117 = vrot.slane %v1115, 7
        %v1118 = vshll.u32 %v1044, 16
        %v1120 = vor.u32 %v1117, %v1118
        %v1122 = vshrl.u32 %v1045, 16
        %v1124 = vrot.slane %v1122, 7
        %v1125 = vshll.u32 %v1045, 16
        %v1127 = vor.u32 %v1124, %v1125
        %v1129 = vshrl.u32 %v1046, 16
        %v1131 = vrot.slane %v1129, 7
        %v1132 = vshll.u32 %v1046, 16
        %v1134 = vor.u32 %v1131, %v1132
        %v1136 = vshrl.u32 %v1047, 16
        %v1138 = vrot.slane %v1136, 7
        %v1139 = vshll.u32 %v1047, 16
        %v1141 = vor.u32 %v1138, %v1139
        %v1143 = vshrl.u32 %v1048, 16
        %v1145 = vrot.slane %v1143, 7
        %v1146 = vshll.u32 %v1048, 16
        %v1148 = vor.u32 %v1145, %v1146
        %v1150 = vshrl.u32 %v1049, 16
        %v1152 = vrot.slane %v1150, 7
        %v1153 = vshll.u32 %v1049, 16
        %v1155 = vor.u32 %v1152, %v1153
        %v1157 = vshrl.u32 %v1050, 16
        %v1159 = vrot.slane %v1157, 7
        %v1160 = vshll.u32 %v1050, 16
        %v1162 = vor.u32 %v1159, %v1160
        %vm1179 = vcmask 1040384
        %vm1180 = vsmask.f32 256
        %vm1181 = vmand %vm1179, %vm1180
        %v1182 = vsel %vm1181, 0, %v1057
        %v1183 = vsel %vm1181, 0, %v1064
        %v1184 = vsel %vm1181, 0, %v1071
        %v1185 = vsel %vm1181, 0, %v1078
        %v1186 = vsel %vm1181, 0, %v1085
        %v1187 = vsel %vm1181, 0, %v1092
        %v1188 = vsel %vm1181, 0, %v1099
        %v1189 = vsel %vm1181, 0, %v1106
        %v1190 = vsel %vm1181, 0, %v1113
        %v1191 = vsel %vm1181, 0, %v1120
        %v1192 = vsel %vm1181, 0, %v1127
        %v1193 = vsel %vm1181, 0, %v1134
        %v1194 = vsel %vm1181, 0, %v1141
        %v1195 = vsel %vm1181, 0, %v1148
        %v1196 = vsel %vm1181, 0, %v1155
        %v1197 = vsel %vm1181, 0, %v1162
        %v1198 = vrot.slane %v1055, 1
        %v1199 = vor.u32 %v1052, %v1198
        %v1200 = vrot.slane %v1062, 1
        %v1201 = vor.u32 %v1059, %v1200
        %v1202 = vrot.slane %v1069, 1
        %v1203 = vor.u32 %v1066, %v1202
        %v1204 = vrot.slane %v1076, 1
        %v1205 = vor.u32 %v1073, %v1204
        %v1206 = vrot.slane %v1083, 1
        %v1207 = vor.u32 %v1080, %v1206
        %v1208 = vrot.slane %v1090, 1
        %v1209 = vor.u32 %v1087, %v1208
        %v1210 = vrot.slane %v1097, 1
        %v1211 = vor.u32 %v1094, %v1210
        %v1212 = vrot.slane %v1104, 1
        %v1213 = vor.u32 %v1101, %v1212
        %v1214 = vrot.slane %v1111, 1
        %v1215 = vor.u32 %v1108, %v1214
        %v1216 = vrot.slane %v1118, 1
        %v1217 = vor.u32 %v1115, %v1216
        %v1218 = vrot.slane %v1125, 1
        %v1219 = vor.u32 %v1122, %v1218
        %v1220 = vrot.slane %v1132, 1
        %v1221 = vor.u32 %v1129, %v1220
        %v1222 = vrot.slane %v1139, 1
        %v1223 = vor.u32 %v1136, %v1222
        %v1224 = vrot.slane %v1146, 1
        %v1225 = vor.u32 %v1143, %v1224
        %v1226 = vrot.slane %v1153, 1
        %v1227 = vor.u32 %v1150, %v1226
        %v1228 = vrot.slane %v1160, 1
        %v1229 = vor.u32 %v1157, %v1228
        %vm1246 = vcmask 1047552
        %vm1247 = vsmask.f32 7424
        %vm1248 = vmand %vm1246, %vm1247
        %v1249 = vsel %vm1248, %v1199, 0
        %v1250 = vsel %vm1248, %v1201, 0
        %v1251 = vsel %vm1248, %v1203, 0
        %v1252 = vsel %vm1248, %v1205, 0
        %v1253 = vsel %vm1248, %v1207, 0
        %v1254 = vsel %vm1248, %v1209, 0
        %v1255 = vsel %vm1248, %v1211, 0
        %v1256 = vsel %vm1248, %v1213, 0
        %v1257 = vsel %vm1248, %v1215, 0
        %v1258 = vsel %vm1248, %v1217, 0
        %v1259 = vsel %vm1248, %v1219, 0
        %v1260 = vsel %vm1248, %v1221, 0
        %v1261 = vsel %vm1248, %v1223, 0
        %v1262 = vsel %vm1248, %v1225, 0
        %v1263 = vsel %vm1248, %v1227, 0
        %v1264 = vsel %vm1248, %v1229, 0
        %1281 = vrot.lane.b32.xlu0 %v1035, 4
        %v1282 = vpop.permute.xlu0 %1281
        %1283 = vrot.lane.b32.xlu0 %v1036, 4
        %v1284 = vpop.permute.xlu0 %1283
        %1285 = vrot.lane.b32.xlu0 %v1037, 4
        %v1286 = vpop.permute.xlu0 %1285
        %1287 = vrot.lane.b32.xlu0 %v1038, 4
        %v1288 = vpop.permute.xlu0 %1287
        %1289 = vrot.lane.b32.xlu0 %v1039, 4
        %v1290 = vpop.permute.xlu0 %1289
        %1291 = vrot.lane.b32.xlu0 %v1040, 4
        %v1292 = vpop.permute.xlu0 %1291
        %1293 = vrot.lane.b32.xlu0 %v1041, 4
        %v1294 = vpop.permute.xlu0 %1293
        %1295 = vrot.lane.b32.xlu0 %v1042, 4
        %v1296 = vpop.permute.xlu0 %1295
        %1297 = vrot.lane.b32.xlu0 %v1043, 4
        %v1298 = vpop.permute.xlu0 %1297
        %1299 = vrot.lane.b32.xlu0 %v1044, 4
        %v1300 = vpop.permute.xlu0 %1299
        %1301 = vrot.lane.b32.xlu0 %v1045, 4
        %v1302 = vpop.permute.xlu0 %1301
        %1303 = vrot.lane.b32.xlu0 %v1046, 4
        %v1304 = vpop.permute.xlu0 %1303
        %1305 = vrot.lane.b32.xlu0 %v1047, 4
        %v1306 = vpop.permute.xlu0 %1305
        %1307 = vrot.lane.b32.xlu0 %v1048, 4
        %v1308 = vpop.permute.xlu0 %1307
        %1309 = vrot.lane.b32.xlu0 %v1049, 4
        %v1310 = vpop.permute.xlu0 %1309
        %1311 = vrot.lane.b32.xlu0 %v1050, 4
        %v1312 = vpop.permute.xlu0 %1311
        %1329 = vrot.lane.b32.xlu0 %v1249, 8
        %v1330 = vpop.permute.xlu0 %1329
        %1331 = vrot.lane.b32.xlu0 %v1250, 8
        %v1332 = vpop.permute.xlu0 %1331
        %1333 = vrot.lane.b32.xlu0 %v1251, 8
        %v1334 = vpop.permute.xlu0 %1333
        %1335 = vrot.lane.b32.xlu0 %v1252, 8
        %v1336 = vpop.permute.xlu0 %1335
        %1337 = vrot.lane.b32.xlu0 %v1253, 8
        %v1338 = vpop.permute.xlu0 %1337
        %1339 = vrot.lane.b32.xlu0 %v1254, 8
        %v1340 = vpop.permute.xlu0 %1339
        %1341 = vrot.lane.b32.xlu0 %v1255, 8
        %v1342 = vpop.permute.xlu0 %1341
        %1343 = vrot.lane.b32.xlu0 %v1256, 8
        %v1344 = vpop.permute.xlu0 %1343
        %1345 = vrot.lane.b32.xlu0 %v1257, 8
        %v1346 = vpop.permute.xlu0 %1345
        %1347 = vrot.lane.b32.xlu0 %v1258, 8
        %v1348 = vpop.permute.xlu0 %1347
        %1349 = vrot.lane.b32.xlu0 %v1259, 8
        %v1350 = vpop.permute.xlu0 %1349
        %1351 = vrot.lane.b32.xlu0 %v1260, 8
        %v1352 = vpop.permute.xlu0 %1351
        %1353 = vrot.lane.b32.xlu0 %v1261, 8
        %v1354 = vpop.permute.xlu0 %1353
        %1355 = vrot.lane.b32.xlu0 %v1262, 8
        %v1356 = vpop.permute.xlu0 %1355
        %1357 = vrot.lane.b32.xlu0 %v1263, 8
        %v1358 = vpop.permute.xlu0 %1357
        %1359 = vrot.lane.b32.xlu0 %v1264, 8
        %v1360 = vpop.permute.xlu0 %1359
        %v1363 = vsel %vm595, %v1182, %v1282
        %v1366 = vsel %vm595, %v1183, %v1284
        %v1369 = vsel %vm595, %v1184, %v1286
        %v1372 = vsel %vm595, %v1185, %v1288
        %v1375 = vsel %vm595, %v1186, %v1290
        %v1378 = vsel %vm595, %v1187, %v1292
        %v1381 = vsel %vm595, %v1188, %v1294
        %v1384 = vsel %vm595, %v1189, %v1296
        %v1387 = vsel %vm595, %v1190, %v1298
        %v1390 = vsel %vm595, %v1191, %v1300
        %v1393 = vsel %vm595, %v1192, %v1302
        %v1396 = vsel %vm595, %v1193, %v1304
        %v1399 = vsel %vm595, %v1194, %v1306
        %v1402 = vsel %vm595, %v1195, %v1308
        %v1405 = vsel %vm595, %v1196, %v1310
        %v1408 = vsel %vm595, %v1197, %v1312
        %vm1409 = vcmask 64512
        %v1411 = vsel %vm1409, %v1363, %v1330
        %v1413 = vsel %vm1409, %v1366, %v1332
        %v1415 = vsel %vm1409, %v1369, %v1334
        %v1417 = vsel %vm1409, %v1372, %v1336
        %v1419 = vsel %vm1409, %v1375, %v1338
        %v1421 = vsel %vm1409, %v1378, %v1340
        %v1423 = vsel %vm1409, %v1381, %v1342
        %v1425 = vsel %vm1409, %v1384, %v1344
        %v1427 = vsel %vm1409, %v1387, %v1346
        %v1429 = vsel %vm1409, %v1390, %v1348
        %v1431 = vsel %vm1409, %v1393, %v1350
        %v1433 = vsel %vm1409, %v1396, %v1352
        %v1435 = vsel %vm1409, %v1399, %v1354
        %v1437 = vsel %vm1409, %v1402, %v1356
        %v1439 = vsel %vm1409, %v1405, %v1358
        %v1441 = vsel %vm1409, %v1408, %v1360
        %v1442 = vld [vmem:[#allocation9] sm:$0xf]
        %v1443 = vld [vmem:[#allocation9 + $0x4] sm:$0x3]
        %v1444 = vld [vmem:[%s857] sm:$0xff]
        %v1445 = vld [vmem:[%s857 + $0x8] sm:$0xff]
        %v1446 = vld [vmem:[%s857 + $0x10] sm:$0xff]
        %v1447 = vld [vmem:[%s857 + $0x18] sm:$0xff]
        %v1448 = vld [vmem:[%s857 + $0x20] sm:$0xff]
        %v1449 = vld [vmem:[%s857 + $0x28] sm:$0xff]
        %v1450 = vld [vmem:[%s857 + $0x30] sm:$0xff]
        %v1451 = vld [vmem:[%s857 + $0x38] sm:$0xff]
        %v1452 = vld [vmem:[%s857 + $0x40] sm:$0xff]
        %v1453 = vld [vmem:[%s857 + $0x48] sm:$0xff]
        %v1454 = vld [vmem:[%s857 + $0x50] sm:$0xff]
        %v1455 = vld [vmem:[%s857 + $0x58] sm:$0xff]
        %v1456 = vld [vmem:[%s857 + $0x60] sm:$0xff]
        %v1457 = vld [vmem:[%s857 + $0x68] sm:$0xff]
        %v1458 = vld [vmem:[%s857 + $0x70] sm:$0xff]
        %v1459 = vld [vmem:[%s857 + $0x78] sm:$0xff]
        %v1461 = vshrl.u32 %v1444, 16
        %v1463 = vrot.slane %v1461, 7
        %v1464 = vshll.u32 %v1444, 16
        %v1466 = vor.u32 %v1463, %v1464
        %v1468 = vshrl.u32 %v1445, 16
        %v1470 = vrot.slane %v1468, 7
        %v1471 = vshll.u32 %v1445, 16
        %v1473 = vor.u32 %v1470, %v1471
        %v1475 = vshrl.u32 %v1446, 16
        %v1477 = vrot.slane %v1475, 7
        %v1478 = vshll.u32 %v1446, 16
        %v1480 = vor.u32 %v1477, %v1478
        %v1482 = vshrl.u32 %v1447, 16
        %v1484 = vrot.slane %v1482, 7
        %v1485 = vshll.u32 %v1447, 16
        %v1487 = vor.u32 %v1484, %v1485
        %v1489 = vshrl.u32 %v1448, 16
        %v1491 = vrot.slane %v1489, 7
        %v1492 = vshll.u32 %v1448, 16
        %v1494 = vor.u32 %v1491, %v1492
        %v1496 = vshrl.u32 %v1449, 16
        %v1498 = vrot.slane %v1496, 7
        %v1499 = vshll.u32 %v1449, 16
        %v1501 = vor.u32 %v1498, %v1499
        %v1503 = vshrl.u32 %v1450, 16
        %v1505 = vrot.slane %v1503, 7
        %v1506 = vshll.u32 %v1450, 16
        %v1508 = vor.u32 %v1505, %v1506
        %v1510 = vshrl.u32 %v1451, 16
        %v1512 = vrot.slane %v1510, 7
        %v1513 = vshll.u32 %v1451, 16
        %v1515 = vor.u32 %v1512, %v1513
        %v1517 = vshrl.u32 %v1452, 16
        %v1519 = vrot.slane %v1517, 7
        %v1520 = vshll.u32 %v1452, 16
        %v1522 = vor.u32 %v1519, %v1520
        %v1524 = vshrl.u32 %v1453, 16
        %v1526 = vrot.slane %v1524, 7
        %v1527 = vshll.u32 %v1453, 16
        %v1529 = vor.u32 %v1526, %v1527
        %v1531 = vshrl.u32 %v1454, 16
        %v1533 = vrot.slane %v1531, 7
        %v1534 = vshll.u32 %v1454, 16
        %v1536 = vor.u32 %v1533, %v1534
        %v1538 = vshrl.u32 %v1455, 16
        %v1540 = vrot.slane %v1538, 7
        %v1541 = vshll.u32 %v1455, 16
        %v1543 = vor.u32 %v1540, %v1541
        %v1545 = vshrl.u32 %v1456, 16
        %v1547 = vrot.slane %v1545, 7
        %v1548 = vshll.u32 %v1456, 16
        %v1550 = vor.u32 %v1547, %v1548
        %v1552 = vshrl.u32 %v1457, 16
        %v1554 = vrot.slane %v1552, 7
        %v1555 = vshll.u32 %v1457, 16
        %v1557 = vor.u32 %v1554, %v1555
        %v1559 = vshrl.u32 %v1458, 16
        %v1561 = vrot.slane %v1559, 7
        %v1562 = vshll.u32 %v1458, 16
        %v1564 = vor.u32 %v1561, %v1562
        %v1566 = vshrl.u32 %v1459, 16
        %v1568 = vrot.slane %v1566, 7
        %v1569 = vshll.u32 %v1459, 16
        %v1571 = vor.u32 %v1568, %v1569
        %v1588 = vsel %vm1181, 0, %v1466
        %v1589 = vsel %vm1181, 0, %v1473
        %v1590 = vsel %vm1181, 0, %v1480
        %v1591 = vsel %vm1181, 0, %v1487
        %v1592 = vsel %vm1181, 0, %v1494
        %v1593 = vsel %vm1181, 0, %v1501
        %v1594 = vsel %vm1181, 0, %v1508
        %v1595 = vsel %vm1181, 0, %v1515
        %v1596 = vsel %vm1181, 0, %v1522
        %v1597 = vsel %vm1181, 0, %v1529
        %v1598 = vsel %vm1181, 0, %v1536
        %v1599 = vsel %vm1181, 0, %v1543
        %v1600 = vsel %vm1181, 0, %v1550
        %v1601 = vsel %vm1181, 0, %v1557
        %v1602 = vsel %vm1181, 0, %v1564
        %v1603 = vsel %vm1181, 0, %v1571
        %v1604 = vrot.slane %v1464, 1
        %v1605 = vor.u32 %v1461, %v1604
        %v1606 = vrot.slane %v1471, 1
        %v1607 = vor.u32 %v1468, %v1606
        %v1608 = vrot.slane %v1478, 1
        %v1609 = vor.u32 %v1475, %v1608
        %v1610 = vrot.slane %v1485, 1
        %v1611 = vor.u32 %v1482, %v1610
        %v1612 = vrot.slane %v1492, 1
        %v1613 = vor.u32 %v1489, %v1612
        %v1614 = vrot.slane %v1499, 1
        %v1615 = vor.u32 %v1496, %v1614
        %v1616 = vrot.slane %v1506, 1
        %v1617 = vor.u32 %v1503, %v1616
        %v1618 = vrot.slane %v1513, 1
        %v1619 = vor.u32 %v1510, %v1618
        %v1620 = vrot.slane %v1520, 1
        %v1621 = vor.u32 %v1517, %v1620
        %v1622 = vrot.slane %v1527, 1
        %v1623 = vor.u32 %v1524, %v1622
        %v1624 = vrot.slane %v1534, 1
        %v1625 = vor.u32 %v1531, %v1624
        %v1626 = vrot.slane %v1541, 1
        %v1627 = vor.u32 %v1538, %v1626
        %v1628 = vrot.slane %v1548, 1
        %v1629 = vor.u32 %v1545, %v1628
        %v1630 = vrot.slane %v1555, 1
        %v1631 = vor.u32 %v1552, %v1630
        %v1632 = vrot.slane %v1562, 1
        %v1633 = vor.u32 %v1559, %v1632
        %v1634 = vrot.slane %v1569, 1
        %v1635 = vor.u32 %v1566, %v1634
        %v1652 = vsel %vm1248, %v1605, 0
        %v1653 = vsel %vm1248, %v1607, 0
        %v1654 = vsel %vm1248, %v1609, 0
        %v1655 = vsel %vm1248, %v1611, 0
        %v1656 = vsel %vm1248, %v1613, 0
        %v1657 = vsel %vm1248, %v1615, 0
        %v1658 = vsel %vm1248, %v1617, 0
        %v1659 = vsel %vm1248, %v1619, 0
        %v1660 = vsel %vm1248, %v1621, 0
        %v1661 = vsel %vm1248, %v1623, 0
        %v1662 = vsel %vm1248, %v1625, 0
        %v1663 = vsel %vm1248, %v1627, 0
        %v1664 = vsel %vm1248, %v1629, 0
        %v1665 = vsel %vm1248, %v1631, 0
        %v1666 = vsel %vm1248, %v1633, 0
        %v1667 = vsel %vm1248, %v1635, 0
        %1684 = vrot.lane.b32.xlu0 %v1444, 4
        %v1685 = vpop.permute.xlu0 %1684
        %1686 = vrot.lane.b32.xlu0 %v1445, 4
        %v1687 = vpop.permute.xlu0 %1686
        %1688 = vrot.lane.b32.xlu0 %v1446, 4
        %v1689 = vpop.permute.xlu0 %1688
        %1690 = vrot.lane.b32.xlu0 %v1447, 4
        %v1691 = vpop.permute.xlu0 %1690
        %1692 = vrot.lane.b32.xlu0 %v1448, 4
        %v1693 = vpop.permute.xlu0 %1692
        %1694 = vrot.lane.b32.xlu0 %v1449, 4
        %v1695 = vpop.permute.xlu0 %1694
        %1696 = vrot.lane.b32.xlu0 %v1450, 4
        %v1697 = vpop.permute.xlu0 %1696
        %1698 = vrot.lane.b32.xlu0 %v1451, 4
        %v1699 = vpop.permute.xlu0 %1698
        %1700 = vrot.lane.b32.xlu0 %v1452, 4
        %v1701 = vpop.permute.xlu0 %1700
        %1702 = vrot.lane.b32.xlu0 %v1453, 4
        %v1703 = vpop.permute.xlu0 %1702
        %1704 = vrot.lane.b32.xlu0 %v1454, 4
        %v1705 = vpop.permute.xlu0 %1704
        %1706 = vrot.lane.b32.xlu0 %v1455, 4
        %v1707 = vpop.permute.xlu0 %1706
        %1708 = vrot.lane.b32.xlu0 %v1456, 4
        %v1709 = vpop.permute.xlu0 %1708
        %1710 = vrot.lane.b32.xlu0 %v1457, 4
        %v1711 = vpop.permute.xlu0 %1710
        %1712 = vrot.lane.b32.xlu0 %v1458, 4
        %v1713 = vpop.permute.xlu0 %1712
        %1714 = vrot.lane.b32.xlu0 %v1459, 4
        %v1715 = vpop.permute.xlu0 %1714
        %1732 = vrot.lane.b32.xlu0 %v1652, 8
        %v1733 = vpop.permute.xlu0 %1732
        %1734 = vrot.lane.b32.xlu0 %v1653, 8
        %v1735 = vpop.permute.xlu0 %1734
        %1736 = vrot.lane.b32.xlu0 %v1654, 8
        %v1737 = vpop.permute.xlu0 %1736
        %1738 = vrot.lane.b32.xlu0 %v1655, 8
        %v1739 = vpop.permute.xlu0 %1738
        %1740 = vrot.lane.b32.xlu0 %v1656, 8
        %v1741 = vpop.permute.xlu0 %1740
        %1742 = vrot.lane.b32.xlu0 %v1657, 8
        %v1743 = vpop.permute.xlu0 %1742
        %1744 = vrot.lane.b32.xlu0 %v1658, 8
        %v1745 = vpop.permute.xlu0 %1744
        %1746 = vrot.lane.b32.xlu0 %v1659, 8
        %v1747 = vpop.permute.xlu0 %1746
        %1748 = vrot.lane.b32.xlu0 %v1660, 8
        %v1749 = vpop.permute.xlu0 %1748
        %1750 = vrot.lane.b32.xlu0 %v1661, 8
        %v1751 = vpop.permute.xlu0 %1750
        %1752 = vrot.lane.b32.xlu0 %v1662, 8
        %v1753 = vpop.permute.xlu0 %1752
        %1754 = vrot.lane.b32.xlu0 %v1663, 8
        %v1755 = vpop.permute.xlu0 %1754
        %1756 = vrot.lane.b32.xlu0 %v1664, 8
        %v1757 = vpop.permute.xlu0 %1756
        %1758 = vrot.lane.b32.xlu0 %v1665, 8
        %v1759 = vpop.permute.xlu0 %1758
        %1760 = vrot.lane.b32.xlu0 %v1666, 8
        %v1761 = vpop.permute.xlu0 %1760
        %1762 = vrot.lane.b32.xlu0 %v1667, 8
        %v1763 = vpop.permute.xlu0 %1762
        %v1766 = vsel %vm595, %v1588, %v1685
        %v1769 = vsel %vm595, %v1589, %v1687
        %v1772 = vsel %vm595, %v1590, %v1689
        %v1775 = vsel %vm595, %v1591, %v1691
        %v1778 = vsel %vm595, %v1592, %v1693
        %v1781 = vsel %vm595, %v1593, %v1695
        %v1784 = vsel %vm595, %v1594, %v1697
        %v1787 = vsel %vm595, %v1595, %v1699
        %v1790 = vsel %vm595, %v1596, %v1701
        %v1793 = vsel %vm595, %v1597, %v1703
        %v1796 = vsel %vm595, %v1598, %v1705
        %v1799 = vsel %vm595, %v1599, %v1707
        %v1802 = vsel %vm595, %v1600, %v1709
        %v1805 = vsel %vm595, %v1601, %v1711
        %v1808 = vsel %vm595, %v1602, %v1713
        %v1811 = vsel %vm595, %v1603, %v1715
        %v1813 = vsel %vm1409, %v1766, %v1733
        %v1815 = vsel %vm1409, %v1769, %v1735
        %v1817 = vsel %vm1409, %v1772, %v1737
        %v1819 = vsel %vm1409, %v1775, %v1739
        %v1821 = vsel %vm1409, %v1778, %v1741
        %v1823 = vsel %vm1409, %v1781, %v1743
        %v1825 = vsel %vm1409, %v1784, %v1745
        %v1827 = vsel %vm1409, %v1787, %v1747
        %v1829 = vsel %vm1409, %v1790, %v1749
        %v1831 = vsel %vm1409, %v1793, %v1751
        %v1833 = vsel %vm1409, %v1796, %v1753
        %v1835 = vsel %vm1409, %v1799, %v1755
        %v1837 = vsel %vm1409, %v1802, %v1757
        %v1839 = vsel %vm1409, %v1805, %v1759
        %v1841 = vsel %vm1409, %v1808, %v1761
        %v1843 = vsel %vm1409, %v1811, %v1763
        %s1844 = scalar_lea.vmem [#allocation9], 8
        %v1845 = vld [vmem:[%s1844] sm:$0xf]
        %v1846 = vld [vmem:[%s1844 + $0x4] sm:$0x3]
        %v1849 = vunpack.c.l.b16 %v1845
        %v1850 = vunpack.c.l.b16 %v1846
        %v1851 = vpack.c.b16 %v1850, %v1849
        %vm1852 = vcmask 97280
        %v1853 = vsel %vm1852, %v1813, 0
        %v1855 = vsel %vm1852, %v1815, 0
        %v1857 = vsel %vm1852, %v1817, 0
        %v1859 = vsel %vm1852, %v1819, 0
        %v1861 = vsel %vm1852, %v1821, 0
        %v1863 = vsel %vm1852, %v1823, 0
        %v1865 = vsel %vm1852, %v1825, 0
        %v1867 = vsel %vm1852, %v1827, 0
        %v1869 = vsel %vm1852, %v1829, 0
        %v1871 = vsel %vm1852, %v1831, 0
        %v1873 = vsel %vm1852, %v1833, 0
        %v1875 = vsel %vm1852, %v1835, 0
        %v1877 = vsel %vm1852, %v1837, 0
        %v1879 = vsel %vm1852, %v1839, 0
        %v1881 = vsel %vm1852, %v1841, 0
        %v1883 = vsel %vm1852, %v1843, 0
        %vm1885 = vcmask 1045504
        %v1887 = vsel %vm1885, %v1851, 0
        %1889 = vmatprep.subr.bf16.mxu0 0
        %1890 = vmatpush1.bf16.msra.mxu0 %v1887
        %1891 = vmatprep.subr.bf16.mxu0 0
        %1892 = vmatpush1.bf16.msra.mxu0 0
        %1893 = vmatprep.subr.bf16.mxu0 0
        %1894 = vmatpush1.bf16.msra.mxu0 0
        %1895 = vmatprep.subr.bf16.mxu0 0
        %1896 = vmatpush1.bf16.msra.mxu0 0
        %1897 = vmatprep.subr.bf16.mxu0 0
        %1898 = vmatpush1.bf16.msra.mxu0 0
        %1899 = vmatprep.subr.bf16.mxu0 0
        %1900 = vmatpush1.bf16.msra.mxu0 0
        %1901 = vmatprep.subr.bf16.mxu0 0
        %1902 = vmatpush1.bf16.msra.mxu0 0
        %1903 = vmatprep.subr.bf16.mxu0 0
        %1904 = vmatpush1.bf16.msra.mxu0 0
        %1905 = vmatprep.subr.bf16.mxu0 0
        %1906 = vmatpush1.bf16.msra.mxu0 0
        %1907 = vmatprep.subr.bf16.mxu0 0
        %1908 = vmatpush1.bf16.msra.mxu0 0
        %1909 = vmatprep.subr.bf16.mxu0 0
        %1910 = vmatpush1.bf16.msra.mxu0 0
        %1911 = vmatprep.subr.bf16.mxu0 0
        %1912 = vmatpush1.bf16.msra.mxu0 0
        %1913 = vmatprep.subr.bf16.mxu0 0
        %1914 = vmatpush1.bf16.msra.mxu0 0
        %1915 = vmatprep.subr.bf16.mxu0 0
        %1916 = vmatpush1.bf16.msra.mxu0 0
        %1917 = vmatprep.subr.bf16.mxu0 0
        %1918 = vmatpush1.bf16.msra.mxu0 0
        %1919 = vmatprep.subr.bf16.mxu0 0
        %1920 = vmatpush1.bf16.msra.mxu0 0
        %1921 = vmatprep.mubr.bf16.mxu0 0
        %1922 = vmatmul.mubr.bf16.gmra.mrb[0].mxu0 %v1853
        %v1923 = vpop.f32.mrb[0].mxu0
        %v1924 = vadd.f32 0.0, %v1923
        %v1925 = vpop.f32.mrb[0].mxu0
        %v1926 = vpop.f32.mrb[0].mxu0
        %v1927 = vadd.f32 0.0, %v1926
        %v1928 = vpop.f32.mrb[0].mxu0
        %1929 = vmatprep.mubr.bf16.mxu0 0
        %1930 = vmatmul.mubr.bf16.gmra.mrb[0].mxu0 %v1855
        %v1931 = vpop.f32.mrb[0].mxu0
        %v1932 = vadd.f32 0.0, %v1931
        %v1933 = vpop.f32.mrb[0].mxu0
        %v1934 = vpop.f32.mrb[0].mxu0
        %v1935 = vadd.f32 0.0, %v1934
        %v1936 = vpop.f32.mrb[0].mxu0
        %1937 = vmatprep.mubr.bf16.mxu0 0
        %1938 = vmatmul.mubr.bf16.gmra.mrb[0].mxu0 %v1857
        %v1939 = vpop.f32.mrb[0].mxu0
        %v1940 = vadd.f32 0.0, %v1939
        %v1941 = vpop.f32.mrb[0].mxu0
        %v1942 = vpop.f32.mrb[0].mxu0
        %v1943 = vadd.f32 0.0, %v1942
        %v1944 = vpop.f32.mrb[0].mxu0
        %1945 = vmatprep.mubr.bf16.mxu0 0
        %1946 = vmatmul.mubr.bf16.gmra.mrb[0].mxu0 %v1859
        %v1947 = vpop.f32.mrb[0].mxu0
        %v1948 = vadd.f32 0.0, %v1947
        %v1949 = vpop.f32.mrb[0].mxu0
        %v1950 = vpop.f32.mrb[0].mxu0
        %v1951 = vadd.f32 0.0, %v1950
        %v1952 = vpop.f32.mrb[0].mxu0
        %1953 = vmatprep.mubr.bf16.mxu0 0
        %1954 = vmatmul.mubr.bf16.gmra.mrb[0].mxu0 %v1861
        %v1955 = vpop.f32.mrb[0].mxu0
        %v1956 = vadd.f32 0.0, %v1955
        %v1957 = vpop.f32.mrb[0].mxu0
        %v1958 = vpop.f32.mrb[0].mxu0
        %v1959 = vadd.f32 0.0, %v1958
        %v1960 = vpop.f32.mrb[0].mxu0
        %1961 = vmatprep.mubr.bf16.mxu0 0
        %1962 = vmatmul.mubr.bf16.gmra.mrb[0].mxu0 %v1863
        %v1963 = vpop.f32.mrb[0].mxu0
        %v1964 = vadd.f32 0.0, %v1963
        %v1965 = vpop.f32.mrb[0].mxu0
        %v1966 = vpop.f32.mrb[0].mxu0
        %v1967 = vadd.f32 0.0, %v1966
        %v1968 = vpop.f32.mrb[0].mxu0
        %1969 = vmatprep.mubr.bf16.mxu0 0
        %1970 = vmatmul.mubr.bf16.gmra.mrb[0].mxu0 %v1865
        %v1971 = vpop.f32.mrb[0].mxu0
        %v1972 = vadd.f32 0.0, %v1971
        %v1973 = vpop.f32.mrb[0].mxu0
        %v1974 = vpop.f32.mrb[0].mxu0
        %v1975 = vadd.f32 0.0, %v1974
        %v1976 = vpop.f32.mrb[0].mxu0
        %1977 = vmatprep.mubr.bf16.mxu0 0
        %1978 = vmatmul.mubr.bf16.gmra.mrb[0].mxu0 %v1867
        %v1979 = vpop.f32.mrb[0].mxu0
        %v1980 = vadd.f32 0.0, %v1979
        %v1981 = vpop.f32.mrb[0].mxu0
        %v1982 = vpop.f32.mrb[0].mxu0
        %v1983 = vadd.f32 0.0, %v1982
        %v1984 = vpop.f32.mrb[0].mxu0
        %1985 = vmatprep.mubr.bf16.mxu0 0
        %1986 = vmatmul.mubr.bf16.gmra.mrb[0].mxu0 %v1869
        %v1987 = vpop.f32.mrb[0].mxu0
        %v1988 = vadd.f32 0.0, %v1987
        %v1989 = vpop.f32.mrb[0].mxu0
        %v1990 = vpop.f32.mrb[0].mxu0
        %v1991 = vadd.f32 0.0, %v1990
        %v1992 = vpop.f32.mrb[0].mxu0
        %1993 = vmatprep.mubr.bf16.mxu0 0
        %1994 = vmatmul.mubr.bf16.gmra.mrb[0].mxu0 %v1871
        %v1995 = vpop.f32.mrb[0].mxu0
        %v1996 = vadd.f32 0.0, %v1995
        %v1997 = vpop.f32.mrb[0].mxu0
        %v1998 = vpop.f32.mrb[0].mxu0
        %v1999 = vadd.f32 0.0, %v1998
        %v2000 = vpop.f32.mrb[0].mxu0
        %2001 = vmatprep.mubr.bf16.mxu0 0
        %2002 = vmatmul.mubr.bf16.gmra.mrb[0].mxu0 %v1873
        %v2003 = vpop.f32.mrb[0].mxu0
        %v2004 = vadd.f32 0.0, %v2003
        %v2005 = vpop.f32.mrb[0].mxu0
        %v2006 = vpop.f32.mrb[0].mxu0
        %v2007 = vadd.f32 0.0, %v2006
        %v2008 = vpop.f32.mrb[0].mxu0
        %2009 = vmatprep.mubr.bf16.mxu0 0
        %2010 = vmatmul.mubr.bf16.gmra.mrb[0].mxu0 %v1875
        %v2011 = vpop.f32.mrb[0].mxu0
        %v2012 = vadd.f32 0.0, %v2011
        %v2013 = vpop.f32.mrb[0].mxu0
        %v2014 = vpop.f32.mrb[0].mxu0
        %v2015 = vadd.f32 0.0, %v2014
        %v2016 = vpop.f32.mrb[0].mxu0
        %2017 = vmatprep.mubr.bf16.mxu0 0
        %2018 = vmatmul.mubr.bf16.gmra.mrb[0].mxu0 %v1877
        %v2019 = vpop.f32.mrb[0].mxu0
        %v2020 = vadd.f32 0.0, %v2019
        %v2021 = vpop.f32.mrb[0].mxu0
        %v2022 = vpop.f32.mrb[0].mxu0
        %v2023 = vadd.f32 0.0, %v2022
        %v2024 = vpop.f32.mrb[0].mxu0
        %2025 = vmatprep.mubr.bf16.mxu0 0
        %2026 = vmatmul.mubr.bf16.gmra.mrb[0].mxu0 %v1879
        %v2027 = vpop.f32.mrb[0].mxu0
        %v2028 = vadd.f32 0.0, %v2027
        %v2029 = vpop.f32.mrb[0].mxu0
        %v2030 = vpop.f32.mrb[0].mxu0
        %v2031 = vadd.f32 0.0, %v2030
        %v2032 = vpop.f32.mrb[0].mxu0
        %2033 = vmatprep.mubr.bf16.mxu0 0
        %2034 = vmatmul.mubr.bf16.gmra.mrb[0].mxu0 %v1881
        %v2035 = vpop.f32.mrb[0].mxu0
        %v2036 = vadd.f32 0.0, %v2035
        %v2037 = vpop.f32.mrb[0].mxu0
        %v2038 = vpop.f32.mrb[0].mxu0
        %v2039 = vadd.f32 0.0, %v2038
        %v2040 = vpop.f32.mrb[0].mxu0
        %2041 = vmatprep.mubr.bf16.mxu0 0
        %2042 = vmatmul.mubr.bf16.gmra.mrb[0].mxu0 %v1883
        %v2043 = vpop.f32.mrb[0].mxu0
        %v2044 = vadd.f32 0.0, %v2043
        %v2045 = vpop.f32.mrb[0].mxu0
        %v2046 = vpop.f32.mrb[0].mxu0
        %v2047 = vadd.f32 0.0, %v2046
        %v2048 = vpop.f32.mrb[0].mxu0
        %2049 = vdwg.mxu0
        %v2052 = vunpack.c.l.b16 %v1442
        %v2053 = vunpack.c.l.b16 %v1443
        %v2054 = vpack.c.b16 %v2053, %v2052
        %v2055 = vsel %vm1852, %v1411, 0
        %v2057 = vsel %vm1852, %v1413, 0
        %v2059 = vsel %vm1852, %v1415, 0
        %v2061 = vsel %vm1852, %v1417, 0
        %v2063 = vsel %vm1852, %v1419, 0
        %v2065 = vsel %vm1852, %v1421, 0
        %v2067 = vsel %vm1852, %v1423, 0
        %v2069 = vsel %vm1852, %v1425, 0
        %v2071 = vsel %vm1852, %v1427, 0
        %v2073 = vsel %vm1852, %v1429, 0
        %v2075 = vsel %vm1852, %v1431, 0
        %v2077 = vsel %vm1852, %v1433, 0
        %v2079 = vsel %vm1852, %v1435, 0
        %v2081 = vsel %vm1852, %v1437, 0
        %v2083 = vsel %vm1852, %v1439, 0
        %v2085 = vsel %vm1852, %v1441, 0
        %v2088 = vsel %vm1885, %v2054, 0
        %2090 = vmatprep.subr.bf16.mxu0 0
        %2091 = vmatpush1.bf16.msra.mxu0 %v2088
        %2092 = vmatprep.subr.bf16.mxu0 0
        %2093 = vmatpush1.bf16.msra.mxu0 0
        %2094 = vmatprep.subr.bf16.mxu0 0
        %2095 = vmatpush1.bf16.msra.mxu0 0
        %2096 = vmatprep.subr.bf16.mxu0 0
        %2097 = vmatpush1.bf16.msra.mxu0 0
        %2098 = vmatprep.subr.bf16.mxu0 0
        %2099 = vmatpush1.bf16.msra.mxu0 0
        %2100 = vmatprep.subr.bf16.mxu0 0
        %2101 = vmatpush1.bf16.msra.mxu0 0
        %2102 = vmatprep.subr.bf16.mxu0 0
        %2103 = vmatpush1.bf16.msra.mxu0 0
        %2104 = vmatprep.subr.bf16.mxu0 0
        %2105 = vmatpush1.bf16.msra.mxu0 0
        %2106 = vmatprep.subr.bf16.mxu0 0
        %2107 = vmatpush1.bf16.msra.mxu0 0
        %2108 = vmatprep.subr.bf16.mxu0 0
        %2109 = vmatpush1.bf16.msra.mxu0 0
        %2110 = vmatprep.subr.bf16.mxu0 0
        %2111 = vmatpush1.bf16.msra.mxu0 0
        %2112 = vmatprep.subr.bf16.mxu0 0
        %2113 = vmatpush1.bf16.msra.mxu0 0
        %2114 = vmatprep.subr.bf16.mxu0 0
        %2115 = vmatpush1.bf16.msra.mxu0 0
        %2116 = vmatprep.subr.bf16.mxu0 0
        %2117 = vmatpush1.bf16.msra.mxu0 0
        %2118 = vmatprep.subr.bf16.mxu0 0
        %2119 = vmatpush1.bf16.msra.mxu0 0
        %2120 = vmatprep.subr.bf16.mxu0 0
        %2121 = vmatpush1.bf16.msra.mxu0 0
        %2122 = vmatprep.mubr.bf16.mxu0 0
        %2123 = vmatmul.mubr.bf16.gmra.mrb[0].mxu0 %v2055
        %v2124 = vpop.f32.mrb[0].mxu0
        %v2125 = vadd.f32 %v1924, %v2124
        %v2126 = vpop.f32.mrb[0].mxu0
        %v2127 = vpop.f32.mrb[0].mxu0
        %v2128 = vadd.f32 %v1927, %v2127
        %v2129 = vpop.f32.mrb[0].mxu0
        %2130 = vmatprep.mubr.bf16.mxu0 0
        %2131 = vmatmul.mubr.bf16.gmra.mrb[0].mxu0 %v2057
        %v2132 = vpop.f32.mrb[0].mxu0
        %v2133 = vadd.f32 %v1932, %v2132
        %v2134 = vpop.f32.mrb[0].mxu0
        %v2135 = vpop.f32.mrb[0].mxu0
        %v2136 = vadd.f32 %v1935, %v2135
        %v2137 = vpop.f32.mrb[0].mxu0
        %2138 = vmatprep.mubr.bf16.mxu0 0
        %2139 = vmatmul.mubr.bf16.gmra.mrb[0].mxu0 %v2059
        %v2140 = vpop.f32.mrb[0].mxu0
        %v2141 = vadd.f32 %v1940, %v2140
        %v2142 = vpop.f32.mrb[0].mxu0
        %v2143 = vpop.f32.mrb[0].mxu0
        %v2144 = vadd.f32 %v1943, %v2143
        %v2145 = vpop.f32.mrb[0].mxu0
        %2146 = vmatprep.mubr.bf16.mxu0 0
        %2147 = vmatmul.mubr.bf16.gmra.mrb[0].mxu0 %v2061
        %v2148 = vpop.f32.mrb[0].mxu0
        %v2149 = vadd.f32 %v1948, %v2148
        %v2150 = vpop.f32.mrb[0].mxu0
        %v2151 = vpop.f32.mrb[0].mxu0
        %v2152 = vadd.f32 %v1951, %v2151
        %v2153 = vpop.f32.mrb[0].mxu0
        %2154 = vmatprep.mubr.bf16.mxu0 0
        %2155 = vmatmul.mubr.bf16.gmra.mrb[0].mxu0 %v2063
        %v2156 = vpop.f32.mrb[0].mxu0
        %v2157 = vadd.f32 %v1956, %v2156
        %v2158 = vpop.f32.mrb[0].mxu0
        %v2159 = vpop.f32.mrb[0].mxu0
        %v2160 = vadd.f32 %v1959, %v2159
        %v2161 = vpop.f32.mrb[0].mxu0
        %2162 = vmatprep.mubr.bf16.mxu0 0
        %2163 = vmatmul.mubr.bf16.gmra.mrb[0].mxu0 %v2065
        %v2164 = vpop.f32.mrb[0].mxu0
        %v2165 = vadd.f32 %v1964, %v2164
        %v2166 = vpop.f32.mrb[0].mxu0
        %v2167 = vpop.f32.mrb[0].mxu0
        %v2168 = vadd.f32 %v1967, %v2167
        %v2169 = vpop.f32.mrb[0].mxu0
        %2170 = vmatprep.mubr.bf16.mxu0 0
        %2171 = vmatmul.mubr.bf16.gmra.mrb[0].mxu0 %v2067
        %v2172 = vpop.f32.mrb[0].mxu0
        %v2173 = vadd.f32 %v1972, %v2172
        %v2174 = vpop.f32.mrb[0].mxu0
        %v2175 = vpop.f32.mrb[0].mxu0
        %v2176 = vadd.f32 %v1975, %v2175
        %v2177 = vpop.f32.mrb[0].mxu0
        %2178 = vmatprep.mubr.bf16.mxu0 0
        %2179 = vmatmul.mubr.bf16.gmra.mrb[0].mxu0 %v2069
        %v2180 = vpop.f32.mrb[0].mxu0
        %v2181 = vadd.f32 %v1980, %v2180
        %v2182 = vpop.f32.mrb[0].mxu0
        %v2183 = vpop.f32.mrb[0].mxu0
        %v2184 = vadd.f32 %v1983, %v2183
        %v2185 = vpop.f32.mrb[0].mxu0
        %2186 = vmatprep.mubr.bf16.mxu0 0
        %2187 = vmatmul.mubr.bf16.gmra.mrb[0].mxu0 %v2071
        %v2188 = vpop.f32.mrb[0].mxu0
        %v2189 = vadd.f32 %v1988, %v2188
        %v2190 = vpop.f32.mrb[0].mxu0
        %v2191 = vpop.f32.mrb[0].mxu0
        %v2192 = vadd.f32 %v1991, %v2191
        %v2193 = vpop.f32.mrb[0].mxu0
        %2194 = vmatprep.mubr.bf16.mxu0 0
        %2195 = vmatmul.mubr.bf16.gmra.mrb[0].mxu0 %v2073
        %v2196 = vpop.f32.mrb[0].mxu0
        %v2197 = vadd.f32 %v1996, %v2196
        %v2198 = vpop.f32.mrb[0].mxu0
        %v2199 = vpop.f32.mrb[0].mxu0
        %v2200 = vadd.f32 %v1999, %v2199
        %v2201 = vpop.f32.mrb[0].mxu0
        %2202 = vmatprep.mubr.bf16.mxu0 0
        %2203 = vmatmul.mubr.bf16.gmra.mrb[0].mxu0 %v2075
        %v2204 = vpop.f32.mrb[0].mxu0
        %v2205 = vadd.f32 %v2004, %v2204
        %v2206 = vpop.f32.mrb[0].mxu0
        %v2207 = vpop.f32.mrb[0].mxu0
        %v2208 = vadd.f32 %v2007, %v2207
        %v2209 = vpop.f32.mrb[0].mxu0
        %2210 = vmatprep.mubr.bf16.mxu0 0
        %2211 = vmatmul.mubr.bf16.gmra.mrb[0].mxu0 %v2077
        %v2212 = vpop.f32.mrb[0].mxu0
        %v2213 = vadd.f32 %v2012, %v2212
        %v2214 = vpop.f32.mrb[0].mxu0
        %v2215 = vpop.f32.mrb[0].mxu0
        %v2216 = vadd.f32 %v2015, %v2215
        %v2217 = vpop.f32.mrb[0].mxu0
        %2218 = vmatprep.mubr.bf16.mxu0 0
        %2219 = vmatmul.mubr.bf16.gmra.mrb[0].mxu0 %v2079
        %v2220 = vpop.f32.mrb[0].mxu0
        %v2221 = vadd.f32 %v2020, %v2220
        %v2222 = vpop.f32.mrb[0].mxu0
        %v2223 = vpop.f32.mrb[0].mxu0
        %v2224 = vadd.f32 %v2023, %v2223
        %v2225 = vpop.f32.mrb[0].mxu0
        %2226 = vmatprep.mubr.bf16.mxu0 0
        %2227 = vmatmul.mubr.bf16.gmra.mrb[0].mxu0 %v2081
        %v2228 = vpop.f32.mrb[0].mxu0
        %v2229 = vadd.f32 %v2028, %v2228
        %v2230 = vpop.f32.mrb[0].mxu0
        %v2231 = vpop.f32.mrb[0].mxu0
        %v2232 = vadd.f32 %v2031, %v2231
        %v2233 = vpop.f32.mrb[0].mxu0
        %2234 = vmatprep.mubr.bf16.mxu0 0
        %2235 = vmatmul.mubr.bf16.gmra.mrb[0].mxu0 %v2083
        %v2236 = vpop.f32.mrb[0].mxu0
        %v2237 = vadd.f32 %v2036, %v2236
        %v2238 = vpop.f32.mrb[0].mxu0
        %v2239 = vpop.f32.mrb[0].mxu0
        %v2240 = vadd.f32 %v2039, %v2239
        %v2241 = vpop.f32.mrb[0].mxu0
        %2242 = vmatprep.mubr.bf16.mxu0 0
        %2243 = vmatmul.mubr.bf16.gmra.mrb[0].mxu0 %v2085
        %v2244 = vpop.f32.mrb[0].mxu0
        %v2245 = vadd.f32 %v2044, %v2244
        %v2246 = vpop.f32.mrb[0].mxu0
        %v2247 = vpop.f32.mrb[0].mxu0
        %v2248 = vadd.f32 %v2047, %v2247
        %v2249 = vpop.f32.mrb[0].mxu0
        %2250 = vdwg.mxu0
        %s2251 = scalar_lea.vmem [#allocation2], 16
        %v2252 = vld [vmem:[%s2251] sm:$0xff]
        %v2253 = vld [vmem:[%s2251 + $0x8] sm:$0xff]
        %v2254 = vld [vmem:[%s2251 + $0x10] sm:$0xff]
        %v2255 = vld [vmem:[%s2251 + $0x18] sm:$0xff]
        %v2256 = vld [vmem:[%s2251 + $0x20] sm:$0xff]
        %v2257 = vld [vmem:[%s2251 + $0x28] sm:$0xff]
        %v2258 = vld [vmem:[%s2251 + $0x30] sm:$0xff]
        %v2259 = vld [vmem:[%s2251 + $0x38] sm:$0xff]
        %v2260 = vld [vmem:[%s2251 + $0x40] sm:$0xff]
        %v2261 = vld [vmem:[%s2251 + $0x48] sm:$0xff]
        %v2262 = vld [vmem:[%s2251 + $0x50] sm:$0xff]
        %v2263 = vld [vmem:[%s2251 + $0x58] sm:$0xff]
        %v2264 = vld [vmem:[%s2251 + $0x60] sm:$0xff]
        %v2265 = vld [vmem:[%s2251 + $0x68] sm:$0xff]
        %v2266 = vld [vmem:[%s2251 + $0x70] sm:$0xff]
        %v2267 = vld [vmem:[%s2251 + $0x78] sm:$0xff]
        %v2269 = vshrl.u32 %v2252, 16
        %v2271 = vrot.slane %v2269, 7
        %v2272 = vshll.u32 %v2252, 16
        %v2274 = vor.u32 %v2271, %v2272
        %v2276 = vshrl.u32 %v2253, 16
        %v2278 = vrot.slane %v2276, 7
        %v2279 = vshll.u32 %v2253, 16
        %v2281 = vor.u32 %v2278, %v2279
        %v2283 = vshrl.u32 %v2254, 16
        %v2285 = vrot.slane %v2283, 7
        %v2286 = vshll.u32 %v2254, 16
        %v2288 = vor.u32 %v2285, %v2286
        %v2290 = vshrl.u32 %v2255, 16
        %v2292 = vrot.slane %v2290, 7
        %v2293 = vshll.u32 %v2255, 16
        %v2295 = vor.u32 %v2292, %v2293
        %v2297 = vshrl.u32 %v2256, 16
        %v2299 = vrot.slane %v2297, 7
        %v2300 = vshll.u32 %v2256, 16
        %v2302 = vor.u32 %v2299, %v2300
        %v2304 = vshrl.u32 %v2257, 16
        %v2306 = vrot.slane %v2304, 7
        %v2307 = vshll.u32 %v2257, 16
        %v2309 = vor.u32 %v2306, %v2307
        %v2311 = vshrl.u32 %v2258, 16
        %v2313 = vrot.slane %v2311, 7
        %v2314 = vshll.u32 %v2258, 16
        %v2316 = vor.u32 %v2313, %v2314
        %v2318 = vshrl.u32 %v2259, 16
        %v2320 = vrot.slane %v2318, 7
        %v2321 = vshll.u32 %v2259, 16
        %v2323 = vor.u32 %v2320, %v2321
        %v2325 = vshrl.u32 %v2260, 16
        %v2327 = vrot.slane %v2325, 7
        %v2328 = vshll.u32 %v2260, 16
        %v2330 = vor.u32 %v2327, %v2328
        %v2332 = vshrl.u32 %v2261, 16
        %v2334 = vrot.slane %v2332, 7
        %v2335 = vshll.u32 %v2261, 16
        %v2337 = vor.u32 %v2334, %v2335
        %v2339 = vshrl.u32 %v2262, 16
        %v2341 = vrot.slane %v2339, 7
        %v2342 = vshll.u32 %v2262, 16
        %v2344 = vor.u32 %v2341, %v2342
        %v2346 = vshrl.u32 %v2263, 16
        %v2348 = vrot.slane %v2346, 7
        %v2349 = vshll.u32 %v2263, 16
        %v2351 = vor.u32 %v2348, %v2349
        %v2353 = vshrl.u32 %v2264, 16
        %v2355 = vrot.slane %v2353, 7
        %v2356 = vshll.u32 %v2264, 16
        %v2358 = vor.u32 %v2355, %v2356
        %v2360 = vshrl.u32 %v2265, 16
        %v2362 = vrot.slane %v2360, 7
        %v2363 = vshll.u32 %v2265, 16
        %v2365 = vor.u32 %v2362, %v2363
        %v2367 = vshrl.u32 %v2266, 16
        %v2369 = vrot.slane %v2367, 7
        %v2370 = vshll.u32 %v2266, 16
        %v2372 = vor.u32 %v2369, %v2370
        %v2374 = vshrl.u32 %v2267, 16
        %v2376 = vrot.slane %v2374, 7
        %v2377 = vshll.u32 %v2267, 16
        %v2379 = vor.u32 %v2376, %v2377
        %v2396 = vsel %vm1181, 0, %v2274
        %v2397 = vsel %vm1181, 0, %v2281
        %v2398 = vsel %vm1181, 0, %v2288
        %v2399 = vsel %vm1181, 0, %v2295
        %v2400 = vsel %vm1181, 0, %v2302
        %v2401 = vsel %vm1181, 0, %v2309
        %v2402 = vsel %vm1181, 0, %v2316
        %v2403 = vsel %vm1181, 0, %v2323
        %v2404 = vsel %vm1181, 0, %v2330
        %v2405 = vsel %vm1181, 0, %v2337
        %v2406 = vsel %vm1181, 0, %v2344
        %v2407 = vsel %vm1181, 0, %v2351
        %v2408 = vsel %vm1181, 0, %v2358
        %v2409 = vsel %vm1181, 0, %v2365
        %v2410 = vsel %vm1181, 0, %v2372
        %v2411 = vsel %vm1181, 0, %v2379
        %v2412 = vrot.slane %v2272, 1
        %v2413 = vor.u32 %v2269, %v2412
        %v2414 = vrot.slane %v2279, 1
        %v2415 = vor.u32 %v2276, %v2414
        %v2416 = vrot.slane %v2286, 1
        %v2417 = vor.u32 %v2283, %v2416
        %v2418 = vrot.slane %v2293, 1
        %v2419 = vor.u32 %v2290, %v2418
        %v2420 = vrot.slane %v2300, 1
        %v2421 = vor.u32 %v2297, %v2420
        %v2422 = vrot.slane %v2307, 1
        %v2423 = vor.u32 %v2304, %v2422
        %v2424 = vrot.slane %v2314, 1
        %v2425 = vor.u32 %v2311, %v2424
        %v2426 = vrot.slane %v2321, 1
        %v2427 = vor.u32 %v2318, %v2426
        %v2428 = vrot.slane %v2328, 1
        %v2429 = vor.u32 %v2325, %v2428
        %v2430 = vrot.slane %v2335, 1
        %v2431 = vor.u32 %v2332, %v2430
        %v2432 = vrot.slane %v2342, 1
        %v2433 = vor.u32 %v2339, %v2432
        %v2434 = vrot.slane %v2349, 1
        %v2435 = vor.u32 %v2346, %v2434
        %v2436 = vrot.slane %v2356, 1
        %v2437 = vor.u32 %v2353, %v2436
        %v2438 = vrot.slane %v2363, 1
        %v2439 = vor.u32 %v2360, %v2438
        %v2440 = vrot.slane %v2370, 1
        %v2441 = vor.u32 %v2367, %v2440
        %v2442 = vrot.slane %v2377, 1
        %v2443 = vor.u32 %v2374, %v2442
        %v2460 = vsel %vm1248, %v2413, 0
        %v2461 = vsel %vm1248, %v2415, 0
        %v2462 = vsel %vm1248, %v2417, 0
        %v2463 = vsel %vm1248, %v2419, 0
        %v2464 = vsel %vm1248, %v2421, 0
        %v2465 = vsel %vm1248, %v2423, 0
        %v2466 = vsel %vm1248, %v2425, 0
        %v2467 = vsel %vm1248, %v2427, 0
        %v2468 = vsel %vm1248, %v2429, 0
        %v2469 = vsel %vm1248, %v2431, 0
        %v2470 = vsel %vm1248, %v2433, 0
        %v2471 = vsel %vm1248, %v2435, 0
        %v2472 = vsel %vm1248, %v2437, 0
        %v2473 = vsel %vm1248, %v2439, 0
        %v2474 = vsel %vm1248, %v2441, 0
        %v2475 = vsel %vm1248, %v2443, 0
        %2492 = vrot.lane.b32.xlu0 %v2252, 4
        %v2493 = vpop.permute.xlu0 %2492
        %2494 = vrot.lane.b32.xlu0 %v2253, 4
        %v2495 = vpop.permute.xlu0 %2494
        %2496 = vrot.lane.b32.xlu0 %v2254, 4
        %v2497 = vpop.permute.xlu0 %2496
        %2498 = vrot.lane.b32.xlu0 %v2255, 4
        %v2499 = vpop.permute.xlu0 %2498
        %2500 = vrot.lane.b32.xlu0 %v2256, 4
        %v2501 = vpop.permute.xlu0 %2500
        %2502 = vrot.lane.b32.xlu0 %v2257, 4
        %v2503 = vpop.permute.xlu0 %2502
        %2504 = vrot.lane.b32.xlu0 %v2258, 4
        %v2505 = vpop.permute.xlu0 %2504
        %2506 = vrot.lane.b32.xlu0 %v2259, 4
        %v2507 = vpop.permute.xlu0 %2506
        %2508 = vrot.lane.b32.xlu0 %v2260, 4
        %v2509 = vpop.permute.xlu0 %2508
        %2510 = vrot.lane.b32.xlu0 %v2261, 4
        %v2511 = vpop.permute.xlu0 %2510
        %2512 = vrot.lane.b32.xlu0 %v2262, 4
        %v2513 = vpop.permute.xlu0 %2512
        %2514 = vrot.lane.b32.xlu0 %v2263, 4
        %v2515 = vpop.permute.xlu0 %2514
        %2516 = vrot.lane.b32.xlu0 %v2264, 4
        %v2517 = vpop.permute.xlu0 %2516
        %2518 = vrot.lane.b32.xlu0 %v2265, 4
        %v2519 = vpop.permute.xlu0 %2518
        %2520 = vrot.lane.b32.xlu0 %v2266, 4
        %v2521 = vpop.permute.xlu0 %2520
        %2522 = vrot.lane.b32.xlu0 %v2267, 4
        %v2523 = vpop.permute.xlu0 %2522
        %2540 = vrot.lane.b32.xlu0 %v2460, 8
        %v2541 = vpop.permute.xlu0 %2540
        %2542 = vrot.lane.b32.xlu0 %v2461, 8
        %v2543 = vpop.permute.xlu0 %2542
        %2544 = vrot.lane.b32.xlu0 %v2462, 8
        %v2545 = vpop.permute.xlu0 %2544
        %2546 = vrot.lane.b32.xlu0 %v2463, 8
        %v2547 = vpop.permute.xlu0 %2546
        %2548 = vrot.lane.b32.xlu0 %v2464, 8
        %v2549 = vpop.permute.xlu0 %2548
        %2550 = vrot.lane.b32.xlu0 %v2465, 8
        %v2551 = vpop.permute.xlu0 %2550
        %2552 = vrot.lane.b32.xlu0 %v2466, 8
        %v2553 = vpop.permute.xlu0 %2552
        %2554 = vrot.lane.b32.xlu0 %v2467, 8
        %v2555 = vpop.permute.xlu0 %2554
        %2556 = vrot.lane.b32.xlu0 %v2468, 8
        %v2557 = vpop.permute.xlu0 %2556
        %2558 = vrot.lane.b32.xlu0 %v2469, 8
        %v2559 = vpop.permute.xlu0 %2558
        %2560 = vrot.lane.b32.xlu0 %v2470, 8
        %v2561 = vpop.permute.xlu0 %2560
        %2562 = vrot.lane.b32.xlu0 %v2471, 8
        %v2563 = vpop.permute.xlu0 %2562
        %2564 = vrot.lane.b32.xlu0 %v2472, 8
        %v2565 = vpop.permute.xlu0 %2564
        %2566 = vrot.lane.b32.xlu0 %v2473, 8
        %v2567 = vpop.permute.xlu0 %2566
        %2568 = vrot.lane.b32.xlu0 %v2474, 8
        %v2569 = vpop.permute.xlu0 %2568
        %2570 = vrot.lane.b32.xlu0 %v2475, 8
        %v2571 = vpop.permute.xlu0 %2570
        %v2574 = vsel %vm595, %v2396, %v2493
        %v2577 = vsel %vm595, %v2397, %v2495
        %v2580 = vsel %vm595, %v2398, %v2497
        %v2583 = vsel %vm595, %v2399, %v2499
        %v2586 = vsel %vm595, %v2400, %v2501
        %v2589 = vsel %vm595, %v2401, %v2503
        %v2592 = vsel %vm595, %v2402, %v2505
        %v2595 = vsel %vm595, %v2403, %v2507
        %v2598 = vsel %vm595, %v2404, %v2509
        %v2601 = vsel %vm595, %v2405, %v2511
        %v2604 = vsel %vm595, %v2406, %v2513
        %v2607 = vsel %vm595, %v2407, %v2515
        %v2610 = vsel %vm595, %v2408, %v2517
        %v2613 = vsel %vm595, %v2409, %v2519
        %v2616 = vsel %vm595, %v2410, %v2521
        %v2619 = vsel %vm595, %v2411, %v2523
        %v2621 = vsel %vm1409, %v2574, %v2541
        %v2623 = vsel %vm1409, %v2577, %v2543
        %v2625 = vsel %vm1409, %v2580, %v2545
        %v2627 = vsel %vm1409, %v2583, %v2547
        %v2629 = vsel %vm1409, %v2586, %v2549
        %v2631 = vsel %vm1409, %v2589, %v2551
        %v2633 = vsel %vm1409, %v2592, %v2553
        %v2635 = vsel %vm1409, %v2595, %v2555
        %v2637 = vsel %vm1409, %v2598, %v2557
        %v2639 = vsel %vm1409, %v2601, %v2559
        %v2641 = vsel %vm1409, %v2604, %v2561
        %v2643 = vsel %vm1409, %v2607, %v2563
        %v2645 = vsel %vm1409, %v2610, %v2565
        %v2647 = vsel %vm1409, %v2613, %v2567
        %v2649 = vsel %vm1409, %v2616, %v2569
        %v2651 = vsel %vm1409, %v2619, %v2571
        %s2652 = scalar_lea.vmem [#allocation9], 16
        %v2653 = vld [vmem:[%s2652] sm:$0xf]
        %v2654 = vld [vmem:[%s2652 + $0x4] sm:$0x3]
        %v2657 = vunpack.c.l.b16 %v2653
        %v2658 = vunpack.c.l.b16 %v2654
        %v2659 = vpack.c.b16 %v2658, %v2657
        %v2660 = vsel %vm1852, %v2621, 0
        %v2662 = vsel %vm1852, %v2623, 0
        %v2664 = vsel %vm1852, %v2625, 0
        %v2666 = vsel %vm1852, %v2627, 0
        %v2668 = vsel %vm1852, %v2629, 0
        %v2670 = vsel %vm1852, %v2631, 0
        %v2672 = vsel %vm1852, %v2633, 0
        %v2674 = vsel %vm1852, %v2635, 0
        %v2676 = vsel %vm1852, %v2637, 0
        %v2678 = vsel %vm1852, %v2639, 0
        %v2680 = vsel %vm1852, %v2641, 0
        %v2682 = vsel %vm1852, %v2643, 0
        %v2684 = vsel %vm1852, %v2645, 0
        %v2686 = vsel %vm1852, %v2647, 0
        %v2688 = vsel %vm1852, %v2649, 0
        %v2690 = vsel %vm1852, %v2651, 0
        %v2693 = vsel %vm1885, %v2659, 0
        %2695 = vmatprep.subr.bf16.mxu0 0
        %2696 = vmatpush1.bf16.msra.mxu0 %v2693
        %2697 = vmatprep.subr.bf16.mxu0 0
        %2698 = vmatpush1.bf16.msra.mxu0 0
        %2699 = vmatprep.subr.bf16.mxu0 0
        %2700 = vmatpush1.bf16.msra.mxu0 0
        %2701 = vmatprep.subr.bf16.mxu0 0
        %2702 = vmatpush1.bf16.msra.mxu0 0
        %2703 = vmatprep.subr.bf16.mxu0 0
        %2704 = vmatpush1.bf16.msra.mxu0 0
        %2705 = vmatprep.subr.bf16.mxu0 0
        %2706 = vmatpush1.bf16.msra.mxu0 0
        %2707 = vmatprep.subr.bf16.mxu0 0
        %2708 = vmatpush1.bf16.msra.mxu0 0
        %2709 = vmatprep.subr.bf16.mxu0 0
        %2710 = vmatpush1.bf16.msra.mxu0 0
        %2711 = vmatprep.subr.bf16.mxu0 0
        %2712 = vmatpush1.bf16.msra.mxu0 0
        %2713 = vmatprep.subr.bf16.mxu0 0
        %2714 = vmatpush1.bf16.msra.mxu0 0
        %2715 = vmatprep.subr.bf16.mxu0 0
        %2716 = vmatpush1.bf16.msra.mxu0 0
        %2717 = vmatprep.subr.bf16.mxu0 0
        %2718 = vmatpush1.bf16.msra.mxu0 0
        %2719 = vmatprep.subr.bf16.mxu0 0
        %2720 = vmatpush1.bf16.msra.mxu0 0
        %2721 = vmatprep.subr.bf16.mxu0 0
        %2722 = vmatpush1.bf16.msra.mxu0 0
        %2723 = vmatprep.subr.bf16.mxu0 0
        %2724 = vmatpush1.bf16.msra.mxu0 0
        %2725 = vmatprep.subr.bf16.mxu0 0
        %2726 = vmatpush1.bf16.msra.mxu0 0
        %2727 = vmatprep.mubr.bf16.mxu0 0
        %2728 = vmatmul.mubr.bf16.gmra.mrb[0].mxu0 %v2660
        %v2729 = vpop.f32.mrb[0].mxu0
        %v2730 = vadd.f32 0.0, %v2729
        %v2731 = vpop.f32.mrb[0].mxu0
        %v2732 = vpop.f32.mrb[0].mxu0
        %v2733 = vadd.f32 0.0, %v2732
        %v2734 = vpop.f32.mrb[0].mxu0
        %2735 = vmatprep.mubr.bf16.mxu0 0
        %2736 = vmatmul.mubr.bf16.gmra.mrb[0].mxu0 %v2662
        %v2737 = vpop.f32.mrb[0].mxu0
        %v2738 = vadd.f32 0.0, %v2737
        %v2739 = vpop.f32.mrb[0].mxu0
        %v2740 = vpop.f32.mrb[0].mxu0
        %v2741 = vadd.f32 0.0, %v2740
        %v2742 = vpop.f32.mrb[0].mxu0
        %2743 = vmatprep.mubr.bf16.mxu0 0
        %2744 = vmatmul.mubr.bf16.gmra.mrb[0].mxu0 %v2664
        %v2745 = vpop.f32.mrb[0].mxu0
        %v2746 = vadd.f32 0.0, %v2745
        %v2747 = vpop.f32.mrb[0].mxu0
        %v2748 = vpop.f32.mrb[0].mxu0
        %v2749 = vadd.f32 0.0, %v2748
        %v2750 = vpop.f32.mrb[0].mxu0
        %2751 = vmatprep.mubr.bf16.mxu0 0
        %2752 = vmatmul.mubr.bf16.gmra.mrb[0].mxu0 %v2666
        %v2753 = vpop.f32.mrb[0].mxu0
        %v2754 = vadd.f32 0.0, %v2753
        %v2755 = vpop.f32.mrb[0].mxu0
        %v2756 = vpop.f32.mrb[0].mxu0
        %v2757 = vadd.f32 0.0, %v2756
        %v2758 = vpop.f32.mrb[0].mxu0
        %2759 = vmatprep.mubr.bf16.mxu0 0
        %2760 = vmatmul.mubr.bf16.gmra.mrb[0].mxu0 %v2668
        %v2761 = vpop.f32.mrb[0].mxu0
        %v2762 = vadd.f32 0.0, %v2761
        %v2763 = vpop.f32.mrb[0].mxu0
        %v2764 = vpop.f32.mrb[0].mxu0
        %v2765 = vadd.f32 0.0, %v2764
        %v2766 = vpop.f32.mrb[0].mxu0
        %2767 = vmatprep.mubr.bf16.mxu0 0
        %2768 = vmatmul.mubr.bf16.gmra.mrb[0].mxu0 %v2670
        %v2769 = vpop.f32.mrb[0].mxu0
        %v2770 = vadd.f32 0.0, %v2769
        %v2771 = vpop.f32.mrb[0].mxu0
        %v2772 = vpop.f32.mrb[0].mxu0
        %v2773 = vadd.f32 0.0, %v2772
        %v2774 = vpop.f32.mrb[0].mxu0
        %2775 = vmatprep.mubr.bf16.mxu0 0
        %2776 = vmatmul.mubr.bf16.gmra.mrb[0].mxu0 %v2672
        %v2777 = vpop.f32.mrb[0].mxu0
        %v2778 = vadd.f32 0.0, %v2777
        %v2779 = vpop.f32.mrb[0].mxu0
        %v2780 = vpop.f32.mrb[0].mxu0
        %v2781 = vadd.f32 0.0, %v2780
        %v2782 = vpop.f32.mrb[0].mxu0
        %2783 = vmatprep.mubr.bf16.mxu0 0
        %2784 = vmatmul.mubr.bf16.gmra.mrb[0].mxu0 %v2674
        %v2785 = vpop.f32.mrb[0].mxu0
        %v2786 = vadd.f32 0.0, %v2785
        %v2787 = vpop.f32.mrb[0].mxu0
        %v2788 = vpop.f32.mrb[0].mxu0
        %v2789 = vadd.f32 0.0, %v2788
        %v2790 = vpop.f32.mrb[0].mxu0
        %2791 = vmatprep.mubr.bf16.mxu0 0
        %2792 = vmatmul.mubr.bf16.gmra.mrb[0].mxu0 %v2676
        %v2793 = vpop.f32.mrb[0].mxu0
        %v2794 = vadd.f32 0.0, %v2793
        %v2795 = vpop.f32.mrb[0].mxu0
        %v2796 = vpop.f32.mrb[0].mxu0
        %v2797 = vadd.f32 0.0, %v2796
        %v2798 = vpop.f32.mrb[0].mxu0
        %2799 = vmatprep.mubr.bf16.mxu0 0
        %2800 = vmatmul.mubr.bf16.gmra.mrb[0].mxu0 %v2678
        %v2801 = vpop.f32.mrb[0].mxu0
        %v2802 = vadd.f32 0.0, %v2801
        %v2803 = vpop.f32.mrb[0].mxu0
        %v2804 = vpop.f32.mrb[0].mxu0
        %v2805 = vadd.f32 0.0, %v2804
        %v2806 = vpop.f32.mrb[0].mxu0
        %2807 = vmatprep.mubr.bf16.mxu0 0
        %2808 = vmatmul.mubr.bf16.gmra.mrb[0].mxu0 %v2680
        %v2809 = vpop.f32.mrb[0].mxu0
        %v2810 = vadd.f32 0.0, %v2809
        %v2811 = vpop.f32.mrb[0].mxu0
        %v2812 = vpop.f32.mrb[0].mxu0
        %v2813 = vadd.f32 0.0, %v2812
        %v2814 = vpop.f32.mrb[0].mxu0
        %2815 = vmatprep.mubr.bf16.mxu0 0
        %2816 = vmatmul.mubr.bf16.gmra.mrb[0].mxu0 %v2682
        %v2817 = vpop.f32.mrb[0].mxu0
        %v2818 = vadd.f32 0.0, %v2817
        %v2819 = vpop.f32.mrb[0].mxu0
        %v2820 = vpop.f32.mrb[0].mxu0
        %v2821 = vadd.f32 0.0, %v2820
        %v2822 = vpop.f32.mrb[0].mxu0
        %2823 = vmatprep.mubr.bf16.mxu0 0
        %2824 = vmatmul.mubr.bf16.gmra.mrb[0].mxu0 %v2684
        %v2825 = vpop.f32.mrb[0].mxu0
        %v2826 = vadd.f32 0.0, %v2825
        %v2827 = vpop.f32.mrb[0].mxu0
        %v2828 = vpop.f32.mrb[0].mxu0
        %v2829 = vadd.f32 0.0, %v2828
        %v2830 = vpop.f32.mrb[0].mxu0
        %2831 = vmatprep.mubr.bf16.mxu0 0
        %2832 = vmatmul.mubr.bf16.gmra.mrb[0].mxu0 %v2686
        %v2833 = vpop.f32.mrb[0].mxu0
        %v2834 = vadd.f32 0.0, %v2833
        %v2835 = vpop.f32.mrb[0].mxu0
        %v2836 = vpop.f32.mrb[0].mxu0
        %v2837 = vadd.f32 0.0, %v2836
        %v2838 = vpop.f32.mrb[0].mxu0
        %2839 = vmatprep.mubr.bf16.mxu0 0
        %2840 = vmatmul.mubr.bf16.gmra.mrb[0].mxu0 %v2688
        %v2841 = vpop.f32.mrb[0].mxu0
        %v2842 = vadd.f32 0.0, %v2841
        %v2843 = vpop.f32.mrb[0].mxu0
        %v2844 = vpop.f32.mrb[0].mxu0
        %v2845 = vadd.f32 0.0, %v2844
        %v2846 = vpop.f32.mrb[0].mxu0
        %2847 = vmatprep.mubr.bf16.mxu0 0
        %2848 = vmatmul.mubr.bf16.gmra.mrb[0].mxu0 %v2690
        %v2849 = vpop.f32.mrb[0].mxu0
        %v2850 = vadd.f32 0.0, %v2849
        %v2851 = vpop.f32.mrb[0].mxu0
        %v2852 = vpop.f32.mrb[0].mxu0
        %v2853 = vadd.f32 0.0, %v2852
        %v2854 = vpop.f32.mrb[0].mxu0
        %2855 = vdwg.mxu0
        %v2856 = vadd.f32 %v2125, %v2730
        %v2857 = vadd.f32 %v2128, %v2733
        %v2858 = vadd.f32 %v2133, %v2738
        %v2859 = vadd.f32 %v2136, %v2741
        %v2860 = vadd.f32 %v2141, %v2746
        %v2861 = vadd.f32 %v2144, %v2749
        %v2862 = vadd.f32 %v2149, %v2754
        %v2863 = vadd.f32 %v2152, %v2757
        %v2864 = vadd.f32 %v2157, %v2762
        %v2865 = vadd.f32 %v2160, %v2765
        %v2866 = vadd.f32 %v2165, %v2770
        %v2867 = vadd.f32 %v2168, %v2773
        %v2868 = vadd.f32 %v2173, %v2778
        %v2869 = vadd.f32 %v2176, %v2781
        %v2870 = vadd.f32 %v2181, %v2786
        %v2871 = vadd.f32 %v2184, %v2789
        %v2872 = vadd.f32 %v2189, %v2794
        %v2873 = vadd.f32 %v2192, %v2797
        %v2874 = vadd.f32 %v2197, %v2802
        %v2875 = vadd.f32 %v2200, %v2805
        %v2876 = vadd.f32 %v2205, %v2810
        %v2877 = vadd.f32 %v2208, %v2813
        %v2878 = vadd.f32 %v2213, %v2818
        %v2879 = vadd.f32 %v2216, %v2821
        %v2880 = vadd.f32 %v2221, %v2826
        %v2881 = vadd.f32 %v2224, %v2829
        %v2882 = vadd.f32 %v2229, %v2834
        %v2883 = vadd.f32 %v2232, %v2837
        %v2884 = vadd.f32 %v2237, %v2842
        %v2885 = vadd.f32 %v2240, %v2845
        %v2886 = vadd.f32 %v2245, %v2850
        %v2887 = vadd.f32 %v2248, %v2853
        %v2888 = vld [vmem:[#allocation11] sm:$0x1]
        %v2890 = vlaneseq
        %v2891 = vshrl.u32 %v2890, 7
        %v2892 = vsub.s32 0, %v2891
        %v2893 = vrot.slane %v2888, %v2892
        %v2895 = vadd.f32 %v2856, %v2893
        %v2896 = vadd.f32 %v2857, %v2893
        %v2897 = vadd.f32 %v2858, %v2893
        %v2898 = vadd.f32 %v2859, %v2893
        %v2899 = vadd.f32 %v2860, %v2893
        %v2900 = vadd.f32 %v2861, %v2893
        %v2901 = vadd.f32 %v2862, %v2893
        %v2902 = vadd.f32 %v2863, %v2893
        %v2903 = vadd.f32 %v2864, %v2893
        %v2904 = vadd.f32 %v2865, %v2893
        %v2905 = vadd.f32 %v2866, %v2893
        %v2906 = vadd.f32 %v2867, %v2893
        %v2907 = vadd.f32 %v2868, %v2893
        %v2908 = vadd.f32 %v2869, %v2893
        %v2909 = vadd.f32 %v2870, %v2893
        %v2910 = vadd.f32 %v2871, %v2893
        %v2911 = vadd.f32 %v2872, %v2893
        %v2912 = vadd.f32 %v2873, %v2893
        %v2913 = vadd.f32 %v2874, %v2893
        %v2914 = vadd.f32 %v2875, %v2893
        %v2915 = vadd.f32 %v2876, %v2893
        %v2916 = vadd.f32 %v2877, %v2893
        %v2917 = vadd.f32 %v2878, %v2893
        %v2918 = vadd.f32 %v2879, %v2893
        %v2919 = vadd.f32 %v2880, %v2893
        %v2920 = vadd.f32 %v2881, %v2893
        %v2921 = vadd.f32 %v2882, %v2893
        %v2922 = vadd.f32 %v2883, %v2893
        %v2923 = vadd.f32 %v2884, %v2893
        %v2924 = vadd.f32 %v2885, %v2893
        %v2925 = vadd.f32 %v2886, %v2893
        %v2926 = vadd.f32 %v2887, %v2893
        %v2927 = vmax.f32 %v2895, 0.0
        %v2928 = vmax.f32 %v2896, 0.0
        %v2929 = vmax.f32 %v2897, 0.0
        %v2930 = vmax.f32 %v2898, 0.0
        %v2931 = vmax.f32 %v2899, 0.0
        %v2932 = vmax.f32 %v2900, 0.0
        %v2933 = vmax.f32 %v2901, 0.0
        %v2934 = vmax.f32 %v2902, 0.0
        %v2935 = vmax.f32 %v2903, 0.0
        %v2936 = vmax.f32 %v2904, 0.0
        %v2937 = vmax.f32 %v2905, 0.0
        %v2938 = vmax.f32 %v2906, 0.0
        %v2939 = vmax.f32 %v2907, 0.0
        %v2940 = vmax.f32 %v2908, 0.0
        %v2941 = vmax.f32 %v2909, 0.0
        %v2942 = vmax.f32 %v2910, 0.0
        %v2943 = vmax.f32 %v2911, 0.0
        %v2944 = vmax.f32 %v2912, 0.0
        %v2945 = vmax.f32 %v2913, 0.0
        %v2946 = vmax.f32 %v2914, 0.0
        %v2947 = vmax.f32 %v2915, 0.0
        %v2948 = vmax.f32 %v2916, 0.0
        %v2949 = vmax.f32 %v2917, 0.0
        %v2950 = vmax.f32 %v2918, 0.0
        %v2951 = vmax.f32 %v2919, 0.0
        %v2952 = vmax.f32 %v2920, 0.0
        %v2953 = vmax.f32 %v2921, 0.0
        %v2954 = vmax.f32 %v2922, 0.0
        %v2955 = vmax.f32 %v2923, 0.0
        %v2956 = vmax.f32 %v2924, 0.0
        %v2957 = vmax.f32 %v2925, 0.0
        %v2958 = vmax.f32 %v2926, 0.0
        %v2959 = vpack.c.bf16 %v2928, %v2927
        %v2960 = vpack.c.bf16 %v2930, %v2929
        %v2961 = vpack.c.bf16 %v2932, %v2931
        %v2962 = vpack.c.bf16 %v2934, %v2933
        %v2963 = vpack.c.bf16 %v2936, %v2935
        %v2964 = vpack.c.bf16 %v2938, %v2937
        %v2965 = vpack.c.bf16 %v2940, %v2939
        %v2966 = vpack.c.bf16 %v2942, %v2941
        %v2967 = vpack.c.bf16 %v2944, %v2943
        %v2968 = vpack.c.bf16 %v2946, %v2945
        %v2969 = vpack.c.bf16 %v2948, %v2947
        %v2970 = vpack.c.bf16 %v2950, %v2949
        %v2971 = vpack.c.bf16 %v2952, %v2951
        %v2972 = vpack.c.bf16 %v2954, %v2953
        %v2973 = vpack.c.bf16 %v2956, %v2955
        %v2974 = vpack.c.bf16 %v2958, %v2957
        %v2975 = vld [vmem:[#allocation12] sm:$0x3]
        %v2976 = vld [vmem:[#allocation14] sm:$0x1]
        %v2978 = vlaneseq
        %v2979 = vshrl.u32 %v2978, 7
        %v2980 = vsub.s32 0, %v2979
        %v2981 = vrot.slane %v2976, %v2980
        %v2984 = vsel %vm595, %v2959, 0
        %v2987 = vsel %vm595, %v2960, 0
        %v2990 = vsel %vm595, %v2961, 0
        %v2993 = vsel %vm595, %v2962, 0
        %v2996 = vsel %vm595, %v2963, 0
        %v2999 = vsel %vm595, %v2964, 0
        %v3002 = vsel %vm595, %v2965, 0
        %v3005 = vsel %vm595, %v2966, 0
        %v3008 = vsel %vm595, %v2967, 0
        %v3011 = vsel %vm595, %v2968, 0
        %v3014 = vsel %vm595, %v2969, 0
        %v3017 = vsel %vm595, %v2970, 0
        %v3020 = vsel %vm595, %v2971, 0
        %v3023 = vsel %vm595, %v2972, 0
        %v3026 = vsel %vm595, %v2973, 0
        %v3029 = vsel %vm595, %v2974, 0
        %v3032 = vsel %vm644, %v2975, 0
        %3034 = vmatprep.subr.bf16.mxu0 0
        %3035 = vmatpush1.bf16.msra.mxu0 %v3032
        %3036 = vmatprep.subr.bf16.mxu0 0
        %3037 = vmatpush1.bf16.msra.mxu0 0
        %3038 = vmatprep.subr.bf16.mxu0 0
        %3039 = vmatpush1.bf16.msra.mxu0 0
        %3040 = vmatprep.subr.bf16.mxu0 0
        %3041 = vmatpush1.bf16.msra.mxu0 0
        %3042 = vmatprep.subr.bf16.mxu0 0
        %3043 = vmatpush1.bf16.msra.mxu0 0
        %3044 = vmatprep.subr.bf16.mxu0 0
        %3045 = vmatpush1.bf16.msra.mxu0 0
        %3046 = vmatprep.subr.bf16.mxu0 0
        %3047 = vmatpush1.bf16.msra.mxu0 0
        %3048 = vmatprep.subr.bf16.mxu0 0
        %3049 = vmatpush1.bf16.msra.mxu0 0
        %3050 = vmatprep.subr.bf16.mxu0 0
        %3051 = vmatpush1.bf16.msra.mxu0 0
        %3052 = vmatprep.subr.bf16.mxu0 0
        %3053 = vmatpush1.bf16.msra.mxu0 0
        %3054 = vmatprep.subr.bf16.mxu0 0
        %3055 = vmatpush1.bf16.msra.mxu0 0
        %3056 = vmatprep.subr.bf16.mxu0 0
        %3057 = vmatpush1.bf16.msra.mxu0 0
        %3058 = vmatprep.subr.bf16.mxu0 0
        %3059 = vmatpush1.bf16.msra.mxu0 0
        %3060 = vmatprep.subr.bf16.mxu0 0
        %3061 = vmatpush1.bf16.msra.mxu0 0
        %3062 = vmatprep.subr.bf16.mxu0 0
        %3063 = vmatpush1.bf16.msra.mxu0 0
        %3064 = vmatprep.subr.bf16.mxu0 0
        %3065 = vmatpush1.bf16.msra.mxu0 0
        %3066 = vmatprep.mubr.bf16.mxu0 0
        %3067 = vmatmul.mubr.bf16.gmra.mrb[0].mxu0 %v2984
        %v3068 = vpop.f32.mrb[0].mxu0
        %v3069 = vadd.f32 %v2981, %v3068
        %v3070 = vpop.f32.mrb[0].mxu0
        %v3071 = vpop.f32.mrb[0].mxu0
        %v3072 = vadd.f32 %v2981, %v3071
        %v3073 = vpop.f32.mrb[0].mxu0
        %3074 = vmatprep.mubr.bf16.mxu0 0
        %3075 = vmatmul.mubr.bf16.gmra.mrb[0].mxu0 %v2987
        %v3076 = vpop.f32.mrb[0].mxu0
        %v3077 = vadd.f32 %v2981, %v3076
        %v3078 = vpop.f32.mrb[0].mxu0
        %v3079 = vpop.f32.mrb[0].mxu0
        %v3080 = vadd.f32 %v2981, %v3079
        %v3081 = vpop.f32.mrb[0].mxu0
        %3082 = vmatprep.mubr.bf16.mxu0 0
        %3083 = vmatmul.mubr.bf16.gmra.mrb[0].mxu0 %v2990
        %v3084 = vpop.f32.mrb[0].mxu0
        %v3085 = vadd.f32 %v2981, %v3084
        %v3086 = vpop.f32.mrb[0].mxu0
        %v3087 = vpop.f32.mrb[0].mxu0
        %v3088 = vadd.f32 %v2981, %v3087
        %v3089 = vpop.f32.mrb[0].mxu0
        %3090 = vmatprep.mubr.bf16.mxu0 0
        %3091 = vmatmul.mubr.bf16.gmra.mrb[0].mxu0 %v2993
        %v3092 = vpop.f32.mrb[0].mxu0
        %v3093 = vadd.f32 %v2981, %v3092
        %v3094 = vpop.f32.mrb[0].mxu0
        %v3095 = vpop.f32.mrb[0].mxu0
        %v3096 = vadd.f32 %v2981, %v3095
        %v3097 = vpop.f32.mrb[0].mxu0
        %3098 = vmatprep.mubr.bf16.mxu0 0
        %3099 = vmatmul.mubr.bf16.gmra.mrb[0].mxu0 %v2996
        %v3100 = vpop.f32.mrb[0].mxu0
        %v3101 = vadd.f32 %v2981, %v3100
        %v3102 = vpop.f32.mrb[0].mxu0
        %v3103 = vpop.f32.mrb[0].mxu0
        %v3104 = vadd.f32 %v2981, %v3103
        %v3105 = vpop.f32.mrb[0].mxu0
        %3106 = vmatprep.mubr.bf16.mxu0 0
        %3107 = vmatmul.mubr.bf16.gmra.mrb[0].mxu0 %v2999
        %v3108 = vpop.f32.mrb[0].mxu0
        %v3109 = vadd.f32 %v2981, %v3108
        %v3110 = vpop.f32.mrb[0].mxu0
        %v3111 = vpop.f32.mrb[0].mxu0
        %v3112 = vadd.f32 %v2981, %v3111
        %v3113 = vpop.f32.mrb[0].mxu0
        %3114 = vmatprep.mubr.bf16.mxu0 0
        %3115 = vmatmul.mubr.bf16.gmra.mrb[0].mxu0 %v3002
        %v3116 = vpop.f32.mrb[0].mxu0
        %v3117 = vadd.f32 %v2981, %v3116
        %v3118 = vpop.f32.mrb[0].mxu0
        %v3119 = vpop.f32.mrb[0].mxu0
        %v3120 = vadd.f32 %v2981, %v3119
        %v3121 = vpop.f32.mrb[0].mxu0
        %3122 = vmatprep.mubr.bf16.mxu0 0
        %3123 = vmatmul.mubr.bf16.gmra.mrb[0].mxu0 %v3005
        %v3124 = vpop.f32.mrb[0].mxu0
        %v3125 = vadd.f32 %v2981, %v3124
        %v3126 = vpop.f32.mrb[0].mxu0
        %v3127 = vpop.f32.mrb[0].mxu0
        %v3128 = vadd.f32 %v2981, %v3127
        %v3129 = vpop.f32.mrb[0].mxu0
        %3130 = vmatprep.mubr.bf16.mxu0 0
        %3131 = vmatmul.mubr.bf16.gmra.mrb[0].mxu0 %v3008
        %v3132 = vpop.f32.mrb[0].mxu0
        %v3133 = vadd.f32 %v2981, %v3132
        %v3134 = vpop.f32.mrb[0].mxu0
        %v3135 = vpop.f32.mrb[0].mxu0
        %v3136 = vadd.f32 %v2981, %v3135
        %v3137 = vpop.f32.mrb[0].mxu0
        %3138 = vmatprep.mubr.bf16.mxu0 0
        %3139 = vmatmul.mubr.bf16.gmra.mrb[0].mxu0 %v3011
        %v3140 = vpop.f32.mrb[0].mxu0
        %v3141 = vadd.f32 %v2981, %v3140
        %v3142 = vpop.f32.mrb[0].mxu0
        %v3143 = vpop.f32.mrb[0].mxu0
        %v3144 = vadd.f32 %v2981, %v3143
        %v3145 = vpop.f32.mrb[0].mxu0
        %3146 = vmatprep.mubr.bf16.mxu0 0
        %3147 = vmatmul.mubr.bf16.gmra.mrb[0].mxu0 %v3014
        %v3148 = vpop.f32.mrb[0].mxu0
        %v3149 = vadd.f32 %v2981, %v3148
        %v3150 = vpop.f32.mrb[0].mxu0
        %v3151 = vpop.f32.mrb[0].mxu0
        %v3152 = vadd.f32 %v2981, %v3151
        %v3153 = vpop.f32.mrb[0].mxu0
        %3154 = vmatprep.mubr.bf16.mxu0 0
        %3155 = vmatmul.mubr.bf16.gmra.mrb[0].mxu0 %v3017
        %v3156 = vpop.f32.mrb[0].mxu0
        %v3157 = vadd.f32 %v2981, %v3156
        %v3158 = vpop.f32.mrb[0].mxu0
        %v3159 = vpop.f32.mrb[0].mxu0
        %v3160 = vadd.f32 %v2981, %v3159
        %v3161 = vpop.f32.mrb[0].mxu0
        %3162 = vmatprep.mubr.bf16.mxu0 0
        %3163 = vmatmul.mubr.bf16.gmra.mrb[0].mxu0 %v3020
        %v3164 = vpop.f32.mrb[0].mxu0
        %v3165 = vadd.f32 %v2981, %v3164
        %v3166 = vpop.f32.mrb[0].mxu0
        %v3167 = vpop.f32.mrb[0].mxu0
        %v3168 = vadd.f32 %v2981, %v3167
        %v3169 = vpop.f32.mrb[0].mxu0
        %3170 = vmatprep.mubr.bf16.mxu0 0
        %3171 = vmatmul.mubr.bf16.gmra.mrb[0].mxu0 %v3023
        %v3172 = vpop.f32.mrb[0].mxu0
        %v3173 = vadd.f32 %v2981, %v3172
        %v3174 = vpop.f32.mrb[0].mxu0
        %v3175 = vpop.f32.mrb[0].mxu0
        %v3176 = vadd.f32 %v2981, %v3175
        %v3177 = vpop.f32.mrb[0].mxu0
        %3178 = vmatprep.mubr.bf16.mxu0 0
        %3179 = vmatmul.mubr.bf16.gmra.mrb[0].mxu0 %v3026
        %v3180 = vpop.f32.mrb[0].mxu0
        %v3181 = vadd.f32 %v2981, %v3180
        %v3182 = vpop.f32.mrb[0].mxu0
        %v3183 = vpop.f32.mrb[0].mxu0
        %v3184 = vadd.f32 %v2981, %v3183
        %v3185 = vpop.f32.mrb[0].mxu0
        %3186 = vmatprep.mubr.bf16.mxu0 0
        %3187 = vmatmul.mubr.bf16.gmra.mrb[0].mxu0 %v3029
        %v3188 = vpop.f32.mrb[0].mxu0
        %v3189 = vadd.f32 %v2981, %v3188
        %v3190 = vpop.f32.mrb[0].mxu0
        %v3191 = vpop.f32.mrb[0].mxu0
        %v3192 = vadd.f32 %v2981, %v3191
        %v3193 = vpop.f32.mrb[0].mxu0
        %3194 = vdwg.mxu0
        %v3195 = vld [vmem:[#allocation15] sm:$0x3]
        %v3196 = vld [vmem:[#allocation17] sm:$0x1]
        %v3198 = vlaneseq
        %v3199 = vshrl.u32 %v3198, 7
        %v3200 = vsub.s32 0, %v3199
        %v3201 = vrot.slane %v3196, %v3200
        %v3204 = vsel %vm644, %v3195, 0
        %3206 = vmatprep.subr.bf16.mxu0 0
        %3207 = vmatpush1.bf16.msra.mxu0 %v3204
        %3208 = vmatprep.subr.bf16.mxu0 0
        %3209 = vmatpush1.bf16.msra.mxu0 0
        %3210 = vmatprep.subr.bf16.mxu0 0
        %3211 = vmatpush1.bf16.msra.mxu0 0
        %3212 = vmatprep.subr.bf16.mxu0 0
        %3213 = vmatpush1.bf16.msra.mxu0 0
        %3214 = vmatprep.subr.bf16.mxu0 0
        %3215 = vmatpush1.bf16.msra.mxu0 0
        %3216 = vmatprep.subr.bf16.mxu0 0
        %3217 = vmatpush1.bf16.msra.mxu0 0
        %3218 = vmatprep.subr.bf16.mxu0 0
        %3219 = vmatpush1.bf16.msra.mxu0 0
        %3220 = vmatprep.subr.bf16.mxu0 0
        %3221 = vmatpush1.bf16.msra.mxu0 0
        %3222 = vmatprep.subr.bf16.mxu0 0
        %3223 = vmatpush1.bf16.msra.mxu0 0
        %3224 = vmatprep.subr.bf16.mxu0 0
        %3225 = vmatpush1.bf16.msra.mxu0 0
        %3226 = vmatprep.subr.bf16.mxu0 0
        %3227 = vmatpush1.bf16.msra.mxu0 0
        %3228 = vmatprep.subr.bf16.mxu0 0
        %3229 = vmatpush1.bf16.msra.mxu0 0
        %3230 = vmatprep.subr.bf16.mxu0 0
        %3231 = vmatpush1.bf16.msra.mxu0 0
        %3232 = vmatprep.subr.bf16.mxu0 0
        %3233 = vmatpush1.bf16.msra.mxu0 0
        %3234 = vmatprep.subr.bf16.mxu0 0
        %3235 = vmatpush1.bf16.msra.mxu0 0
        %3236 = vmatprep.subr.bf16.mxu0 0
        %3237 = vmatpush1.bf16.msra.mxu0 0
        %3238 = vmatprep.mubr.bf16.mxu0 0
        %3239 = vmatmul.mubr.bf16.gmra.mrb[0].mxu0 %v597
        %v3240 = vpop.f32.mrb[0].mxu0
        %v3241 = vadd.f32 %v3201, %v3240
        %v3242 = vpop.f32.mrb[0].mxu0
        %v3243 = vpop.f32.mrb[0].mxu0
        %v3244 = vadd.f32 %v3201, %v3243
        %v3245 = vpop.f32.mrb[0].mxu0
        %3246 = vmatprep.mubr.bf16.mxu0 0
        %3247 = vmatmul.mubr.bf16.gmra.mrb[0].mxu0 %v600
        %v3248 = vpop.f32.mrb[0].mxu0
        %v3249 = vadd.f32 %v3201, %v3248
        %v3250 = vpop.f32.mrb[0].mxu0
        %v3251 = vpop.f32.mrb[0].mxu0
        %v3252 = vadd.f32 %v3201, %v3251
        %v3253 = vpop.f32.mrb[0].mxu0
        %3254 = vmatprep.mubr.bf16.mxu0 0
        %3255 = vmatmul.mubr.bf16.gmra.mrb[0].mxu0 %v603
        %v3256 = vpop.f32.mrb[0].mxu0
        %v3257 = vadd.f32 %v3201, %v3256
        %v3258 = vpop.f32.mrb[0].mxu0
        %v3259 = vpop.f32.mrb[0].mxu0
        %v3260 = vadd.f32 %v3201, %v3259
        %v3261 = vpop.f32.mrb[0].mxu0
        %3262 = vmatprep.mubr.bf16.mxu0 0
        %3263 = vmatmul.mubr.bf16.gmra.mrb[0].mxu0 %v606
        %v3264 = vpop.f32.mrb[0].mxu0
        %v3265 = vadd.f32 %v3201, %v3264
        %v3266 = vpop.f32.mrb[0].mxu0
        %v3267 = vpop.f32.mrb[0].mxu0
        %v3268 = vadd.f32 %v3201, %v3267
        %v3269 = vpop.f32.mrb[0].mxu0
        %3270 = vmatprep.mubr.bf16.mxu0 0
        %3271 = vmatmul.mubr.bf16.gmra.mrb[0].mxu0 %v609
        %v3272 = vpop.f32.mrb[0].mxu0
        %v3273 = vadd.f32 %v3201, %v3272
        %v3274 = vpop.f32.mrb[0].mxu0
        %v3275 = vpop.f32.mrb[0].mxu0
        %v3276 = vadd.f32 %v3201, %v3275
        %v3277 = vpop.f32.mrb[0].mxu0
        %3278 = vmatprep.mubr.bf16.mxu0 0
        %3279 = vmatmul.mubr.bf16.gmra.mrb[0].mxu0 %v612
        %v3280 = vpop.f32.mrb[0].mxu0
        %v3281 = vadd.f32 %v3201, %v3280
        %v3282 = vpop.f32.mrb[0].mxu0
        %v3283 = vpop.f32.mrb[0].mxu0
        %v3284 = vadd.f32 %v3201, %v3283
        %v3285 = vpop.f32.mrb[0].mxu0
        %3286 = vmatprep.mubr.bf16.mxu0 0
        %3287 = vmatmul.mubr.bf16.gmra.mrb[0].mxu0 %v615
        %v3288 = vpop.f32.mrb[0].mxu0
        %v3289 = vadd.f32 %v3201, %v3288
        %v3290 = vpop.f32.mrb[0].mxu0
        %v3291 = vpop.f32.mrb[0].mxu0
        %v3292 = vadd.f32 %v3201, %v3291
        %v3293 = vpop.f32.mrb[0].mxu0
        %3294 = vmatprep.mubr.bf16.mxu0 0
        %3295 = vmatmul.mubr.bf16.gmra.mrb[0].mxu0 %v618
        %v3296 = vpop.f32.mrb[0].mxu0
        %v3297 = vadd.f32 %v3201, %v3296
        %v3298 = vpop.f32.mrb[0].mxu0
        %v3299 = vpop.f32.mrb[0].mxu0
        %v3300 = vadd.f32 %v3201, %v3299
        %v3301 = vpop.f32.mrb[0].mxu0
        %3302 = vmatprep.mubr.bf16.mxu0 0
        %3303 = vmatmul.mubr.bf16.gmra.mrb[0].mxu0 %v621
        %v3304 = vpop.f32.mrb[0].mxu0
        %v3305 = vadd.f32 %v3201, %v3304
        %v3306 = vpop.f32.mrb[0].mxu0
        %v3307 = vpop.f32.mrb[0].mxu0
        %v3308 = vadd.f32 %v3201, %v3307
        %v3309 = vpop.f32.mrb[0].mxu0
        %3310 = vmatprep.mubr.bf16.mxu0 0
        %3311 = vmatmul.mubr.bf16.gmra.mrb[0].mxu0 %v624
        %v3312 = vpop.f32.mrb[0].mxu0
        %v3313 = vadd.f32 %v3201, %v3312
        %v3314 = vpop.f32.mrb[0].mxu0
        %v3315 = vpop.f32.mrb[0].mxu0
        %v3316 = vadd.f32 %v3201, %v3315
        %v3317 = vpop.f32.mrb[0].mxu0
        %3318 = vmatprep.mubr.bf16.mxu0 0
        %3319 = vmatmul.mubr.bf16.gmra.mrb[0].mxu0 %v627
        %v3320 = vpop.f32.mrb[0].mxu0
        %v3321 = vadd.f32 %v3201, %v3320
        %v3322 = vpop.f32.mrb[0].mxu0
        %v3323 = vpop.f32.mrb[0].mxu0
        %v3324 = vadd.f32 %v3201, %v3323
        %v3325 = vpop.f32.mrb[0].mxu0
        %3326 = vmatprep.mubr.bf16.mxu0 0
        %3327 = vmatmul.mubr.bf16.gmra.mrb[0].mxu0 %v630
        %v3328 = vpop.f32.mrb[0].mxu0
        %v3329 = vadd.f32 %v3201, %v3328
        %v3330 = vpop.f32.mrb[0].mxu0
        %v3331 = vpop.f32.mrb[0].mxu0
        %v3332 = vadd.f32 %v3201, %v3331
        %v3333 = vpop.f32.mrb[0].mxu0
        %3334 = vmatprep.mubr.bf16.mxu0 0
        %3335 = vmatmul.mubr.bf16.gmra.mrb[0].mxu0 %v633
        %v3336 = vpop.f32.mrb[0].mxu0
        %v3337 = vadd.f32 %v3201, %v3336
        %v3338 = vpop.f32.mrb[0].mxu0
        %v3339 = vpop.f32.mrb[0].mxu0
        %v3340 = vadd.f32 %v3201, %v3339
        %v3341 = vpop.f32.mrb[0].mxu0
        %3342 = vmatprep.mubr.bf16.mxu0 0
        %3343 = vmatmul.mubr.bf16.gmra.mrb[0].mxu0 %v636
        %v3344 = vpop.f32.mrb[0].mxu0
        %v3345 = vadd.f32 %v3201, %v3344
        %v3346 = vpop.f32.mrb[0].mxu0
        %v3347 = vpop.f32.mrb[0].mxu0
        %v3348 = vadd.f32 %v3201, %v3347
        %v3349 = vpop.f32.mrb[0].mxu0
        %3350 = vmatprep.mubr.bf16.mxu0 0
        %3351 = vmatmul.mubr.bf16.gmra.mrb[0].mxu0 %v639
        %v3352 = vpop.f32.mrb[0].mxu0
        %v3353 = vadd.f32 %v3201, %v3352
        %v3354 = vpop.f32.mrb[0].mxu0
        %v3355 = vpop.f32.mrb[0].mxu0
        %v3356 = vadd.f32 %v3201, %v3355
        %v3357 = vpop.f32.mrb[0].mxu0
        %3358 = vmatprep.mubr.bf16.mxu0 0
        %3359 = vmatmul.mubr.bf16.gmra.mrb[0].mxu0 %v642
        %v3360 = vpop.f32.mrb[0].mxu0
        %v3361 = vadd.f32 %v3201, %v3360
        %v3362 = vpop.f32.mrb[0].mxu0
        %v3363 = vpop.f32.mrb[0].mxu0
        %v3364 = vadd.f32 %v3201, %v3363
        %v3365 = vpop.f32.mrb[0].mxu0
        %3366 = vdwg.mxu0
        %v3367 = vadd.f32 %v3069, %v3241
        %v3368 = vadd.f32 %v3072, %v3244
        %v3369 = vadd.f32 %v3077, %v3249
        %v3370 = vadd.f32 %v3080, %v3252
        %v3371 = vadd.f32 %v3085, %v3257
        %v3372 = vadd.f32 %v3088, %v3260
        %v3373 = vadd.f32 %v3093, %v3265
        %v3374 = vadd.f32 %v3096, %v3268
        %v3375 = vadd.f32 %v3101, %v3273
        %v3376 = vadd.f32 %v3104, %v3276
        %v3377 = vadd.f32 %v3109, %v3281
        %v3378 = vadd.f32 %v3112, %v3284
        %v3379 = vadd.f32 %v3117, %v3289
        %v3380 = vadd.f32 %v3120, %v3292
        %v3381 = vadd.f32 %v3125, %v3297
        %v3382 = vadd.f32 %v3128, %v3300
        %v3383 = vadd.f32 %v3133, %v3305
        %v3384 = vadd.f32 %v3136, %v3308
        %v3385 = vadd.f32 %v3141, %v3313
        %v3386 = vadd.f32 %v3144, %v3316
        %v3387 = vadd.f32 %v3149, %v3321
        %v3388 = vadd.f32 %v3152, %v3324
        %v3389 = vadd.f32 %v3157, %v3329
        %v3390 = vadd.f32 %v3160, %v3332
        %v3391 = vadd.f32 %v3165, %v3337
        %v3392 = vadd.f32 %v3168, %v3340
        %v3393 = vadd.f32 %v3173, %v3345
        %v3394 = vadd.f32 %v3176, %v3348
        %v3395 = vadd.f32 %v3181, %v3353
        %v3396 = vadd.f32 %v3184, %v3356
        %v3397 = vadd.f32 %v3189, %v3361
        %v3398 = vadd.f32 %v3192, %v3364
        %v3399 = vmax.f32 %v3367, 0.0
        %v3400 = vmax.f32 %v3368, 0.0
        %v3401 = vmax.f32 %v3369, 0.0
        %v3402 = vmax.f32 %v3370, 0.0
        %v3403 = vmax.f32 %v3371, 0.0
        %v3404 = vmax.f32 %v3372, 0.0
        %v3405 = vmax.f32 %v3373, 0.0
        %v3406 = vmax.f32 %v3374, 0.0
        %v3407 = vmax.f32 %v3375, 0.0
        %v3408 = vmax.f32 %v3376, 0.0
        %v3409 = vmax.f32 %v3377, 0.0
        %v3410 = vmax.f32 %v3378, 0.0
        %v3411 = vmax.f32 %v3379, 0.0
        %v3412 = vmax.f32 %v3380, 0.0
        %v3413 = vmax.f32 %v3381, 0.0
        %v3414 = vmax.f32 %v3382, 0.0
        %v3415 = vmax.f32 %v3383, 0.0
        %v3416 = vmax.f32 %v3384, 0.0
        %v3417 = vmax.f32 %v3385, 0.0
        %v3418 = vmax.f32 %v3386, 0.0
        %v3419 = vmax.f32 %v3387, 0.0
        %v3420 = vmax.f32 %v3388, 0.0
        %v3421 = vmax.f32 %v3389, 0.0
        %v3422 = vmax.f32 %v3390, 0.0
        %v3423 = vmax.f32 %v3391, 0.0
        %v3424 = vmax.f32 %v3392, 0.0
        %v3425 = vmax.f32 %v3393, 0.0
        %v3426 = vmax.f32 %v3394, 0.0
        %v3427 = vmax.f32 %v3395, 0.0
        %v3428 = vmax.f32 %v3396, 0.0
        %v3429 = vmax.f32 %v3397, 0.0
        %v3430 = vmax.f32 %v3398, 0.0
        %v3431 = vpack.c.bf16 %v3400, %v3399
        %v3432 = vpack.c.bf16 %v3402, %v3401
        %v3433 = vpack.c.bf16 %v3404, %v3403
        %v3434 = vpack.c.bf16 %v3406, %v3405
        %v3435 = vpack.c.bf16 %v3408, %v3407
        %v3436 = vpack.c.bf16 %v3410, %v3409
        %v3437 = vpack.c.bf16 %v3412, %v3411
        %v3438 = vpack.c.bf16 %v3414, %v3413
        %v3439 = vpack.c.bf16 %v3416, %v3415
        %v3440 = vpack.c.bf16 %v3418, %v3417
        %v3441 = vpack.c.bf16 %v3420, %v3419
        %v3442 = vpack.c.bf16 %v3422, %v3421
        %v3443 = vpack.c.bf16 %v3424, %v3423
        %v3444 = vpack.c.bf16 %v3426, %v3425
        %v3445 = vpack.c.bf16 %v3428, %v3427
        %v3446 = vpack.c.bf16 %v3430, %v3429
        %v3463 = vunpack.c.l.b16 %v3431
        %v3464 = vunpack.c.h.b16 %v3431
        %v3465 = vunpack.c.l.b16 %v3432
        %v3466 = vunpack.c.h.b16 %v3432
        %v3467 = vunpack.c.l.b16 %v3433
        %v3468 = vunpack.c.h.b16 %v3433
        %v3469 = vunpack.c.l.b16 %v3434
        %v3470 = vunpack.c.h.b16 %v3434
        %v3471 = vunpack.c.l.b16 %v3435
        %v3472 = vunpack.c.h.b16 %v3435
        %v3473 = vunpack.c.l.b16 %v3436
        %v3474 = vunpack.c.h.b16 %v3436
        %v3475 = vunpack.c.l.b16 %v3437
        %v3476 = vunpack.c.h.b16 %v3437
        %v3477 = vunpack.c.l.b16 %v3438
        %v3478 = vunpack.c.h.b16 %v3438
        %v3479 = vunpack.c.l.b16 %v3439
        %v3480 = vunpack.c.h.b16 %v3439
        %v3481 = vunpack.c.l.b16 %v3440
        %v3482 = vunpack.c.h.b16 %v3440
        %v3483 = vunpack.c.l.b16 %v3441
        %v3484 = vunpack.c.h.b16 %v3441
        %v3485 = vunpack.c.l.b16 %v3442
        %v3486 = vunpack.c.h.b16 %v3442
        %v3487 = vunpack.c.l.b16 %v3443
        %v3488 = vunpack.c.h.b16 %v3443
        %v3489 = vunpack.c.l.b16 %v3444
        %v3490 = vunpack.c.h.b16 %v3444
        %v3491 = vunpack.c.l.b16 %v3445
        %v3492 = vunpack.c.h.b16 %v3445
        %v3493 = vunpack.c.l.b16 %v3446
        %v3494 = vunpack.c.h.b16 %v3446
        %v3495 = vpack.c.b16 %v3463, %v3463
        %v3496 = vpack.c.b16 %v3464, %v3464
        %v3497 = vpack.c.b16 %v3465, %v3465
        %v3498 = vpack.c.b16 %v3466, %v3466
        %v3499 = vpack.c.b16 %v3467, %v3467
        %v3500 = vpack.c.b16 %v3468, %v3468
        %v3501 = vpack.c.b16 %v3469, %v3469
        %v3502 = vpack.c.b16 %v3470, %v3470
        %v3503 = vpack.c.b16 %v3471, %v3471
        %v3504 = vpack.c.b16 %v3472, %v3472
        %v3505 = vpack.c.b16 %v3473, %v3473
        %v3506 = vpack.c.b16 %v3474, %v3474
        %v3507 = vpack.c.b16 %v3475, %v3475
        %v3508 = vpack.c.b16 %v3476, %v3476
        %v3509 = vpack.c.b16 %v3477, %v3477
        %v3510 = vpack.c.b16 %v3478, %v3478
        %v3511 = vpack.c.b16 %v3479, %v3479
        %v3512 = vpack.c.b16 %v3480, %v3480
        %v3513 = vpack.c.b16 %v3481, %v3481
        %v3514 = vpack.c.b16 %v3482, %v3482
        %v3515 = vpack.c.b16 %v3483, %v3483
        %v3516 = vpack.c.b16 %v3484, %v3484
        %v3517 = vpack.c.b16 %v3485, %v3485
        %v3518 = vpack.c.b16 %v3486, %v3486
        %v3519 = vpack.c.b16 %v3487, %v3487
        %v3520 = vpack.c.b16 %v3488, %v3488
        %v3521 = vpack.c.b16 %v3489, %v3489
        %v3522 = vpack.c.b16 %v3490, %v3490
        %v3523 = vpack.c.b16 %v3491, %v3491
        %v3524 = vpack.c.b16 %v3492, %v3492
        %v3525 = vpack.c.b16 %v3493, %v3493
        %v3526 = vpack.c.b16 %v3494, %v3494
        %vm3559 = vcmask 125952
        %3560 = vst.msk [vmem:[%s466] sm:$0xf] %vm3559, %v3495
        %3561 = vst.msk [vmem:[%s466 + $0x4] sm:$0xf] %vm3559, %v3496
        %3562 = vst.msk [vmem:[%s466 + $0x8] sm:$0xf] %vm3559, %v3497
        %3563 = vst.msk [vmem:[%s466 + $0xc] sm:$0xf] %vm3559, %v3498
        %3564 = vst.msk [vmem:[%s466 + $0x10] sm:$0xf] %vm3559, %v3499
        %3565 = vst.msk [vmem:[%s466 + $0x14] sm:$0xf] %vm3559, %v3500
        %3566 = vst.msk [vmem:[%s466 + $0x18] sm:$0xf] %vm3559, %v3501
        %3567 = vst.msk [vmem:[%s466 + $0x1c] sm:$0xf] %vm3559, %v3502
        %3568 = vst.msk [vmem:[%s466 + $0x20] sm:$0xf] %vm3559, %v3503
        %3569 = vst.msk [vmem:[%s466 + $0x24] sm:$0xf] %vm3559, %v3504
        %3570 = vst.msk [vmem:[%s466 + $0x28] sm:$0xf] %vm3559, %v3505
        %3571 = vst.msk [vmem:[%s466 + $0x2c] sm:$0xf] %vm3559, %v3506
        %3572 = vst.msk [vmem:[%s466 + $0x30] sm:$0xf] %vm3559, %v3507
        %3573 = vst.msk [vmem:[%s466 + $0x34] sm:$0xf] %vm3559, %v3508
        %3574 = vst.msk [vmem:[%s466 + $0x38] sm:$0xf] %vm3559, %v3509
        %3575 = vst.msk [vmem:[%s466 + $0x3c] sm:$0xf] %vm3559, %v3510
        %3576 = vst.msk [vmem:[%s466 + $0x40] sm:$0xf] %vm3559, %v3511
        %3577 = vst.msk [vmem:[%s466 + $0x44] sm:$0xf] %vm3559, %v3512
        %3578 = vst.msk [vmem:[%s466 + $0x48] sm:$0xf] %vm3559, %v3513
        %3579 = vst.msk [vmem:[%s466 + $0x4c] sm:$0xf] %vm3559, %v3514
        %3580 = vst.msk [vmem:[%s466 + $0x50] sm:$0xf] %vm3559, %v3515
        %3581 = vst.msk [vmem:[%s466 + $0x54] sm:$0xf] %vm3559, %v3516
        %3582 = vst.msk [vmem:[%s466 + $0x58] sm:$0xf] %vm3559, %v3517
        %3583 = vst.msk [vmem:[%s466 + $0x5c] sm:$0xf] %vm3559, %v3518
        %3584 = vst.msk [vmem:[%s466 + $0x60] sm:$0xf] %vm3559, %v3519
        %3585 = vst.msk [vmem:[%s466 + $0x64] sm:$0xf] %vm3559, %v3520
        %3586 = vst.msk [vmem:[%s466 + $0x68] sm:$0xf] %vm3559, %v3521
        %3587 = vst.msk [vmem:[%s466 + $0x6c] sm:$0xf] %vm3559, %v3522
        %3588 = vst.msk [vmem:[%s466 + $0x70] sm:$0xf] %vm3559, %v3523
        %3589 = vst.msk [vmem:[%s466 + $0x74] sm:$0xf] %vm3559, %v3524
        %3590 = vst.msk [vmem:[%s466 + $0x78] sm:$0xf] %vm3559, %v3525
        %3591 = vst.msk [vmem:[%s466 + $0x7c] sm:$0xf] %vm3559, %v3526
        %s3592 = sand.u32 %s246, 1
        %s3593 = scalar_lea.sflag [#allocation5], %s3592
        %s3594 = sand.u32 %s246, 1
        %s3595 = smul.addr %s3594, 128
        %s3596 = scalar_lea.vmem [#allocation18], %s3595
        // Predicated region
        $region93: #{bottleneck_forward.1} parent=55 // pred_check
          %p3597 = pneg %p256
        $region94: #{bottleneck_forward.1} parent=55 // pred_check_branch
          %3599 = sbr.rel (%p3597) target = $region96
        $region95: #{bottleneck_forward.1} parent=55 // pred_region
          %s3600 = smul.u32 32, %s35
          %s3602 = ssub.s32 2048, 2048
          %3603 = vsyncadd %s3593, %s3602
          %s3604 = smul.addr %s34, 32
          %s3605 = sadd.s32 %s3600, %s3604
          %s3606 = smul.addr %s3605, 64
          %s3607 = scalar_lea.hbm %s9, %s3606
          %s3608 = sshll.u32 %s3596, 4
          %s3609 = int_to_ptr.vmem [resolvable:$true] %s3608
          %3614 = dma.vmem_to_hbm [thread:$0]  %s3609, 2048, %s3607, %s3593, 64, 64, 4
        $region96: #{bottleneck_forward.1} parent=55 // pred_fallthru
          _
      $region56: #{bottleneck_forward.1} parent=5 // pred_fallthru
        _
      %p3615 = scmp.le.s32.totalorder 2, %s25
      // Predicated region
      $region97: #{bottleneck_forward.1} parent=5 // pred_check
        %p3616 = pneg %p3615
      $region98: #{bottleneck_forward.1} parent=5 // pred_check_branch
        %3618 = sbr.rel (%p3616) target = $region100
      $region99: #{bottleneck_forward.1} parent=5 // pred_region
        %s3619 = ssub.s32 %s25, 2
        // Predicated region
        $region101: #{bottleneck_forward.1} parent=99 // pred_check
          %p3620 = pneg %p262
        $region102: #{bottleneck_forward.1} parent=99 // pred_check_branch
          %3622 = sbr.rel (%p3620) target = $region104
        $region103: #{bottleneck_forward.1} parent=99 // pred_region
          %s3623 = sand.u32 %s247, 1
          %s3624 = scalar_lea.sflag [#allocation5], %s3623
          %s3625 = sand.u32 %s247, 1
          %s3626 = smul.addr %s3625, 128
          %s3627 = scalar_lea.vmem [#allocation18], %s3626
          %3628 = dma.done %s3624, 2048
        $region104: #{bottleneck_forward.1} parent=99 // pred_fallthru
          _
      $region100: #{bottleneck_forward.1} parent=5 // pred_fallthru
        _
    $region6: #{bottleneck_forward.1} parent=1 // loop_footer
      %s29 = sadd.s32 1, %s25
    $region7: #{bottleneck_forward.1} parent=1 // loop_footer_branch
      %24 = sbr.rel target = $region3
    $region8: #{bottleneck_forward.1} parent=1 // loop_exit
      _
    %3629 = vsyncpa [#allocation4], 1
    %s3630 = scalar_lea.sflag [#allocation4], 1
    %3631 = vsyncpa %s3630, 1
    %3632 = vsyncpa [#allocation7], 1
    %3633 = vsyncpa [#allocation10], 1
    %3634 = vsyncpa [#allocation13], 1
    %3635 = vsyncpa [#allocation16], 1
    %3636 = vsyncpa [#allocation5], 1
    %s3637 = scalar_lea.sflag [#allocation5], 1
    %3638 = vsyncpa %s3637, 1

</llo_original>
